<compile_context>
chip_gen: v6e
topology: v6e:2x2x1
jax: 0.10.0
libtpu: 0.0.40
codegen_flags: <defaults>
</compile_context>

<pallas_src>
import functools
import math

import jax
import jax.numpy as jnp
from jax import lax
from jax.experimental import pallas as pl
from jax.experimental.pallas import tpu as pltpu


# ----------------------------------------------------------------------------
# Per-generation VMEM budget + tiling helpers
# ----------------------------------------------------------------------------

_VMEM_BUDGET_CACHE = None


def _vmem_budget():
    """~65% of physical VMEM (v5e/v6e: 128 MiB, v7x: 64 MiB), cached."""
    global _VMEM_BUDGET_CACHE
    if _VMEM_BUDGET_CACHE is None:
        budget = 32 * 1024 * 1024
        try:
            cap = getattr(pltpu.get_tpu_info(), "vmem_capacity_bytes", None)
            if cap:
                budget = int(cap * 0.65)
        except Exception:
            pass
        _VMEM_BUDGET_CACHE = budget
    return _VMEM_BUDGET_CACHE


def _cp(dims):
    return pltpu.CompilerParams(dimension_semantics=dims,
                                vmem_limit_bytes=_vmem_budget())


def _pick_tile(dim, target, align):
    """Largest tile <= target that is a multiple of `align` and divides `dim`,
    else the full dim (full-dim blocks are always layout-legal)."""
    # TODO(synk): replace the full-dim fallback with pl.cdiv grids + masked
    # edge tiles for awkward (prime-ish) dims.
    if dim <= target:
        return dim
    t = (target // align) * align
    while t >= align:
        if dim % t == 0:
            return t
        t -= align
    return dim


# ----------------------------------------------------------------------------
# Q / KV head projections: x (B,S,D) -> (B, H, S, dh) per-head slabs
# (the scale 1/sqrt(dh) is already folded into wq/bq)
# ----------------------------------------------------------------------------

def _q_head_proj_kernel(x_ref, w_ref, b_ref, q_ref):
    q_ref[...] = (jnp.dot(x_ref[...], w_ref[...],
                          preferred_element_type=jnp.float32)
                  + b_ref[...]).astype(q_ref.dtype)


def q_head_projection(x, w, b, tr=256):
    """x: (B,S,D) bf16, w: (H,D,dh) bf16, b: (H,1,dh) f32 -> (B,H,S,dh) bf16."""
    B, S, D = x.shape
    H, _, dh = w.shape
    tr = _pick_tile(S, tr, 16)
    return pl.pallas_call(
        _q_head_proj_kernel,
        out_shape=jax.ShapeDtypeStruct((B, H, S, dh), jnp.bfloat16),
        grid=(B, S // tr, H),
        in_specs=[
            pl.BlockSpec((None, tr, D), lambda b_, r, h: (b_, r, 0)),
            pl.BlockSpec((None, D, dh), lambda b_, r, h: (h, 0, 0)),
            pl.BlockSpec((None, 1, dh), lambda b_, r, h: (h, 0, 0)),
        ],
        out_specs=pl.BlockSpec((None, None, tr, dh),
                               lambda b_, r, h: (b_, h, r, 0)),
        compiler_params=_cp(("parallel", "parallel", "parallel")),
    )(x, w, b)


def _kv_head_proj_kernel(x_ref, wk_ref, bk_ref, wv_ref, bv_ref, k_ref, v_ref):
    xv = x_ref[...]
    k_ref[...] = (jnp.dot(xv, wk_ref[...],
                          preferred_element_type=jnp.float32)
                  + bk_ref[...]).astype(k_ref.dtype)
    v_ref[...] = (jnp.dot(xv, wv_ref[...],
                          preferred_element_type=jnp.float32)
                  + bv_ref[...]).astype(v_ref.dtype)


def kv_head_projection(x, wk, bk, wv, bv, tr=256):
    """x: (B,S,D) bf16 -> (k, v) each (B,H,S,dh) bf16."""
    B, S, D = x.shape
    H, _, dh = wk.shape
    tr = _pick_tile(S, tr, 16)
    w_spec = pl.BlockSpec((None, D, dh), lambda b_, r, h: (h, 0, 0))
    b_spec = pl.BlockSpec((None, 1, dh), lambda b_, r, h: (h, 0, 0))
    out_spec = pl.BlockSpec((None, None, tr, dh),
                            lambda b_, r, h: (b_, h, r, 0))
    return pl.pallas_call(
        _kv_head_proj_kernel,
        out_shape=(jax.ShapeDtypeStruct((B, H, S, dh), jnp.bfloat16),
                   jax.ShapeDtypeStruct((B, H, S, dh), jnp.bfloat16)),
        grid=(B, S // tr, H),
        in_specs=[
            pl.BlockSpec((None, tr, D), lambda b_, r, h: (b_, r, 0)),
            w_spec, b_spec, w_spec, b_spec,
        ],
        out_specs=(out_spec, out_spec),
        compiler_params=_cp(("parallel", "parallel", "parallel")),
    )(x, wk, bk, wv, bv)


# ----------------------------------------------------------------------------
# Flash-style attention core: grid (B, H, q-tiles, k-tiles), online softmax
# ----------------------------------------------------------------------------

def _flash_attn_kernel(q_ref, k_ref, v_ref, *rest, has_mask):
    if has_mask:
        mask_ref, o_ref, m_sc, l_sc, acc_sc = rest
    else:
        o_ref, m_sc, l_sc, acc_sc = rest
    ki = pl.program_id(3)

    @pl.when(ki == 0)
    def _():
        m_sc[...] = jnp.full(m_sc.shape, -1e30, dtype=jnp.float32)
        l_sc[...] = jnp.zeros_like(l_sc)
        acc_sc[...] = jnp.zeros_like(acc_sc)

    # scores (tq, tk) f32; the 1/sqrt(dh) scale is pre-folded into Q.
    s = lax.dot_general(q_ref[...], k_ref[...], (((1,), (1,)), ((), ())),
                        preferred_element_type=jnp.float32)
    if has_mask:
        s = s + mask_ref[...].astype(jnp.float32)

    m_prev = m_sc[...]
    m_new = jnp.maximum(m_prev, jnp.max(s, axis=-1, keepdims=True))
    alpha = jnp.exp(m_prev - m_new)
    p = jnp.exp(s - m_new)
    l_sc[...] = alpha * l_sc[...] + jnp.sum(p, axis=-1, keepdims=True)
    acc_sc[...] = alpha * acc_sc[...] + jnp.dot(
        p.astype(v_ref.dtype), v_ref[...], preferred_element_type=jnp.float32)
    m_sc[...] = m_new

    @pl.when(ki == pl.num_programs(3) - 1)
    def _():
        # NOTE: a fully (-1e9) masked row yields uniform 1/Sk attention rather
        # than NaN (PyTorch) -- same semantics as the previous version.
        denom = jnp.maximum(l_sc[...], 1e-20)
        o_ref[...] = (acc_sc[...] * pl.reciprocal(denom, approx=True)
                      ).astype(o_ref.dtype)


def flash_attention(q, k, v, mask, tq=256, tk=256):
    """q: (B,H,Sq,dh), k/v: (B,H,Sk,dh) bf16; mask: None | (Sq,Sk) | (B,Sq,Sk)
    additive (bf16/f32). Returns per-head context (B,H,Sq,dh) bf16."""
    B, H, Sq, dh = q.shape
    Sk = k.shape[2]
    tq = _pick_tile(Sq, tq, 16)
    tk = _pick_tile(Sk, tk, 16)
    has_mask = mask is not None

    in_specs = [
        pl.BlockSpec((None, None, tq, dh), lambda b, h, qi, ki: (b, h, qi, 0)),
        pl.BlockSpec((None, None, tk, dh), lambda b, h, qi, ki: (b, h, ki, 0)),
        pl.BlockSpec((None, None, tk, dh), lambda b, h, qi, ki: (b, h, ki, 0)),
    ]
    args = [q, k, v]
    if has_mask:
        mask = mask.astype(jnp.bfloat16)
        if mask.ndim == 2:
            in_specs.append(pl.BlockSpec((tq, tk),
                                         lambda b, h, qi, ki: (qi, ki)))
        else:
            in_specs.append(pl.BlockSpec((None, tq, tk),
                                         lambda b, h, qi, ki: (b, qi, ki)))
        args.append(mask)

    kern = functools.partial(_flash_attn_kernel, has_mask=has_mask)
    return pl.pallas_call(
        kern,
        out_shape=jax.ShapeDtypeStruct((B, H, Sq, dh), jnp.bfloat16),
        grid=(B, H, Sq // tq, Sk // tk),
        in_specs=in_specs,
        out_specs=pl.BlockSpec((None, None, tq, dh),
                               lambda b, h, qi, ki: (b, h, qi, 0)),
        scratch_shapes=[pltpu.VMEM((tq, 1), jnp.float32),
                        pltpu.VMEM((tq, 1), jnp.float32),
                        pltpu.VMEM((tq, dh), jnp.float32)],
        compiler_params=_cp(("parallel", "parallel", "parallel", "arbitrary")),
    )(*args)


# ----------------------------------------------------------------------------
# Fused: head merge + out-projection (accumulated over heads) + residual + LN
# ----------------------------------------------------------------------------

def _outproj_res_ln_kernel(ctx_ref, wo_ref, bo_ref, res_ref, g_ref, bt_ref,
                           o_ref, acc_ref, *, eps):
    h = pl.program_id(2)

    @pl.when(h == 0)
    def _():
        acc_ref[...] = jnp.zeros_like(acc_ref)

    acc_ref[...] += jnp.dot(ctx_ref[...], wo_ref[...],
                            preferred_element_type=jnp.float32)

    @pl.when(h == pl.num_programs(2) - 1)
    def _():
        x = res_ref[...].astype(jnp.float32) + acc_ref[...] + bo_ref[...]
        mu = jnp.mean(x, axis=-1, keepdims=True)
        xc = x - mu
        var = jnp.mean(xc * xc, axis=-1, keepdims=True)
        o_ref[...] = (xc * lax.rsqrt(var + eps) * g_ref[...]
                      + bt_ref[...]).astype(o_ref.dtype)


def out_proj_residual_layernorm(ctx, wo, bo, residual, gamma, beta,
                                eps=1e-5, tq=256):
    """ctx: (B,H,Sq,dh) bf16, wo: (H,dh,D) bf16, residual: (B,Sq,D) bf16
    -> (B,Sq,D) bf16 (layernorm math in f32)."""
    B, H, Sq, dh = ctx.shape
    D = wo.shape[2]
    tq = _pick_tile(Sq, tq, 16)
    kern = functools.partial(_outproj_res_ln_kernel, eps=eps)
    return pl.pallas_call(
        kern,
        out_shape=jax.ShapeDtypeStruct((B, Sq, D), jnp.bfloat16),
        grid=(B, Sq // tq, H),
        in_specs=[
            pl.BlockSpec((None, None, tq, dh), lambda b, qi, h: (b, h, qi, 0)),
            pl.BlockSpec((None, dh, D), lambda b, qi, h: (h, 0, 0)),
            pl.BlockSpec((1, D), lambda b, qi, h: (0, 0)),
            pl.BlockSpec((None, tq, D), lambda b, qi, h: (b, qi, 0)),
            pl.BlockSpec((1, D), lambda b, qi, h: (0, 0)),
            pl.BlockSpec((1, D), lambda b, qi, h: (0, 0)),
        ],
        out_specs=pl.BlockSpec((None, tq, D), lambda b, qi, h: (b, qi, 0)),
        scratch_shapes=[pltpu.VMEM((tq, D), jnp.float32)],
        compiler_params=_cp(("parallel", "parallel", "arbitrary")),
    )(ctx, wo, bo, residual, gamma, beta)


# ----------------------------------------------------------------------------
# Fused: FFN (x@w1 -> ReLU -> @w2, F-tiled accumulation) + residual + LN
# ----------------------------------------------------------------------------

def _ffn_res_ln_kernel(x_ref, w1_ref, b1_ref, w2_ref, b2_ref, g_ref, bt_ref,
                       o_ref, acc_ref, *, eps):
    f = pl.program_id(1)

    @pl.when(f == 0)
    def _():
        acc_ref[...] = jnp.zeros_like(acc_ref)

    h = jnp.dot(x_ref[...], w1_ref[...],
                preferred_element_type=jnp.float32) + b1_ref[...]
    h = jnp.maximum(h, 0.0)
    acc_ref[...] += jnp.dot(h.astype(jnp.bfloat16), w2_ref[...],
                            preferred_element_type=jnp.float32)

    @pl.when(f == pl.num_programs(1) - 1)
    def _():
        x = x_ref[...].astype(jnp.float32) + acc_ref[...] + b2_ref[...]
        mu = jnp.mean(x, axis=-1, keepdims=True)
        xc = x - mu
        var = jnp.mean(xc * xc, axis=-1, keepdims=True)
        o_ref[...] = (xc * lax.rsqrt(var + eps) * g_ref[...]
                      + bt_ref[...]).astype(o_ref.dtype)


def ffn_residual_layernorm(x, w1, b1, w2, b2, gamma, beta,
                           eps=1e-5, tm=256, tf=512):
    """x: (M,D) bf16 -> (M,D) bf16. Hidden activation never leaves VMEM."""
    M, D = x.shape
    F = w1.shape[1]
    tm = _pick_tile(M, tm, 16)
    tf = _pick_tile(F, tf, 128)
    kern = functools.partial(_ffn_res_ln_kernel, eps=eps)
    return pl.pallas_call(
        kern,
        out_shape=jax.ShapeDtypeStruct((M, D), jnp.bfloat16),
        grid=(M // tm, F // tf),
        in_specs=[
            pl.BlockSpec((tm, D), lambda i, f: (i, 0)),
            pl.BlockSpec((D, tf), lambda i, f: (0, f)),
            pl.BlockSpec((1, tf), lambda i, f: (0, f)),
            pl.BlockSpec((tf, D), lambda i, f: (f, 0)),
            pl.BlockSpec((1, D), lambda i, f: (0, 0)),
            pl.BlockSpec((1, D), lambda i, f: (0, 0)),
            pl.BlockSpec((1, D), lambda i, f: (0, 0)),
        ],
        out_specs=pl.BlockSpec((tm, D), lambda i, f: (i, 0)),
        scratch_shapes=[pltpu.VMEM((tm, D), jnp.float32)],
        compiler_params=_cp(("parallel", "arbitrary")),
    )(x, w1, b1, w2, b2, gamma, beta)


# ----------------------------------------------------------------------------
# Tied output projection: logits = x @ emb^T + b  (no emb.T materialization)
# ----------------------------------------------------------------------------

def _logits_kernel(x_ref, e_ref, b_ref, o_ref):
    o_ref[...] = (lax.dot_general(x_ref[...], e_ref[...],
                                  (((1,), (1,)), ((), ())),
                                  preferred_element_type=jnp.float32)
                  + b_ref[...]).astype(o_ref.dtype)


def tied_logits(x, emb_p, bias_p, *, vocab_size, tm=256, tv=1024):
    """x: (M,D) bf16, emb_p: (Vp,D) bf16 (vocab pre-padded to 128), bias_p:
    (1,Vp) f32 -> (M,V) f32. Slices only if the vocab is not 128-aligned."""
    M, D = x.shape
    Vp = emb_p.shape[0]
    tm = _pick_tile(M, tm, 16)
    tv = _pick_tile(Vp, tv, 128)
    # TODO(synk): add an 'arbitrary' D accumulation axis for very large d_model.
    out = pl.pallas_call(
        _logits_kernel,
        out_shape=jax.ShapeDtypeStruct((M, Vp), jnp.float32),
        grid=(M // tm, Vp // tv),
        in_specs=[
            pl.BlockSpec((tm, D), lambda i, j: (i, 0)),
            pl.BlockSpec((tv, D), lambda i, j: (j, 0)),
            pl.BlockSpec((1, tv), lambda i, j: (0, j)),
        ],
        out_specs=pl.BlockSpec((tm, tv), lambda i, j: (i, j)),
        compiler_params=_cp(("parallel", "parallel")),
    )(x, emb_p, bias_p)
    if Vp != vocab_size:
        out = out[:, :vocab_size]
    return out


# ----------------------------------------------------------------------------
# Transformer forward (thin JAX glue around the Pallas kernels)
# ----------------------------------------------------------------------------

def sinusoidal_positional_encoding(max_len, d_model):
    pos = jnp.arange(max_len, dtype=jnp.float32)[:, None]
    i = jnp.arange(0, d_model, 2, dtype=jnp.float32)[None, :]
    angle = pos / jnp.power(10000.0, i / d_model)
    pe = jnp.zeros((max_len, d_model), dtype=jnp.float32)
    pe = pe.at[:, 0::2].set(jnp.sin(angle))
    pe = pe.at[:, 1::2].set(jnp.cos(angle))
    return pe


def _attention_sublayer(x_q, x_kv, ap, ln_g, ln_b, mask):
    """ln(x_q + MHA(x_q, x_kv) @ Wo + bo); x_q: (B,Sq,D), x_kv: (B,Sk,D) bf16."""
    q = q_head_projection(x_q, ap["wq"], ap["bq"])
    k, v = kv_head_projection(x_kv, ap["wk"], ap["bk"], ap["wv"], ap["bv"])
    ctx = flash_attention(q, k, v, mask)
    return out_proj_residual_layernorm(ctx, ap["wo"], ap["bo"], x_q, ln_g, ln_b)


def encoder_layer(x, p, mask=None):
    B, S, D = x.shape
    x = _attention_sublayer(x, x, p["self_attn"], p["ln1_g"], p["ln1_b"], mask)
    f = p["ffn"]
    y = ffn_residual_layernorm(x.reshape(B * S, D), f["w1"], f["b1"],
                               f["w2"], f["b2"], p["ln2_g"], p["ln2_b"])
    return y.reshape(B, S, D)


def decoder_layer(x, memory, p, src_mask=None, tgt_mask=None):
    B, St, D = x.shape
    x = _attention_sublayer(x, x, p["self_attn"], p["ln1_g"], p["ln1_b"],
                            tgt_mask)
    x = _attention_sublayer(x, memory, p["cross_attn"], p["ln2_g"], p["ln2_b"],
                            src_mask)
    f = p["ffn"]
    y = ffn_residual_layernorm(x.reshape(B * St, D), f["w1"], f["b1"],
                               f["w2"], f["b2"], p["ln3_g"], p["ln3_b"])
    return y.reshape(B, St, D)


def transformer_forward(params, src, tgt, src_mask=None, tgt_mask=None,
                        *, d_model, vocab_size):
    """src/tgt: (B, S) int32 token ids -> (B, tgt_len, vocab) f32 logits.
    Masks are additive ((Sq,Sk) or (B,Sq,Sk)) or None."""
    B, Ss = src.shape
    _, St = tgt.shape
    emb = params["embedding"]              # (vocab, d_model) f32 for lookups
    pe = params["pos_encoding"]            # (max_len, d_model) f32
    scale = math.sqrt(float(d_model))

    src_x = (jnp.take(emb, src, axis=0) * scale
             + pe[None, :Ss, :]).astype(jnp.bfloat16)
    tgt_x = (jnp.take(emb, tgt, axis=0) * scale
             + pe[None, :St, :]).astype(jnp.bfloat16)
    # TODO(synk): dropout is identity (inference / p=0.0); training dropout
    # would use pltpu.prng_seed/prng_random_bits inside the fused kernels.

    if src_mask is not None:
        src_mask = src_mask.astype(jnp.bfloat16)
    if tgt_mask is not None:
        tgt_mask = tgt_mask.astype(jnp.bfloat16)

    for lp in params["encoder_layers"]:
        src_x = encoder_layer(src_x, lp, src_mask)
    for lp in params["decoder_layers"]:
        tgt_x = decoder_layer(tgt_x, src_x, lp, src_mask, tgt_mask)

    logits = tied_logits(tgt_x.reshape(B * St, d_model),
                         params["emb_logits"], params["final_bias_padded"],
                         vocab_size=vocab_size)
    return logits.reshape(B, St, vocab_size)


# ----------------------------------------------------------------------------
# Parameter init (torch-style f32 layout) + one-time device-layout preparation
# ----------------------------------------------------------------------------

def init_params(key, vocab_size, d_model, n_heads, num_encoder_layers,
                num_decoder_layers, dim_feedforward, max_len):
    def nrm(k, shape, scale=0.02):
        return (scale * jax.random.normal(k, shape)).astype(jnp.float32)

    keys = iter(jax.random.split(key, 1024))

    def attn_params():
        return {"wq": nrm(next(keys), (d_model, d_model)),
                "bq": jnp.zeros((d_model,), jnp.float32),
                "wk": nrm(next(keys), (d_model, d_model)),
                "bk": jnp.zeros((d_model,), jnp.float32),
                "wv": nrm(next(keys), (d_model, d_model)),
                "bv": jnp.zeros((d_model,), jnp.float32),
                "wo": nrm(next(keys), (d_model, d_model)),
                "bo": jnp.zeros((d_model,), jnp.float32)}

    def ffn_params():
        return {"w1": nrm(next(keys), (d_model, dim_feedforward)),
                "b1": jnp.zeros((dim_feedforward,), jnp.float32),
                "w2": nrm(next(keys), (dim_feedforward, d_model)),
                "b2": jnp.zeros((d_model,), jnp.float32)}

    enc_layers = []
    for _ in range(num_encoder_layers):
        enc_layers.append({"self_attn": attn_params(), "ffn": ffn_params(),
                           "ln1_g": jnp.ones((d_model,), jnp.float32),
                           "ln1_b": jnp.zeros((d_model,), jnp.float32),
                           "ln2_g": jnp.ones((d_model,), jnp.float32),
                           "ln2_b": jnp.zeros((d_model,), jnp.float32)})

    dec_layers = []
    for _ in range(num_decoder_layers):
        dec_layers.append({"self_attn": attn_params(),
                           "cross_attn": attn_params(), "ffn": ffn_params(),
                           "ln1_g": jnp.ones((d_model,), jnp.float32),
                           "ln1_b": jnp.zeros((d_model,), jnp.float32),
                           "ln2_g": jnp.ones((d_model,), jnp.float32),
                           "ln2_b": jnp.zeros((d_model,), jnp.float32),
                           "ln3_g": jnp.ones((d_model,), jnp.float32),
                           "ln3_b": jnp.zeros((d_model,), jnp.float32)})

    return {"embedding": nrm(next(keys), (vocab_size, d_model), scale=1.0),
            "pos_encoding": sinusoidal_positional_encoding(max_len, d_model),
            "encoder_layers": enc_layers,
            "decoder_layers": dec_layers,
            "final_bias": jnp.zeros((vocab_size,), jnp.float32)}


def prepare_params(raw, n_heads):
    """One-time (outside the per-step jit): bf16 weight casts, per-head weight
    slabs (H,D,dh)/(H,dh,D), fold 1/sqrt(dh) into the Q projection, pad the
    tied embedding / bias to a 128-aligned vocab."""
    vocab, d_model = raw["embedding"].shape
    dh = d_model // n_heads
    qscale = 1.0 / math.sqrt(dh)

    def col_heads(w):  # (D, D) -> (H, D, dh), per-head column slabs
        return w.reshape(d_model, n_heads, dh).transpose(1, 0, 2)

    def prep_attn(ap):
        return {
            "wq": col_heads(ap["wq"] * qscale).astype(jnp.bfloat16),
            "bq": (ap["bq"] * qscale).reshape(n_heads, 1, dh).astype(jnp.float32),
            "wk": col_heads(ap["wk"]).astype(jnp.bfloat16),
            "bk": ap["bk"].reshape(n_heads, 1, dh).astype(jnp.float32),
            "wv": col_heads(ap["wv"]).astype(jnp.bfloat16),
            "bv": ap["bv"].reshape(n_heads, 1, dh).astype(jnp.float32),
            "wo": ap["wo"].reshape(n_heads, dh, d_model).astype(jnp.bfloat16),
            "bo": ap["bo"].reshape(1, d_model).astype(jnp.float32),
        }

    def prep_ffn(fp):
        F = fp["w1"].shape[1]
        return {"w1": fp["w1"].astype(jnp.bfloat16),
                "b1": fp["b1"].reshape(1, F).astype(jnp.float32),
                "w2": fp["w2"].astype(jnp.bfloat16),
                "b2": fp["b2"].reshape(1, d_model).astype(jnp.float32)}

    def ln(v):
        return v.reshape(1, d_model).astype(jnp.float32)

    enc = []
    for lp in raw["encoder_layers"]:
        enc.append({"self_attn": prep_attn(lp["self_attn"]),
                    "ffn": prep_ffn(lp["ffn"]),
                    "ln1_g": ln(lp["ln1_g"]), "ln1_b": ln(lp["ln1_b"]),
                    "ln2_g": ln(lp["ln2_g"]), "ln2_b": ln(lp["ln2_b"])})
    dec = []
    for lp in raw["decoder_layers"]:
        dec.append({"self_attn": prep_attn(lp["self_attn"]),
                    "cross_attn": prep_attn(lp["cross_attn"]),
                    "ffn": prep_ffn(lp["ffn"]),
                    "ln1_g": ln(lp["ln1_g"]), "ln1_b": ln(lp["ln1_b"]),
                    "ln2_g": ln(lp["ln2_g"]), "ln2_b": ln(lp["ln2_b"]),
                    "ln3_g": ln(lp["ln3_g"]), "ln3_b": ln(lp["ln3_b"])})

    Vp = ((vocab + 127) // 128) * 128
    emb_logits = raw["embedding"].astype(jnp.bfloat16)
    final_bias = raw["final_bias"]
    if Vp != vocab:
        emb_logits = jnp.pad(emb_logits, ((0, Vp - vocab), (0, 0)))
        final_bias = jnp.pad(final_bias, (0, Vp - vocab))

    return {"embedding": raw["embedding"],
            "pos_encoding": raw["pos_encoding"].astype(jnp.float32),
            "encoder_layers": enc,
            "decoder_layers": dec,
            "emb_logits": emb_logits,
            "final_bias_padded": final_bias.reshape(1, Vp).astype(jnp.float32)}


# ----------------------------------------------------------------------------
# Main
# ----------------------------------------------------------------------------

if __name__ == "__main__":
    vocab_size = 50
    d_model = 32
    n_heads = 4
    num_encoder_layers = 2
    num_decoder_layers = 2
    dim_feedforward = 64
    max_len = 16
    batch = 2
    src_len = 8
    tgt_len = 8

    key = jax.random.PRNGKey(0)
    kp, ks, kt = jax.random.split(key, 3)
    raw_params = init_params(kp, vocab_size, d_model, n_heads,
                             num_encoder_layers, num_decoder_layers,
                             dim_feedforward, max_len)
    params = prepare_params(raw_params, n_heads)   # one-time weight layout/cast

    src = jax.random.randint(ks, (batch, src_len), 0, vocab_size,
                             dtype=jnp.int32)
    tgt = jax.random.randint(kt, (batch, tgt_len), 0, vocab_size,
                             dtype=jnp.int32)

    # additive causal mask for decoder self-attention (never fully masks a row)
    causal = jnp.tril(jnp.ones((tgt_len, tgt_len), dtype=bool))
    tgt_mask = jnp.where(causal, 0.0, -1e9).astype(jnp.float32)

    fwd = jax.jit(functools.partial(transformer_forward,
                                    d_model=d_model, vocab_size=vocab_size))
    out = fwd(params, src, tgt, None, tgt_mask)
    out = jax.block_until_ready(out)
    assert out.shape == (batch, tgt_len, vocab_size), out.shape
    assert bool(jnp.all(jnp.isfinite(out)))
    print("KERNEL_OK")
</pallas_src>

<mosaic_0001>
module attributes {stable_mosaic.version = 11 : i64} {
  func.func @_outproj_res_ln_kernel(%arg0: i32, %arg1: i32, %arg2: i32, %arg3: memref<1x1x8x8xbf16, #tpu.memory_space<vmem>>, %arg4: memref<1x8x32xbf16, #tpu.memory_space<vmem>>, %arg5: memref<1x32xf32, #tpu.memory_space<vmem>>, %arg6: memref<1x8x32xbf16, #tpu.memory_space<vmem>>, %arg7: memref<1x32xf32, #tpu.memory_space<vmem>>, %arg8: memref<1x32xf32, #tpu.memory_space<vmem>>, %arg9: memref<1x8x32xbf16, #tpu.memory_space<vmem>>, %arg10: memref<8x32xf32, #tpu.memory_space<vmem>>) attributes {dimension_semantics = [#tpu.dimension_semantics<parallel>, #tpu.dimension_semantics<parallel>, #tpu.dimension_semantics<arbitrary>], iteration_bounds = array<i64: 2, 1, 4>, scalar_prefetch = 0 : i64, scratch_operands = 1 : i64, tpu.core_type = #tpu.core_type<tc>, window_params = [{transform_indices = @transform_0, window_bounds = array<i64: 1, 1, 8, 8>}, {transform_indices = @transform_1, window_bounds = array<i64: 1, 8, 32>}, {pipeline_mode = #tpu.pipeline_mode<synchronous>, transform_indices = @transform_2, window_bounds = array<i64: 1, 32>}, {transform_indices = @transform_3, window_bounds = array<i64: 1, 8, 32>}, {pipeline_mode = #tpu.pipeline_mode<synchronous>, transform_indices = @transform_4, window_bounds = array<i64: 1, 32>}, {pipeline_mode = #tpu.pipeline_mode<synchronous>, transform_indices = @transform_5, window_bounds = array<i64: 1, 32>}, {transform_indices = @transform_6, window_bounds = array<i64: 1, 8, 32>}]} {
    %c0_i32 = arith.constant 0 : i32
    %0 = arith.cmpi eq, %arg2, %c0_i32 : i32
    %1 = arith.extui %0 : i1 to i32
    %c0_i32_0 = arith.constant 0 : i32
    %2 = arith.cmpi ne, %1, %c0_i32_0 : i32
    scf.if %2 {
      %cst_12 = arith.constant 0.000000e+00 : f32
      %14 = vector.broadcast %cst_12 : f32 to vector<8x32xf32>
      %c0_13 = arith.constant 0 : index
      %c0_14 = arith.constant 0 : index
      %15 = vector.load %arg10[%c0_13, %c0_14] : memref<8x32xf32, #tpu.memory_space<vmem>>, vector<8x32xf32>
      tpu.vector_store %arg10[%c0_13, %c0_14], %14 {strides = array<i32>} : memref<8x32xf32, #tpu.memory_space<vmem>>, vector<8x32xf32>,
    } else {
    }
    %c0 = arith.constant 0 : index
    %c0_1 = arith.constant 0 : index
    %3 = vector.load %arg10[%c0, %c0_1] : memref<8x32xf32, #tpu.memory_space<vmem>>, vector<8x32xf32>
    %c0_2 = arith.constant 0 : index
    %c0_3 = arith.constant 0 : index
    %c0_4 = arith.constant 0 : index
    %c0_5 = arith.constant 0 : index
    %4 = vector.load %arg3[%c0_2, %c0_3, %c0_4, %c0_5] : memref<1x1x8x8xbf16, #tpu.memory_space<vmem>>, vector<1x1x8x8xbf16>
    %5 = vector.shape_cast %4 : vector<1x1x8x8xbf16> to vector<8x8xbf16>
    %c0_6 = arith.constant 0 : index
    %c0_7 = arith.constant 0 : index
    %c0_8 = arith.constant 0 : index
    %6 = vector.load %arg4[%c0_6, %c0_7, %c0_8] : memref<1x8x32xbf16, #tpu.memory_space<vmem>>, vector<1x8x32xbf16>
    %7 = vector.shape_cast %6 : vector<1x8x32xbf16> to vector<8x32xbf16>
    %cst = arith.constant dense<0.000000e+00> : vector<8x32xf32>
    %8 = tpu.matmul %5, %7, %cst {dimension_numbers = #tpu.dot_dimension_numbers<[1], [0], [0], [1], [0, 0, 1, 1], [], []>} : vector<8x8xbf16>, vector<8x32xbf16>, vector<8x32xf32> -> vector<8x32xf32>
    %9 = arith.addf %3, %8 : vector<8x32xf32>
    %c0_9 = arith.constant 0 : index
    %c0_10 = arith.constant 0 : index
    %10 = vector.load %arg10[%c0_9, %c0_10] : memref<8x32xf32, #tpu.memory_space<vmem>>, vector<8x32xf32>
    tpu.vector_store %arg10[%c0_9, %c0_10], %9 {strides = array<i32>} : memref<8x32xf32, #tpu.memory_space<vmem>>, vector<8x32xf32>,
    %c3_i32 = arith.constant 3 : i32
    %11 = arith.cmpi eq, %arg2, %c3_i32 : i32
    %12 = arith.extui %11 : i1 to i32
    %c0_i32_11 = arith.constant 0 : i32
    %13 = arith.cmpi ne, %12, %c0_i32_11 : i32
    scf.if %13 {
      %c0_12 = arith.constant 0 : index
      %c0_13 = arith.constant 0 : index
      %c0_14 = arith.constant 0 : index
      %14 = vector.load %arg6[%c0_12, %c0_13, %c0_14] : memref<1x8x32xbf16, #tpu.memory_space<vmem>>, vector<1x8x32xbf16>
      %15 = vector.shape_cast %14 : vector<1x8x32xbf16> to vector<8x32xbf16>
      %16 = arith.extf %15 : vector<8x32xbf16> to vector<8x32xf32>
      %c0_15 = arith.constant 0 : index
      %c0_16 = arith.constant 0 : index
      %17 = vector.load %arg10[%c0_15, %c0_16] : memref<8x32xf32, #tpu.memory_space<vmem>>, vector<8x32xf32>
      %18 = arith.addf %16, %17 : vector<8x32xf32>
      %c0_17 = arith.constant 0 : index
      %c0_18 = arith.constant 0 : index
      %19 = vector.load %arg5[%c0_17, %c0_18] : memref<1x32xf32, #tpu.memory_space<vmem>>, vector<1x32xf32>
      %20 = vector.broadcast %19 : vector<1x32xf32> to vector<8x32xf32>
      %21 = arith.addf %18, %20 : vector<8x32xf32>
      %cst_19 = arith.constant dense<0.000000e+00> : vector<8xf32>
      %22 = vector.multi_reduction <add>, %21, %cst_19 [1] : vector<8x32xf32> to vector<8xf32>
      %23 = vector.shape_cast %22 : vector<8xf32> to vector<8x1xf32>
      %cst_20 = arith.constant 3.200000e+01 : f32
      %24 = vector.broadcast %cst_20 : f32 to vector<8x1xf32>
      %25 = arith.divf %23, %24 : vector<8x1xf32>
      %26 = vector.broadcast %25 : vector<8x1xf32> to vector<8x32xf32>
      %27 = arith.subf %21, %26 : vector<8x32xf32>
      %28 = arith.mulf %27, %27 : vector<8x32xf32>
      %cst_21 = arith.constant dense<0.000000e+00> : vector<8xf32>
      %29 = vector.multi_reduction <add>, %28, %cst_21 [1] : vector<8x32xf32> to vector<8xf32>
      %30 = vector.shape_cast %29 : vector<8xf32> to vector<8x1xf32>
      %cst_22 = arith.constant 3.200000e+01 : f32
      %31 = vector.broadcast %cst_22 : f32 to vector<8x1xf32>
      %32 = arith.divf %30, %31 : vector<8x1xf32>
      %cst_23 = arith.constant 9.99999974E-6 : f32
      %33 = vector.broadcast %cst_23 : f32 to vector<8x1xf32>
      %34 = arith.addf %32, %33 : vector<8x1xf32>
      %35 = math.rsqrt %34 : vector<8x1xf32>
      %36 = vector.broadcast %35 : vector<8x1xf32> to vector<8x32xf32>
      %37 = arith.mulf %27, %36 : vector<8x32xf32>
      %c0_24 = arith.constant 0 : index
      %c0_25 = arith.constant 0 : index
      %38 = vector.load %arg7[%c0_24, %c0_25] : memref<1x32xf32, #tpu.memory_space<vmem>>, vector<1x32xf32>
      %39 = vector.broadcast %38 : vector<1x32xf32> to vector<8x32xf32>
      %40 = arith.mulf %37, %39 : vector<8x32xf32>
      %c0_26 = arith.constant 0 : index
      %c0_27 = arith.constant 0 : index
      %41 = vector.load %arg8[%c0_26, %c0_27] : memref<1x32xf32, #tpu.memory_space<vmem>>, vector<1x32xf32>
      %42 = vector.broadcast %41 : vector<1x32xf32> to vector<8x32xf32>
      %43 = arith.addf %40, %42 : vector<8x32xf32>
      %44 = arith.truncf %43 : vector<8x32xf32> to vector<8x32xbf16>
      %c0_28 = arith.constant 0 : index
      %c0_29 = arith.constant 0 : index
      %c0_30 = arith.constant 0 : index
      %45 = vector.load %arg9[%c0_28, %c0_29, %c0_30] : memref<1x8x32xbf16, #tpu.memory_space<vmem>>, vector<1x8x32xbf16>
      %46 = vector.shape_cast %45 : vector<1x8x32xbf16> to vector<8x32xbf16>
      %47 = vector.shape_cast %44 : vector<8x32xbf16> to vector<1x8x32xbf16>
      tpu.vector_store %arg9[%c0_28, %c0_29, %c0_30], %47 {strides = array<i32>} : memref<1x8x32xbf16, #tpu.memory_space<vmem>>, vector<1x8x32xbf16>,
    } else {
    }
    return
  }
  func.func @transform_0(%arg0: i32, %arg1: i32, %arg2: i32) -> (i32, i32, i32, i32) {
    %c0_i32 = arith.constant 0 : i32
    %c0_i32_0 = arith.constant 0 : i32
    return %arg0, %arg2, %arg1, %c0_i32 : i32, i32, i32, i32
  }
  func.func @transform_1(%arg0: i32, %arg1: i32, %arg2: i32) -> (i32, i32, i32) {
    %c0_i32 = arith.constant 0 : i32
    %c0_i32_0 = arith.constant 0 : i32
    %c0_i32_1 = arith.constant 0 : i32
    return %arg2, %c0_i32, %c0_i32_0 : i32, i32, i32
  }
  func.func @transform_2(%arg0: i32, %arg1: i32, %arg2: i32) -> (i32, i32) {
    %c0_i32 = arith.constant 0 : i32
    %c0_i32_0 = arith.constant 0 : i32
    %c0_i32_1 = arith.constant 0 : i32
    return %c0_i32, %c0_i32_0 : i32, i32
  }
  func.func @transform_3(%arg0: i32, %arg1: i32, %arg2: i32) -> (i32, i32, i32) {
    %c0_i32 = arith.constant 0 : i32
    %c0_i32_0 = arith.constant 0 : i32
    return %arg0, %arg1, %c0_i32 : i32, i32, i32
  }
  func.func @transform_4(%arg0: i32, %arg1: i32, %arg2: i32) -> (i32, i32) {
    %c0_i32 = arith.constant 0 : i32
    %c0_i32_0 = arith.constant 0 : i32
    %c0_i32_1 = arith.constant 0 : i32
    return %c0_i32, %c0_i32_0 : i32, i32
  }
  func.func @transform_5(%arg0: i32, %arg1: i32, %arg2: i32) -> (i32, i32) {
    %c0_i32 = arith.constant 0 : i32
    %c0_i32_0 = arith.constant 0 : i32
    %c0_i32_1 = arith.constant 0 : i32
    return %c0_i32, %c0_i32_0 : i32, i32
  }
  func.func @transform_6(%arg0: i32, %arg1: i32, %arg2: i32) -> (i32, i32, i32) {
    %c0_i32 = arith.constant 0 : i32
    %c0_i32_0 = arith.constant 0 : i32
    return %arg0, %arg1, %c0_i32 : i32, i32, i32
  }
}

module attributes {stable_mosaic.version = 11 : i64} {
  func.func @_kv_head_proj_kernel(%arg0: i32, %arg1: i32, %arg2: i32, %arg3: memref<1x8x32xbf16, #tpu.memory_space<vmem>>, %arg4: memref<1x32x8xbf16, #tpu.memory_space<vmem>>, %arg5: memref<1x1x8xf32, #tpu.memory_space<vmem>>, %arg6: memref<1x32x8xbf16, #tpu.memory_space<vmem>>, %arg7: memref<1x1x8xf32, #tpu.memory_space<vmem>>, %arg8: memref<1x1x8x8xbf16, #tpu.memory_space<vmem>>, %arg9: memref<1x1x8x8xbf16, #tpu.memory_space<vmem>>) attributes {dimension_semantics = [#tpu.dimension_semantics<parallel>, #tpu.dimension_semantics<parallel>, #tpu.dimension_semantics<parallel>], iteration_bounds = array<i64: 2, 1, 4>, scalar_prefetch = 0 : i64, scratch_operands = 0 : i64, tpu.core_type = #tpu.core_type<tc>, window_params = [{transform_indices = @transform_0, window_bounds = array<i64: 1, 8, 32>}, {transform_indices = @transform_1, window_bounds = array<i64: 1, 32, 8>}, {transform_indices = @transform_2, window_bounds = array<i64: 1, 1, 8>}, {transform_indices = @transform_3, window_bounds = array<i64: 1, 32, 8>}, {transform_indices = @transform_4, window_bounds = array<i64: 1, 1, 8>}, {transform_indices = @transform_5, window_bounds = array<i64: 1, 1, 8, 8>}, {transform_indices = @transform_6, window_bounds = array<i64: 1, 1, 8, 8>}]} {
    %c0 = arith.constant 0 : index
    %c0_0 = arith.constant 0 : index
    %c0_1 = arith.constant 0 : index
    %0 = vector.load %arg3[%c0, %c0_0, %c0_1] : memref<1x8x32xbf16, #tpu.memory_space<vmem>>, vector<1x8x32xbf16>
    %1 = vector.shape_cast %0 : vector<1x8x32xbf16> to vector<8x32xbf16>
    %c0_2 = arith.constant 0 : index
    %c0_3 = arith.constant 0 : index
    %c0_4 = arith.constant 0 : index
    %2 = vector.load %arg4[%c0_2, %c0_3, %c0_4] : memref<1x32x8xbf16, #tpu.memory_space<vmem>>, vector<1x32x8xbf16>
    %3 = vector.shape_cast %2 : vector<1x32x8xbf16> to vector<32x8xbf16>
    %cst = arith.constant dense<0.000000e+00> : vector<8x8xf32>
    %4 = tpu.matmul %1, %3, %cst {dimension_numbers = #tpu.dot_dimension_numbers<[1], [0], [0], [1], [0, 0, 1, 1], [], []>} : vector<8x32xbf16>, vector<32x8xbf16>, vector<8x8xf32> -> vector<8x8xf32>
    %c0_5 = arith.constant 0 : index
    %c0_6 = arith.constant 0 : index
    %c0_7 = arith.constant 0 : index
    %5 = vector.load %arg5[%c0_5, %c0_6, %c0_7] : memref<1x1x8xf32, #tpu.memory_space<vmem>>, vector<1x1x8xf32>
    %6 = vector.shape_cast %5 : vector<1x1x8xf32> to vector<1x8xf32>
    %7 = vector.broadcast %6 : vector<1x8xf32> to vector<8x8xf32>
    %8 = arith.addf %4, %7 : vector<8x8xf32>
    %9 = arith.truncf %8 : vector<8x8xf32> to vector<8x8xbf16>
    %c0_8 = arith.constant 0 : index
    %c0_9 = arith.constant 0 : index
    %c0_10 = arith.constant 0 : index
    %c0_11 = arith.constant 0 : index
    %10 = vector.load %arg8[%c0_8, %c0_9, %c0_10, %c0_11] : memref<1x1x8x8xbf16, #tpu.memory_space<vmem>>, vector<1x1x8x8xbf16>
    %11 = vector.shape_cast %10 : vector<1x1x8x8xbf16> to vector<8x8xbf16>
    %12 = vector.shape_cast %9 : vector<8x8xbf16> to vector<1x1x8x8xbf16>
    tpu.vector_store %arg8[%c0_8, %c0_9, %c0_10, %c0_11], %12 {strides = array<i32>} : memref<1x1x8x8xbf16, #tpu.memory_space<vmem>>, vector<1x1x8x8xbf16>,
    %c0_12 = arith.constant 0 : index
    %c0_13 = arith.constant 0 : index
    %c0_14 = arith.constant 0 : index
    %13 = vector.load %arg6[%c0_12, %c0_13, %c0_14] : memref<1x32x8xbf16, #tpu.memory_space<vmem>>, vector<1x32x8xbf16>
    %14 = vector.shape_cast %13 : vector<1x32x8xbf16> to vector<32x8xbf16>
    %cst_15 = arith.constant dense<0.000000e+00> : vector<8x8xf32>
    %15 = tpu.matmul %1, %14, %cst_15 {dimension_numbers = #tpu.dot_dimension_numbers<[1], [0], [0], [1], [0, 0, 1, 1], [], []>} : vector<8x32xbf16>, vector<32x8xbf16>, vector<8x8xf32> -> vector<8x8xf32>
    %c0_16 = arith.constant 0 : index
    %c0_17 = arith.constant 0 : index
    %c0_18 = arith.constant 0 : index
    %16 = vector.load %arg7[%c0_16, %c0_17, %c0_18] : memref<1x1x8xf32, #tpu.memory_space<vmem>>, vector<1x1x8xf32>
    %17 = vector.shape_cast %16 : vector<1x1x8xf32> to vector<1x8xf32>
    %18 = vector.broadcast %17 : vector<1x8xf32> to vector<8x8xf32>
    %19 = arith.addf %15, %18 : vector<8x8xf32>
    %20 = arith.truncf %19 : vector<8x8xf32> to vector<8x8xbf16>
    %c0_19 = arith.constant 0 : index
    %c0_20 = arith.constant 0 : index
    %c0_21 = arith.constant 0 : index
    %c0_22 = arith.constant 0 : index
    %21 = vector.load %arg9[%c0_19, %c0_20, %c0_21, %c0_22] : memref<1x1x8x8xbf16, #tpu.memory_space<vmem>>, vector<1x1x8x8xbf16>
    %22 = vector.shape_cast %21 : vector<1x1x8x8xbf16> to vector<8x8xbf16>
    %23 = vector.shape_cast %20 : vector<8x8xbf16> to vector<1x1x8x8xbf16>
    tpu.vector_store %arg9[%c0_19, %c0_20, %c0_21, %c0_22], %23 {strides = array<i32>} : memref<1x1x8x8xbf16, #tpu.memory_space<vmem>>, vector<1x1x8x8xbf16>,
    return
  }
  func.func @transform_0(%arg0: i32, %arg1: i32, %arg2: i32) -> (i32, i32, i32) {
    %c0_i32 = arith.constant 0 : i32
    %c0_i32_0 = arith.constant 0 : i32
    return %arg0, %arg1, %c0_i32 : i32, i32, i32
  }
  func.func @transform_1(%arg0: i32, %arg1: i32, %arg2: i32) -> (i32, i32, i32) {
    %c0_i32 = arith.constant 0 : i32
    %c0_i32_0 = arith.constant 0 : i32
    %c0_i32_1 = arith.constant 0 : i32
    return %arg2, %c0_i32, %c0_i32_0 : i32, i32, i32
  }
  func.func @transform_2(%arg0: i32, %arg1: i32, %arg2: i32) -> (i32, i32, i32) {
    %c0_i32 = arith.constant 0 : i32
    %c0_i32_0 = arith.constant 0 : i32
    %c0_i32_1 = arith.constant 0 : i32
    return %arg2, %c0_i32, %c0_i32_0 : i32, i32, i32
  }
  func.func @transform_3(%arg0: i32, %arg1: i32, %arg2: i32) -> (i32, i32, i32) {
    %c0_i32 = arith.constant 0 : i32
    %c0_i32_0 = arith.constant 0 : i32
    %c0_i32_1 = arith.constant 0 : i32
    return %arg2, %c0_i32, %c0_i32_0 : i32, i32, i32
  }
  func.func @transform_4(%arg0: i32, %arg1: i32, %arg2: i32) -> (i32, i32, i32) {
    %c0_i32 = arith.constant 0 : i32
    %c0_i32_0 = arith.constant 0 : i32
    %c0_i32_1 = arith.constant 0 : i32
    return %arg2, %c0_i32, %c0_i32_0 : i32, i32, i32
  }
  func.func @transform_5(%arg0: i32, %arg1: i32, %arg2: i32) -> (i32, i32, i32, i32) {
    %c0_i32 = arith.constant 0 : i32
    %c0_i32_0 = arith.constant 0 : i32
    return %arg0, %arg2, %arg1, %c0_i32 : i32, i32, i32, i32
  }
  func.func @transform_6(%arg0: i32, %arg1: i32, %arg2: i32) -> (i32, i32, i32, i32) {
    %c0_i32 = arith.constant 0 : i32
    %c0_i32_0 = arith.constant 0 : i32
    return %arg0, %arg2, %arg1, %c0_i32 : i32, i32, i32, i32
  }
}

module attributes {stable_mosaic.version = 11 : i64} {
  func.func @_q_head_proj_kernel(%arg0: i32, %arg1: i32, %arg2: i32, %arg3: memref<1x8x32xbf16, #tpu.memory_space<vmem>>, %arg4: memref<1x32x8xbf16, #tpu.memory_space<vmem>>, %arg5: memref<1x1x8xf32, #tpu.memory_space<vmem>>, %arg6: memref<1x1x8x8xbf16, #tpu.memory_space<vmem>>) attributes {dimension_semantics = [#tpu.dimension_semantics<parallel>, #tpu.dimension_semantics<parallel>, #tpu.dimension_semantics<parallel>], iteration_bounds = array<i64: 2, 1, 4>, scalar_prefetch = 0 : i64, scratch_operands = 0 : i64, tpu.core_type = #tpu.core_type<tc>, window_params = [{transform_indices = @transform_0, window_bounds = array<i64: 1, 8, 32>}, {transform_indices = @transform_1, window_bounds = array<i64: 1, 32, 8>}, {transform_indices = @transform_2, window_bounds = array<i64: 1, 1, 8>}, {transform_indices = @transform_3, window_bounds = array<i64: 1, 1, 8, 8>}]} {
    %c0 = arith.constant 0 : index
    %c0_0 = arith.constant 0 : index
    %c0_1 = arith.constant 0 : index
    %0 = vector.load %arg3[%c0, %c0_0, %c0_1] : memref<1x8x32xbf16, #tpu.memory_space<vmem>>, vector<1x8x32xbf16>
    %1 = vector.shape_cast %0 : vector<1x8x32xbf16> to vector<8x32xbf16>
    %c0_2 = arith.constant 0 : index
    %c0_3 = arith.constant 0 : index
    %c0_4 = arith.constant 0 : index
    %2 = vector.load %arg4[%c0_2, %c0_3, %c0_4] : memref<1x32x8xbf16, #tpu.memory_space<vmem>>, vector<1x32x8xbf16>
    %3 = vector.shape_cast %2 : vector<1x32x8xbf16> to vector<32x8xbf16>
    %cst = arith.constant dense<0.000000e+00> : vector<8x8xf32>
    %4 = tpu.matmul %1, %3, %cst {dimension_numbers = #tpu.dot_dimension_numbers<[1], [0], [0], [1], [0, 0, 1, 1], [], []>} : vector<8x32xbf16>, vector<32x8xbf16>, vector<8x8xf32> -> vector<8x8xf32>
    %c0_5 = arith.constant 0 : index
    %c0_6 = arith.constant 0 : index
    %c0_7 = arith.constant 0 : index
    %5 = vector.load %arg5[%c0_5, %c0_6, %c0_7] : memref<1x1x8xf32, #tpu.memory_space<vmem>>, vector<1x1x8xf32>
    %6 = vector.shape_cast %5 : vector<1x1x8xf32> to vector<1x8xf32>
    %7 = vector.broadcast %6 : vector<1x8xf32> to vector<8x8xf32>
    %8 = arith.addf %4, %7 : vector<8x8xf32>
    %9 = arith.truncf %8 : vector<8x8xf32> to vector<8x8xbf16>
    %c0_8 = arith.constant 0 : index
    %c0_9 = arith.constant 0 : index
    %c0_10 = arith.constant 0 : index
    %c0_11 = arith.constant 0 : index
    %10 = vector.load %arg6[%c0_8, %c0_9, %c0_10, %c0_11] : memref<1x1x8x8xbf16, #tpu.memory_space<vmem>>, vector<1x1x8x8xbf16>
    %11 = vector.shape_cast %10 : vector<1x1x8x8xbf16> to vector<8x8xbf16>
    %12 = vector.shape_cast %9 : vector<8x8xbf16> to vector<1x1x8x8xbf16>
    tpu.vector_store %arg6[%c0_8, %c0_9, %c0_10, %c0_11], %12 {strides = array<i32>} : memref<1x1x8x8xbf16, #tpu.memory_space<vmem>>, vector<1x1x8x8xbf16>,
    return
  }
  func.func @transform_0(%arg0: i32, %arg1: i32, %arg2: i32) -> (i32, i32, i32) {
    %c0_i32 = arith.constant 0 : i32
    %c0_i32_0 = arith.constant 0 : i32
    return %arg0, %arg1, %c0_i32 : i32, i32, i32
  }
  func.func @transform_1(%arg0: i32, %arg1: i32, %arg2: i32) -> (i32, i32, i32) {
    %c0_i32 = arith.constant 0 : i32
    %c0_i32_0 = arith.constant 0 : i32
    %c0_i32_1 = arith.constant 0 : i32
    return %arg2, %c0_i32, %c0_i32_0 : i32, i32, i32
  }
  func.func @transform_2(%arg0: i32, %arg1: i32, %arg2: i32) -> (i32, i32, i32) {
    %c0_i32 = arith.constant 0 : i32
    %c0_i32_0 = arith.constant 0 : i32
    %c0_i32_1 = arith.constant 0 : i32
    return %arg2, %c0_i32, %c0_i32_0 : i32, i32, i32
  }
  func.func @transform_3(%arg0: i32, %arg1: i32, %arg2: i32) -> (i32, i32, i32, i32) {
    %c0_i32 = arith.constant 0 : i32
    %c0_i32_0 = arith.constant 0 : i32
    return %arg0, %arg2, %arg1, %c0_i32 : i32, i32, i32, i32
  }
}

module attributes {stable_mosaic.version = 11 : i64} {
  func.func @_flash_attn_kernel(%arg0: i32, %arg1: i32, %arg2: i32, %arg3: i32, %arg4: memref<1x1x8x8xbf16, #tpu.memory_space<vmem>>, %arg5: memref<1x1x8x8xbf16, #tpu.memory_space<vmem>>, %arg6: memref<1x1x8x8xbf16, #tpu.memory_space<vmem>>, %arg7: memref<1x1x8x8xbf16, #tpu.memory_space<vmem>>, %arg8: memref<8x1xf32, #tpu.memory_space<vmem>>, %arg9: memref<8x1xf32, #tpu.memory_space<vmem>>, %arg10: memref<8x8xf32, #tpu.memory_space<vmem>>) attributes {dimension_semantics = [#tpu.dimension_semantics<parallel>, #tpu.dimension_semantics<parallel>, #tpu.dimension_semantics<parallel>, #tpu.dimension_semantics<arbitrary>], iteration_bounds = array<i64: 2, 4, 1, 1>, scalar_prefetch = 0 : i64, scratch_operands = 3 : i64, tpu.core_type = #tpu.core_type<tc>, window_params = [{transform_indices = @transform_0, window_bounds = array<i64: 1, 1, 8, 8>}, {transform_indices = @transform_1, window_bounds = array<i64: 1, 1, 8, 8>}, {transform_indices = @transform_2, window_bounds = array<i64: 1, 1, 8, 8>}, {transform_indices = @transform_3, window_bounds = array<i64: 1, 1, 8, 8>}]} {
    %c0_i32 = arith.constant 0 : i32
    %0 = arith.cmpi eq, %arg3, %c0_i32 : i32
    %1 = arith.extui %0 : i1 to i32
    %c0_i32_0 = arith.constant 0 : i32
    %2 = arith.cmpi ne, %1, %c0_i32_0 : i32
    scf.if %2 {
      %cst_29 = arith.constant -1.000000e+30 : f32
      %36 = vector.broadcast %cst_29 : f32 to vector<8x1xf32>
      %c0_30 = arith.constant 0 : index
      %c0_31 = arith.constant 0 : index
      %37 = vector.load %arg8[%c0_30, %c0_31] : memref<8x1xf32, #tpu.memory_space<vmem>>, vector<8x1xf32>
      tpu.vector_store %arg8[%c0_30, %c0_31], %36 {strides = array<i32>} : memref<8x1xf32, #tpu.memory_space<vmem>>, vector<8x1xf32>,
      %cst_32 = arith.constant 0.000000e+00 : f32
      %38 = vector.broadcast %cst_32 : f32 to vector<8x1xf32>
      %c0_33 = arith.constant 0 : index
      %c0_34 = arith.constant 0 : index
      %39 = vector.load %arg9[%c0_33, %c0_34] : memref<8x1xf32, #tpu.memory_space<vmem>>, vector<8x1xf32>
      tpu.vector_store %arg9[%c0_33, %c0_34], %38 {strides = array<i32>} : memref<8x1xf32, #tpu.memory_space<vmem>>, vector<8x1xf32>,
      %cst_35 = arith.constant 0.000000e+00 : f32
      %40 = vector.broadcast %cst_35 : f32 to vector<8x8xf32>
      %c0_36 = arith.constant 0 : index
      %c0_37 = arith.constant 0 : index
      %41 = vector.load %arg10[%c0_36, %c0_37] : memref<8x8xf32, #tpu.memory_space<vmem>>, vector<8x8xf32>
      tpu.vector_store %arg10[%c0_36, %c0_37], %40 {strides = array<i32>} : memref<8x8xf32, #tpu.memory_space<vmem>>, vector<8x8xf32>,
    } else {
    }
    %c0 = arith.constant 0 : index
    %c0_1 = arith.constant 0 : index
    %c0_2 = arith.constant 0 : index
    %c0_3 = arith.constant 0 : index
    %3 = vector.load %arg4[%c0, %c0_1, %c0_2, %c0_3] : memref<1x1x8x8xbf16, #tpu.memory_space<vmem>>, vector<1x1x8x8xbf16>
    %4 = vector.shape_cast %3 : vector<1x1x8x8xbf16> to vector<8x8xbf16>
    %c0_4 = arith.constant 0 : index
    %c0_5 = arith.constant 0 : index
    %c0_6 = arith.constant 0 : index
    %c0_7 = arith.constant 0 : index
    %5 = vector.load %arg5[%c0_4, %c0_5, %c0_6, %c0_7] : memref<1x1x8x8xbf16, #tpu.memory_space<vmem>>, vector<1x1x8x8xbf16>
    %6 = vector.shape_cast %5 : vector<1x1x8x8xbf16> to vector<8x8xbf16>
    %cst = arith.constant dense<0.000000e+00> : vector<8x8xf32>
    %7 = tpu.matmul %4, %6, %cst {dimension_numbers = #tpu.dot_dimension_numbers<[1], [1], [0], [0], [0, 0, 1, 0], [], []>} : vector<8x8xbf16>, vector<8x8xbf16>, vector<8x8xf32> -> vector<8x8xf32>
    %c0_8 = arith.constant 0 : index
    %c0_9 = arith.constant 0 : index
    %8 = vector.load %arg8[%c0_8, %c0_9] : memref<8x1xf32, #tpu.memory_space<vmem>>, vector<8x1xf32>
    %cst_10 = arith.constant dense<0xFF800000> : vector<8xf32>
    %9 = vector.multi_reduction <maximumf>, %7, %cst_10 [1] : vector<8x8xf32> to vector<8xf32>
    %10 = vector.shape_cast %9 : vector<8xf32> to vector<8x1xf32>
    %11 = arith.maximumf %8, %10 : vector<8x1xf32>
    %12 = arith.subf %8, %11 : vector<8x1xf32>
    %13 = math.exp %12 : vector<8x1xf32>
    %14 = vector.broadcast %11 : vector<8x1xf32> to vector<8x8xf32>
    %15 = arith.subf %7, %14 : vector<8x8xf32>
    %16 = math.exp %15 : vector<8x8xf32>
    %c0_11 = arith.constant 0 : index
    %c0_12 = arith.constant 0 : index
    %17 = vector.load %arg9[%c0_11, %c0_12] : memref<8x1xf32, #tpu.memory_space<vmem>>, vector<8x1xf32>
    %18 = arith.mulf %13, %17 : vector<8x1xf32>
    %cst_13 = arith.constant dense<0.000000e+00> : vector<8xf32>
    %19 = vector.multi_reduction <add>, %16, %cst_13 [1] : vector<8x8xf32> to vector<8xf32>
    %20 = vector.shape_cast %19 : vector<8xf32> to vector<8x1xf32>
    %21 = arith.addf %18, %20 : vector<8x1xf32>
    %c0_14 = arith.constant 0 : index
    %c0_15 = arith.constant 0 : index
    %22 = vector.load %arg9[%c0_14, %c0_15] : memref<8x1xf32, #tpu.memory_space<vmem>>, vector<8x1xf32>
    tpu.vector_store %arg9[%c0_14, %c0_15], %21 {strides = array<i32>} : memref<8x1xf32, #tpu.memory_space<vmem>>, vector<8x1xf32>,
    %c0_16 = arith.constant 0 : index
    %c0_17 = arith.constant 0 : index
    %23 = vector.load %arg10[%c0_16, %c0_17] : memref<8x8xf32, #tpu.memory_space<vmem>>, vector<8x8xf32>
    %24 = vector.broadcast %13 : vector<8x1xf32> to vector<8x8xf32>
    %25 = arith.mulf %24, %23 : vector<8x8xf32>
    %26 = arith.truncf %16 : vector<8x8xf32> to vector<8x8xbf16>
    %c0_18 = arith.constant 0 : index
    %c0_19 = arith.constant 0 : index
    %c0_20 = arith.constant 0 : index
    %c0_21 = arith.constant 0 : index
    %27 = vector.load %arg6[%c0_18, %c0_19, %c0_20, %c0_21] : memref<1x1x8x8xbf16, #tpu.memory_space<vmem>>, vector<1x1x8x8xbf16>
    %28 = vector.shape_cast %27 : vector<1x1x8x8xbf16> to vector<8x8xbf16>
    %cst_22 = arith.constant dense<0.000000e+00> : vector<8x8xf32>
    %29 = tpu.matmul %26, %28, %cst_22 {dimension_numbers = #tpu.dot_dimension_numbers<[1], [0], [0], [1], [0, 0, 1, 1], [], []>} : vector<8x8xbf16>, vector<8x8xbf16>, vector<8x8xf32> -> vector<8x8xf32>
    %30 = arith.addf %25, %29 : vector<8x8xf32>
    %c0_23 = arith.constant 0 : index
    %c0_24 = arith.constant 0 : index
    %31 = vector.load %arg10[%c0_23, %c0_24] : memref<8x8xf32, #tpu.memory_space<vmem>>, vector<8x8xf32>
    tpu.vector_store %arg10[%c0_23, %c0_24], %30 {strides = array<i32>} : memref<8x8xf32, #tpu.memory_space<vmem>>, vector<8x8xf32>,
    %c0_25 = arith.constant 0 : index
    %c0_26 = arith.constant 0 : index
    %32 = vector.load %arg8[%c0_25, %c0_26] : memref<8x1xf32, #tpu.memory_space<vmem>>, vector<8x1xf32>
    tpu.vector_store %arg8[%c0_25, %c0_26], %11 {strides = array<i32>} : memref<8x1xf32, #tpu.memory_space<vmem>>, vector<8x1xf32>,
    %c0_i32_27 = arith.constant 0 : i32
    %33 = arith.cmpi eq, %arg3, %c0_i32_27 : i32
    %34 = arith.extui %33 : i1 to i32
    %c0_i32_28 = arith.constant 0 : i32
    %35 = arith.cmpi ne, %34, %c0_i32_28 : i32
    scf.if %35 {
      %c0_29 = arith.constant 0 : index
      %c0_30 = arith.constant 0 : index
      %36 = vector.load %arg9[%c0_29, %c0_30] : memref<8x1xf32, #tpu.memory_space<vmem>>, vector<8x1xf32>
      %cst_31 = arith.constant 9.99999968E-21 : f32
      %37 = vector.broadcast %cst_31 : f32 to vector<8x1xf32>
      %38 = arith.maximumf %36, %37 : vector<8x1xf32>
      %c0_32 = arith.constant 0 : index
      %c0_33 = arith.constant 0 : index
      %39 = vector.load %arg10[%c0_32, %c0_33] : memref<8x8xf32, #tpu.memory_space<vmem>>, vector<8x8xf32>
      %40 = tpu.reciprocal %38 {approx = true} : vector<8x1xf32> -> vector<8x1xf32>
      %41 = vector.broadcast %40 : vector<8x1xf32> to vector<8x8xf32>
      %42 = arith.mulf %39, %41 : vector<8x8xf32>
      %43 = arith.truncf %42 : vector<8x8xf32> to vector<8x8xbf16>
      %c0_34 = arith.constant 0 : index
      %c0_35 = arith.constant 0 : index
      %c0_36 = arith.constant 0 : index
      %c0_37 = arith.constant 0 : index
      %44 = vector.load %arg7[%c0_34, %c0_35, %c0_36, %c0_37] : memref<1x1x8x8xbf16, #tpu.memory_space<vmem>>, vector<1x1x8x8xbf16>
      %45 = vector.shape_cast %44 : vector<1x1x8x8xbf16> to vector<8x8xbf16>
      %46 = vector.shape_cast %43 : vector<8x8xbf16> to vector<1x1x8x8xbf16>
      tpu.vector_store %arg7[%c0_34, %c0_35, %c0_36, %c0_37], %46 {strides = array<i32>} : memref<1x1x8x8xbf16, #tpu.memory_space<vmem>>, vector<1x1x8x8xbf16>,
    } else {
    }
    return
  }
  func.func @transform_0(%arg0: i32, %arg1: i32, %arg2: i32, %arg3: i32) -> (i32, i32, i32, i32) {
    %c0_i32 = arith.constant 0 : i32
    %c0_i32_0 = arith.constant 0 : i32
    return %arg0, %arg1, %arg2, %c0_i32 : i32, i32, i32, i32
  }
  func.func @transform_1(%arg0: i32, %arg1: i32, %arg2: i32, %arg3: i32) -> (i32, i32, i32, i32) {
    %c0_i32 = arith.constant 0 : i32
    %c0_i32_0 = arith.constant 0 : i32
    return %arg0, %arg1, %arg3, %c0_i32 : i32, i32, i32, i32
  }
  func.func @transform_2(%arg0: i32, %arg1: i32, %arg2: i32, %arg3: i32) -> (i32, i32, i32, i32) {
    %c0_i32 = arith.constant 0 : i32
    %c0_i32_0 = arith.constant 0 : i32
    return %arg0, %arg1, %arg3, %c0_i32 : i32, i32, i32, i32
  }
  func.func @transform_3(%arg0: i32, %arg1: i32, %arg2: i32, %arg3: i32) -> (i32, i32, i32, i32) {
    %c0_i32 = arith.constant 0 : i32
    %c0_i32_0 = arith.constant 0 : i32
    return %arg0, %arg1, %arg2, %c0_i32 : i32, i32, i32, i32
  }
}

module attributes {stable_mosaic.version = 11 : i64} {
  func.func @_ffn_res_ln_kernel(%arg0: i32, %arg1: i32, %arg2: memref<16x32xbf16, #tpu.memory_space<vmem>>, %arg3: memref<32x64xbf16, #tpu.memory_space<vmem>>, %arg4: memref<1x64xf32, #tpu.memory_space<vmem>>, %arg5: memref<64x32xbf16, #tpu.memory_space<vmem>>, %arg6: memref<1x32xf32, #tpu.memory_space<vmem>>, %arg7: memref<1x32xf32, #tpu.memory_space<vmem>>, %arg8: memref<1x32xf32, #tpu.memory_space<vmem>>, %arg9: memref<16x32xbf16, #tpu.memory_space<vmem>>, %arg10: memref<16x32xf32, #tpu.memory_space<vmem>>) attributes {dimension_semantics = [#tpu.dimension_semantics<parallel>, #tpu.dimension_semantics<arbitrary>], iteration_bounds = array<i64: 1, 1>, scalar_prefetch = 0 : i64, scratch_operands = 1 : i64, tpu.core_type = #tpu.core_type<tc>, window_params = [{transform_indices = @transform_0, window_bounds = array<i64: 16, 32>}, {transform_indices = @transform_1, window_bounds = array<i64: 32, 64>}, {transform_indices = @transform_2, window_bounds = array<i64: 1, 64>}, {transform_indices = @transform_3, window_bounds = array<i64: 64, 32>}, {pipeline_mode = #tpu.pipeline_mode<synchronous>, transform_indices = @transform_4, window_bounds = array<i64: 1, 32>}, {pipeline_mode = #tpu.pipeline_mode<synchronous>, transform_indices = @transform_5, window_bounds = array<i64: 1, 32>}, {pipeline_mode = #tpu.pipeline_mode<synchronous>, transform_indices = @transform_6, window_bounds = array<i64: 1, 32>}, {transform_indices = @transform_7, window_bounds = array<i64: 16, 32>}]} {
    %c0_i32 = arith.constant 0 : i32
    %0 = arith.cmpi eq, %arg1, %c0_i32 : i32
    %1 = arith.extui %0 : i1 to i32
    %c0_i32_0 = arith.constant 0 : i32
    %2 = arith.cmpi ne, %1, %c0_i32_0 : i32
    scf.if %2 {
      %cst_16 = arith.constant 0.000000e+00 : f32
      %20 = vector.broadcast %cst_16 : f32 to vector<16x32xf32>
      %c0_17 = arith.constant 0 : index
      %c0_18 = arith.constant 0 : index
      %21 = vector.load %arg10[%c0_17, %c0_18] : memref<16x32xf32, #tpu.memory_space<vmem>>, vector<16x32xf32>
      tpu.vector_store %arg10[%c0_17, %c0_18], %20 {strides = array<i32>} : memref<16x32xf32, #tpu.memory_space<vmem>>, vector<16x32xf32>,
    } else {
    }
    %c0 = arith.constant 0 : index
    %c0_1 = arith.constant 0 : index
    %3 = vector.load %arg2[%c0, %c0_1] : memref<16x32xbf16, #tpu.memory_space<vmem>>, vector<16x32xbf16>
    %c0_2 = arith.constant 0 : index
    %c0_3 = arith.constant 0 : index
    %4 = vector.load %arg3[%c0_2, %c0_3] : memref<32x64xbf16, #tpu.memory_space<vmem>>, vector<32x64xbf16>
    %cst = arith.constant dense<0.000000e+00> : vector<16x64xf32>
    %5 = tpu.matmul %3, %4, %cst {dimension_numbers = #tpu.dot_dimension_numbers<[1], [0], [0], [1], [0, 0, 1, 1], [], []>} : vector<16x32xbf16>, vector<32x64xbf16>, vector<16x64xf32> -> vector<16x64xf32>
    %c0_4 = arith.constant 0 : index
    %c0_5 = arith.constant 0 : index
    %6 = vector.load %arg4[%c0_4, %c0_5] : memref<1x64xf32, #tpu.memory_space<vmem>>, vector<1x64xf32>
    %7 = vector.broadcast %6 : vector<1x64xf32> to vector<16x64xf32>
    %8 = arith.addf %5, %7 : vector<16x64xf32>
    %cst_6 = arith.constant 0.000000e+00 : f32
    %9 = vector.broadcast %cst_6 : f32 to vector<16x64xf32>
    %10 = arith.maximumf %8, %9 : vector<16x64xf32>
    %c0_7 = arith.constant 0 : index
    %c0_8 = arith.constant 0 : index
    %11 = vector.load %arg10[%c0_7, %c0_8] : memref<16x32xf32, #tpu.memory_space<vmem>>, vector<16x32xf32>
    %12 = arith.truncf %10 : vector<16x64xf32> to vector<16x64xbf16>
    %c0_9 = arith.constant 0 : index
    %c0_10 = arith.constant 0 : index
    %13 = vector.load %arg5[%c0_9, %c0_10] : memref<64x32xbf16, #tpu.memory_space<vmem>>, vector<64x32xbf16>
    %cst_11 = arith.constant dense<0.000000e+00> : vector<16x32xf32>
    %14 = tpu.matmul %12, %13, %cst_11 {dimension_numbers = #tpu.dot_dimension_numbers<[1], [0], [0], [1], [0, 0, 1, 1], [], []>} : vector<16x64xbf16>, vector<64x32xbf16>, vector<16x32xf32> -> vector<16x32xf32>
    %15 = arith.addf %11, %14 : vector<16x32xf32>
    %c0_12 = arith.constant 0 : index
    %c0_13 = arith.constant 0 : index
    %16 = vector.load %arg10[%c0_12, %c0_13] : memref<16x32xf32, #tpu.memory_space<vmem>>, vector<16x32xf32>
    tpu.vector_store %arg10[%c0_12, %c0_13], %15 {strides = array<i32>} : memref<16x32xf32, #tpu.memory_space<vmem>>, vector<16x32xf32>,
    %c0_i32_14 = arith.constant 0 : i32
    %17 = arith.cmpi eq, %arg1, %c0_i32_14 : i32
    %18 = arith.extui %17 : i1 to i32
    %c0_i32_15 = arith.constant 0 : i32
    %19 = arith.cmpi ne, %18, %c0_i32_15 : i32
    scf.if %19 {
      %c0_16 = arith.constant 0 : index
      %c0_17 = arith.constant 0 : index
      %20 = vector.load %arg2[%c0_16, %c0_17] : memref<16x32xbf16, #tpu.memory_space<vmem>>, vector<16x32xbf16>
      %21 = arith.extf %20 : vector<16x32xbf16> to vector<16x32xf32>
      %c0_18 = arith.constant 0 : index
      %c0_19 = arith.constant 0 : index
      %22 = vector.load %arg10[%c0_18, %c0_19] : memref<16x32xf32, #tpu.memory_space<vmem>>, vector<16x32xf32>
      %23 = arith.addf %21, %22 : vector<16x32xf32>
      %c0_20 = arith.constant 0 : index
      %c0_21 = arith.constant 0 : index
      %24 = vector.load %arg6[%c0_20, %c0_21] : memref<1x32xf32, #tpu.memory_space<vmem>>, vector<1x32xf32>
      %25 = vector.broadcast %24 : vector<1x32xf32> to vector<16x32xf32>
      %26 = arith.addf %23, %25 : vector<16x32xf32>
      %cst_22 = arith.constant dense<0.000000e+00> : vector<16xf32>
      %27 = vector.multi_reduction <add>, %26, %cst_22 [1] : vector<16x32xf32> to vector<16xf32>
      %28 = vector.shape_cast %27 : vector<16xf32> to vector<16x1xf32>
      %cst_23 = arith.constant 3.200000e+01 : f32
      %29 = vector.broadcast %cst_23 : f32 to vector<16x1xf32>
      %30 = arith.divf %28, %29 : vector<16x1xf32>
      %31 = vector.broadcast %30 : vector<16x1xf32> to vector<16x32xf32>
      %32 = arith.subf %26, %31 : vector<16x32xf32>
      %33 = arith.mulf %32, %32 : vector<16x32xf32>
      %cst_24 = arith.constant dense<0.000000e+00> : vector<16xf32>
      %34 = vector.multi_reduction <add>, %33, %cst_24 [1] : vector<16x32xf32> to vector<16xf32>
      %35 = vector.shape_cast %34 : vector<16xf32> to vector<16x1xf32>
      %cst_25 = arith.constant 3.200000e+01 : f32
      %36 = vector.broadcast %cst_25 : f32 to vector<16x1xf32>
      %37 = arith.divf %35, %36 : vector<16x1xf32>
      %cst_26 = arith.constant 9.99999974E-6 : f32
      %38 = vector.broadcast %cst_26 : f32 to vector<16x1xf32>
      %39 = arith.addf %37, %38 : vector<16x1xf32>
      %40 = math.rsqrt %39 : vector<16x1xf32>
      %41 = vector.broadcast %40 : vector<16x1xf32> to vector<16x32xf32>
      %42 = arith.mulf %32, %41 : vector<16x32xf32>
      %c0_27 = arith.constant 0 : index
      %c0_28 = arith.constant 0 : index
      %43 = vector.load %arg7[%c0_27, %c0_28] : memref<1x32xf32, #tpu.memory_space<vmem>>, vector<1x32xf32>
      %44 = vector.broadcast %43 : vector<1x32xf32> to vector<16x32xf32>
      %45 = arith.mulf %42, %44 : vector<16x32xf32>
      %c0_29 = arith.constant 0 : index
      %c0_30 = arith.constant 0 : index
      %46 = vector.load %arg8[%c0_29, %c0_30] : memref<1x32xf32, #tpu.memory_space<vmem>>, vector<1x32xf32>
      %47 = vector.broadcast %46 : vector<1x32xf32> to vector<16x32xf32>
      %48 = arith.addf %45, %47 : vector<16x32xf32>
      %49 = arith.truncf %48 : vector<16x32xf32> to vector<16x32xbf16>
      %c0_31 = arith.constant 0 : index
      %c0_32 = arith.constant 0 : index
      %50 = vector.load %arg9[%c0_31, %c0_32] : memref<16x32xbf16, #tpu.memory_space<vmem>>, vector<16x32xbf16>
      tpu.vector_store %arg9[%c0_31, %c0_32], %49 {strides = array<i32>} : memref<16x32xbf16, #tpu.memory_space<vmem>>, vector<16x32xbf16>,
    } else {
    }
    return
  }
  func.func @transform_0(%arg0: i32, %arg1: i32) -> (i32, i32) {
    %c0_i32 = arith.constant 0 : i32
    %c0_i32_0 = arith.constant 0 : i32
    return %arg0, %c0_i32 : i32, i32
  }
  func.func @transform_1(%arg0: i32, %arg1: i32) -> (i32, i32) {
    %c0_i32 = arith.constant 0 : i32
    %c0_i32_0 = arith.constant 0 : i32
    return %c0_i32, %arg1 : i32, i32
  }
  func.func @transform_2(%arg0: i32, %arg1: i32) -> (i32, i32) {
    %c0_i32 = arith.constant 0 : i32
    %c0_i32_0 = arith.constant 0 : i32
    return %c0_i32, %arg1 : i32, i32
  }
  func.func @transform_3(%arg0: i32, %arg1: i32) -> (i32, i32) {
    %c0_i32 = arith.constant 0 : i32
    %c0_i32_0 = arith.constant 0 : i32
    return %arg1, %c0_i32 : i32, i32
  }
  func.func @transform_4(%arg0: i32, %arg1: i32) -> (i32, i32) {
    %c0_i32 = arith.constant 0 : i32
    %c0_i32_0 = arith.constant 0 : i32
    %c0_i32_1 = arith.constant 0 : i32
    return %c0_i32, %c0_i32_0 : i32, i32
  }
  func.func @transform_5(%arg0: i32, %arg1: i32) -> (i32, i32) {
    %c0_i32 = arith.constant 0 : i32
    %c0_i32_0 = arith.constant 0 : i32
    %c0_i32_1 = arith.constant 0 : i32
    return %c0_i32, %c0_i32_0 : i32, i32
  }
  func.func @transform_6(%arg0: i32, %arg1: i32) -> (i32, i32) {
    %c0_i32 = arith.constant 0 : i32
    %c0_i32_0 = arith.constant 0 : i32
    %c0_i32_1 = arith.constant 0 : i32
    return %c0_i32, %c0_i32_0 : i32, i32
  }
  func.func @transform_7(%arg0: i32, %arg1: i32) -> (i32, i32) {
    %c0_i32 = arith.constant 0 : i32
    %c0_i32_0 = arith.constant 0 : i32
    return %arg0, %c0_i32 : i32, i32
  }
}

module attributes {stable_mosaic.version = 11 : i64} {
  func.func @_logits_kernel(%arg0: i32, %arg1: i32, %arg2: memref<16x32xbf16, #tpu.memory_space<vmem>>, %arg3: memref<128x32xbf16, #tpu.memory_space<vmem>>, %arg4: memref<1x128xf32, #tpu.memory_space<vmem>>, %arg5: memref<16x128xf32, #tpu.memory_space<vmem>>) attributes {dimension_semantics = [#tpu.dimension_semantics<parallel>, #tpu.dimension_semantics<parallel>], iteration_bounds = array<i64: 1, 1>, scalar_prefetch = 0 : i64, scratch_operands = 0 : i64, tpu.core_type = #tpu.core_type<tc>, window_params = [{transform_indices = @transform_0, window_bounds = array<i64: 16, 32>}, {transform_indices = @transform_1, window_bounds = array<i64: 128, 32>}, {transform_indices = @transform_2, window_bounds = array<i64: 1, 128>}, {transform_indices = @transform_3, window_bounds = array<i64: 16, 128>}]} {
    %c0 = arith.constant 0 : index
    %c0_0 = arith.constant 0 : index
    %0 = vector.load %arg2[%c0, %c0_0] : memref<16x32xbf16, #tpu.memory_space<vmem>>, vector<16x32xbf16>
    %c0_1 = arith.constant 0 : index
    %c0_2 = arith.constant 0 : index
    %1 = vector.load %arg3[%c0_1, %c0_2] : memref<128x32xbf16, #tpu.memory_space<vmem>>, vector<128x32xbf16>
    %cst = arith.constant dense<0.000000e+00> : vector<16x128xf32>
    %2 = tpu.matmul %0, %1, %cst {dimension_numbers = #tpu.dot_dimension_numbers<[1], [1], [0], [0], [0, 0, 1, 0], [], []>} : vector<16x32xbf16>, vector<128x32xbf16>, vector<16x128xf32> -> vector<16x128xf32>
    %c0_3 = arith.constant 0 : index
    %c0_4 = arith.constant 0 : index
    %3 = vector.load %arg4[%c0_3, %c0_4] : memref<1x128xf32, #tpu.memory_space<vmem>>, vector<1x128xf32>
    %4 = vector.broadcast %3 : vector<1x128xf32> to vector<16x128xf32>
    %5 = arith.addf %2, %4 : vector<16x128xf32>
    %c0_5 = arith.constant 0 : index
    %c0_6 = arith.constant 0 : index
    %6 = vector.load %arg5[%c0_5, %c0_6] : memref<16x128xf32, #tpu.memory_space<vmem>>, vector<16x128xf32>
    tpu.vector_store %arg5[%c0_5, %c0_6], %5 {strides = array<i32>} : memref<16x128xf32, #tpu.memory_space<vmem>>, vector<16x128xf32>,
    return
  }
  func.func @transform_0(%arg0: i32, %arg1: i32) -> (i32, i32) {
    %c0_i32 = arith.constant 0 : i32
    %c0_i32_0 = arith.constant 0 : i32
    return %arg0, %c0_i32 : i32, i32
  }
  func.func @transform_1(%arg0: i32, %arg1: i32) -> (i32, i32) {
    %c0_i32 = arith.constant 0 : i32
    %c0_i32_0 = arith.constant 0 : i32
    return %arg1, %c0_i32 : i32, i32
  }
  func.func @transform_2(%arg0: i32, %arg1: i32) -> (i32, i32) {
    %c0_i32 = arith.constant 0 : i32
    %c0_i32_0 = arith.constant 0 : i32
    return %c0_i32, %arg1 : i32, i32
  }
  func.func @transform_3(%arg0: i32, %arg1: i32) -> (i32, i32) {
    %c0_i32 = arith.constant 0 : i32
    return %arg0, %arg1 : i32, i32
  }
}

module attributes {stable_mosaic.version = 11 : i64} {
  func.func @_flash_attn_kernel(%arg0: i32, %arg1: i32, %arg2: i32, %arg3: i32, %arg4: memref<1x1x8x8xbf16, #tpu.memory_space<vmem>>, %arg5: memref<1x1x8x8xbf16, #tpu.memory_space<vmem>>, %arg6: memref<1x1x8x8xbf16, #tpu.memory_space<vmem>>, %arg7: memref<8x8xbf16, #tpu.memory_space<vmem>>, %arg8: memref<1x1x8x8xbf16, #tpu.memory_space<vmem>>, %arg9: memref<8x1xf32, #tpu.memory_space<vmem>>, %arg10: memref<8x1xf32, #tpu.memory_space<vmem>>, %arg11: memref<8x8xf32, #tpu.memory_space<vmem>>) attributes {dimension_semantics = [#tpu.dimension_semantics<parallel>, #tpu.dimension_semantics<parallel>, #tpu.dimension_semantics<parallel>, #tpu.dimension_semantics<arbitrary>], iteration_bounds = array<i64: 2, 4, 1, 1>, scalar_prefetch = 0 : i64, scratch_operands = 3 : i64, tpu.core_type = #tpu.core_type<tc>, window_params = [{transform_indices = @transform_0, window_bounds = array<i64: 1, 1, 8, 8>}, {transform_indices = @transform_1, window_bounds = array<i64: 1, 1, 8, 8>}, {transform_indices = @transform_2, window_bounds = array<i64: 1, 1, 8, 8>}, {transform_indices = @transform_3, window_bounds = array<i64: 8, 8>}, {transform_indices = @transform_4, window_bounds = array<i64: 1, 1, 8, 8>}]} {
    %c0_i32 = arith.constant 0 : i32
    %0 = arith.cmpi eq, %arg3, %c0_i32 : i32
    %1 = arith.extui %0 : i1 to i32
    %c0_i32_0 = arith.constant 0 : i32
    %2 = arith.cmpi ne, %1, %c0_i32_0 : i32
    scf.if %2 {
      %cst_31 = arith.constant -1.000000e+30 : f32
      %39 = vector.broadcast %cst_31 : f32 to vector<8x1xf32>
      %c0_32 = arith.constant 0 : index
      %c0_33 = arith.constant 0 : index
      %40 = vector.load %arg9[%c0_32, %c0_33] : memref<8x1xf32, #tpu.memory_space<vmem>>, vector<8x1xf32>
      tpu.vector_store %arg9[%c0_32, %c0_33], %39 {strides = array<i32>} : memref<8x1xf32, #tpu.memory_space<vmem>>, vector<8x1xf32>,
      %cst_34 = arith.constant 0.000000e+00 : f32
      %41 = vector.broadcast %cst_34 : f32 to vector<8x1xf32>
      %c0_35 = arith.constant 0 : index
      %c0_36 = arith.constant 0 : index
      %42 = vector.load %arg10[%c0_35, %c0_36] : memref<8x1xf32, #tpu.memory_space<vmem>>, vector<8x1xf32>
      tpu.vector_store %arg10[%c0_35, %c0_36], %41 {strides = array<i32>} : memref<8x1xf32, #tpu.memory_space<vmem>>, vector<8x1xf32>,
      %cst_37 = arith.constant 0.000000e+00 : f32
      %43 = vector.broadcast %cst_37 : f32 to vector<8x8xf32>
      %c0_38 = arith.constant 0 : index
      %c0_39 = arith.constant 0 : index
      %44 = vector.load %arg11[%c0_38, %c0_39] : memref<8x8xf32, #tpu.memory_space<vmem>>, vector<8x8xf32>
      tpu.vector_store %arg11[%c0_38, %c0_39], %43 {strides = array<i32>} : memref<8x8xf32, #tpu.memory_space<vmem>>, vector<8x8xf32>,
    } else {
    }
    %c0 = arith.constant 0 : index
    %c0_1 = arith.constant 0 : index
    %c0_2 = arith.constant 0 : index
    %c0_3 = arith.constant 0 : index
    %3 = vector.load %arg4[%c0, %c0_1, %c0_2, %c0_3] : memref<1x1x8x8xbf16, #tpu.memory_space<vmem>>, vector<1x1x8x8xbf16>
    %4 = vector.shape_cast %3 : vector<1x1x8x8xbf16> to vector<8x8xbf16>
    %c0_4 = arith.constant 0 : index
    %c0_5 = arith.constant 0 : index
    %c0_6 = arith.constant 0 : index
    %c0_7 = arith.constant 0 : index
    %5 = vector.load %arg5[%c0_4, %c0_5, %c0_6, %c0_7] : memref<1x1x8x8xbf16, #tpu.memory_space<vmem>>, vector<1x1x8x8xbf16>
    %6 = vector.shape_cast %5 : vector<1x1x8x8xbf16> to vector<8x8xbf16>
    %cst = arith.constant dense<0.000000e+00> : vector<8x8xf32>
    %7 = tpu.matmul %4, %6, %cst {dimension_numbers = #tpu.dot_dimension_numbers<[1], [1], [0], [0], [0, 0, 1, 0], [], []>} : vector<8x8xbf16>, vector<8x8xbf16>, vector<8x8xf32> -> vector<8x8xf32>
    %c0_8 = arith.constant 0 : index
    %c0_9 = arith.constant 0 : index
    %8 = vector.load %arg7[%c0_8, %c0_9] : memref<8x8xbf16, #tpu.memory_space<vmem>>, vector<8x8xbf16>
    %9 = arith.extf %8 : vector<8x8xbf16> to vector<8x8xf32>
    %10 = arith.addf %7, %9 : vector<8x8xf32>
    %c0_10 = arith.constant 0 : index
    %c0_11 = arith.constant 0 : index
    %11 = vector.load %arg9[%c0_10, %c0_11] : memref<8x1xf32, #tpu.memory_space<vmem>>, vector<8x1xf32>
    %cst_12 = arith.constant dense<0xFF800000> : vector<8xf32>
    %12 = vector.multi_reduction <maximumf>, %10, %cst_12 [1] : vector<8x8xf32> to vector<8xf32>
    %13 = vector.shape_cast %12 : vector<8xf32> to vector<8x1xf32>
    %14 = arith.maximumf %11, %13 : vector<8x1xf32>
    %15 = arith.subf %11, %14 : vector<8x1xf32>
    %16 = math.exp %15 : vector<8x1xf32>
    %17 = vector.broadcast %14 : vector<8x1xf32> to vector<8x8xf32>
    %18 = arith.subf %10, %17 : vector<8x8xf32>
    %19 = math.exp %18 : vector<8x8xf32>
    %c0_13 = arith.constant 0 : index
    %c0_14 = arith.constant 0 : index
    %20 = vector.load %arg10[%c0_13, %c0_14] : memref<8x1xf32, #tpu.memory_space<vmem>>, vector<8x1xf32>
    %21 = arith.mulf %16, %20 : vector<8x1xf32>
    %cst_15 = arith.constant dense<0.000000e+00> : vector<8xf32>
    %22 = vector.multi_reduction <add>, %19, %cst_15 [1] : vector<8x8xf32> to vector<8xf32>
    %23 = vector.shape_cast %22 : vector<8xf32> to vector<8x1xf32>
    %24 = arith.addf %21, %23 : vector<8x1xf32>
    %c0_16 = arith.constant 0 : index
    %c0_17 = arith.constant 0 : index
    %25 = vector.load %arg10[%c0_16, %c0_17] : memref<8x1xf32, #tpu.memory_space<vmem>>, vector<8x1xf32>
    tpu.vector_store %arg10[%c0_16, %c0_17], %24 {strides = array<i32>} : memref<8x1xf32, #tpu.memory_space<vmem>>, vector<8x1xf32>,
    %c0_18 = arith.constant 0 : index
    %c0_19 = arith.constant 0 : index
    %26 = vector.load %arg11[%c0_18, %c0_19] : memref<8x8xf32, #tpu.memory_space<vmem>>, vector<8x8xf32>
    %27 = vector.broadcast %16 : vector<8x1xf32> to vector<8x8xf32>
    %28 = arith.mulf %27, %26 : vector<8x8xf32>
    %29 = arith.truncf %19 : vector<8x8xf32> to vector<8x8xbf16>
    %c0_20 = arith.constant 0 : index
    %c0_21 = arith.constant 0 : index
    %c0_22 = arith.constant 0 : index
    %c0_23 = arith.constant 0 : index
    %30 = vector.load %arg6[%c0_20, %c0_21, %c0_22, %c0_23] : memref<1x1x8x8xbf16, #tpu.memory_space<vmem>>, vector<1x1x8x8xbf16>
    %31 = vector.shape_cast %30 : vector<1x1x8x8xbf16> to vector<8x8xbf16>
    %cst_24 = arith.constant dense<0.000000e+00> : vector<8x8xf32>
    %32 = tpu.matmul %29, %31, %cst_24 {dimension_numbers = #tpu.dot_dimension_numbers<[1], [0], [0], [1], [0, 0, 1, 1], [], []>} : vector<8x8xbf16>, vector<8x8xbf16>, vector<8x8xf32> -> vector<8x8xf32>
    %33 = arith.addf %28, %32 : vector<8x8xf32>
    %c0_25 = arith.constant 0 : index
    %c0_26 = arith.constant 0 : index
    %34 = vector.load %arg11[%c0_25, %c0_26] : memref<8x8xf32, #tpu.memory_space<vmem>>, vector<8x8xf32>
    tpu.vector_store %arg11[%c0_25, %c0_26], %33 {strides = array<i32>} : memref<8x8xf32, #tpu.memory_space<vmem>>, vector<8x8xf32>,
    %c0_27 = arith.constant 0 : index
    %c0_28 = arith.constant 0 : index
    %35 = vector.load %arg9[%c0_27, %c0_28] : memref<8x1xf32, #tpu.memory_space<vmem>>, vector<8x1xf32>
    tpu.vector_store %arg9[%c0_27, %c0_28], %14 {strides = array<i32>} : memref<8x1xf32, #tpu.memory_space<vmem>>, vector<8x1xf32>,
    %c0_i32_29 = arith.constant 0 : i32
    %36 = arith.cmpi eq, %arg3, %c0_i32_29 : i32
    %37 = arith.extui %36 : i1 to i32
    %c0_i32_30 = arith.constant 0 : i32
    %38 = arith.cmpi ne, %37, %c0_i32_30 : i32
    scf.if %38 {
      %c0_31 = arith.constant 0 : index
      %c0_32 = arith.constant 0 : index
      %39 = vector.load %arg10[%c0_31, %c0_32] : memref<8x1xf32, #tpu.memory_space<vmem>>, vector<8x1xf32>
      %cst_33 = arith.constant 9.99999968E-21 : f32
      %40 = vector.broadcast %cst_33 : f32 to vector<8x1xf32>
      %41 = arith.maximumf %39, %40 : vector<8x1xf32>
      %c0_34 = arith.constant 0 : index
      %c0_35 = arith.constant 0 : index
      %42 = vector.load %arg11[%c0_34, %c0_35] : memref<8x8xf32, #tpu.memory_space<vmem>>, vector<8x8xf32>
      %43 = tpu.reciprocal %41 {approx = true} : vector<8x1xf32> -> vector<8x1xf32>
      %44 = vector.broadcast %43 : vector<8x1xf32> to vector<8x8xf32>
      %45 = arith.mulf %42, %44 : vector<8x8xf32>
      %46 = arith.truncf %45 : vector<8x8xf32> to vector<8x8xbf16>
      %c0_36 = arith.constant 0 : index
      %c0_37 = arith.constant 0 : index
      %c0_38 = arith.constant 0 : index
      %c0_39 = arith.constant 0 : index
      %47 = vector.load %arg8[%c0_36, %c0_37, %c0_38, %c0_39] : memref<1x1x8x8xbf16, #tpu.memory_space<vmem>>, vector<1x1x8x8xbf16>
      %48 = vector.shape_cast %47 : vector<1x1x8x8xbf16> to vector<8x8xbf16>
      %49 = vector.shape_cast %46 : vector<8x8xbf16> to vector<1x1x8x8xbf16>
      tpu.vector_store %arg8[%c0_36, %c0_37, %c0_38, %c0_39], %49 {strides = array<i32>} : memref<1x1x8x8xbf16, #tpu.memory_space<vmem>>, vector<1x1x8x8xbf16>,
    } else {
    }
    return
  }
  func.func @transform_0(%arg0: i32, %arg1: i32, %arg2: i32, %arg3: i32) -> (i32, i32, i32, i32) {
    %c0_i32 = arith.constant 0 : i32
    %c0_i32_0 = arith.constant 0 : i32
    return %arg0, %arg1, %arg2, %c0_i32 : i32, i32, i32, i32
  }
  func.func @transform_1(%arg0: i32, %arg1: i32, %arg2: i32, %arg3: i32) -> (i32, i32, i32, i32) {
    %c0_i32 = arith.constant 0 : i32
    %c0_i32_0 = arith.constant 0 : i32
    return %arg0, %arg1, %arg3, %c0_i32 : i32, i32, i32, i32
  }
  func.func @transform_2(%arg0: i32, %arg1: i32, %arg2: i32, %arg3: i32) -> (i32, i32, i32, i32) {
    %c0_i32 = arith.constant 0 : i32
    %c0_i32_0 = arith.constant 0 : i32
    return %arg0, %arg1, %arg3, %c0_i32 : i32, i32, i32, i32
  }
  func.func @transform_3(%arg0: i32, %arg1: i32, %arg2: i32, %arg3: i32) -> (i32, i32) {
    %c0_i32 = arith.constant 0 : i32
    return %arg2, %arg3 : i32, i32
  }
  func.func @transform_4(%arg0: i32, %arg1: i32, %arg2: i32, %arg3: i32) -> (i32, i32, i32, i32) {
    %c0_i32 = arith.constant 0 : i32
    %c0_i32_0 = arith.constant 0 : i32
    return %arg0, %arg1, %arg2, %c0_i32 : i32, i32, i32, i32
  }
}

</mosaic_0001>

<llo_original>
// kernel: transformer_forward.32
$region0: #{transformer_forward.32}
  #allocation0 [shape = 'u32[]', space=smem, size = 0x4, offset = 0x4, fixed_abs, tag = 'smem constant byte address 0x4 - core index']
  #allocation1 [shape = 'u32[144,128]{1,0:T(1,128)}', space=vmem, size = 0x12000, scoped, tag = 'internal scratch']
  #allocation2 [shape = 'f32[8,32]{1,0:T(8,128)}', space=vmem, size = 0x1000, scoped, tag = 'scratch operand']
  %s0 = inlined_call_operand.vmem [shape: bf16[2,4,8,8], index: 0, kind: input, shape index: {}]
  %s1 = inlined_call_operand.vmem [shape: bf16[4,8,32], index: 1, kind: input, shape index: {}]
  %s2 = inlined_call_operand.vmem [shape: f32[1,32], index: 2, kind: input, shape index: {}]
  %s3 = inlined_call_operand.vmem [shape: bf16[2,8,32], index: 3, kind: input, shape index: {}]
  %s4 = inlined_call_operand.vmem [shape: f32[1,32], index: 4, kind: input, shape index: {}]
  %s5 = inlined_call_operand.vmem [shape: f32[1,32], index: 5, kind: input, shape index: {}]
  %s6 = inlined_call_operand.vmem [shape: bf16[2,8,32], index: 6, kind: output, shape index: {}]
  %s7 = sld [smem:[#allocation0]]
  $region65: #{transformer_forward.32} parent=0
    _
  %s9 = ssub.s32 1, %s7
  %s10 = scalar_select 0, %s9, %s7
  loop: start=0, step=1, limit=10
  $region2: #{transformer_forward.32} parent=0 // loop_pre_header
    _
  $region3: #{transformer_forward.32} parent=0 // loop_header
    %s12 = sphi 0, %s16
    %p13 = scmp.ge.s32.totalorder %s12, 10
    %s19 = sphi 0, %s38
    %s20 = sphi 0, %s34
    %s21 = sphi 0, %s30
    %s22 = sphi 0, %s19
    %s23 = sphi 0, %s20
    %s24 = sphi 0, %s21
    %s25 = sphi 0, %s22
    %s26 = sphi 0, %s23
    %s27 = sphi 0, %s24
    %s45 = sphi 0, %s47
    %s48 = sphi 0, %s45
    %s49 = sphi 0, %s48
    %s65 = sphi 0, %s49
    %s71 = sphi 0, %s73
    %s74 = sphi 0, %s71
    %s75 = sphi 0, %s74
    %s91 = sphi 0, %s75
    %s95 = sphi 0, %s95
    %s97 = sphi 0, %s95
    %s98 = sphi 0, %s97
    %s112 = sphi 0, %s98
    %s120 = sphi 0, %s122
    %s123 = sphi 0, %s120
    %s124 = sphi 0, %s123
    %s140 = sphi 0, %s124
    %s144 = sphi 0, %s144
    %s146 = sphi 0, %s144
    %s147 = sphi 0, %s146
    %s161 = sphi 0, %s147
    %s165 = sphi 0, %s165
    %s167 = sphi 0, %s165
    %s168 = sphi 0, %s167
    %s182 = sphi 0, %s168
    %s190 = sphi 0, %s192
    %s193 = sphi 0, %s190
    %s194 = sphi 0, %s193
    %s210 = sphi 0, %s194
  $region4: #{transformer_forward.32} parent=0 // loop_header_branch
    %15 = sbr.rel (%p13) target = $region8
  $region5: #{transformer_forward.32} parent=0 // loop_body
    %s17 = ssub.s32 %s12, 1
    %s18 = ssub.s32 %s12, 2
    %s28 = sadd.s32 1, %s21
    %p29 = scmp.ge.s32.totalorder %s28, 4
    %s30 = scalar_select %p29, 0, %s28
    %s31 = sadd.s32 1, %s20
    %s32 = scalar_select %p29, %s31, %s20
    %p33 = scmp.ge.s32.totalorder %s32, 1
    %s34 = scalar_select %p33, 0, %s32
    %s35 = sadd.s32 1, %s19
    %s36 = scalar_select %p33, %s35, %s19
    %p37 = scmp.ge.s32.totalorder %s36, 2
    %s38 = scalar_select %p37, 0, %s36
    %s39 = ssub.s32 %s19, %s38
    %s40 = ssub.s32 %s21, %s30
    %s41 = sor.u32 %s39, %s40
    %s42 = ssub.s32 %s20, %s34
    %s43 = sor.u32 %s41, %s42
    %p44 = scmp.eq.s32.totalorder %s43, 0
    %s46 = sadd.s32 %s45, 1
    %s47 = scalar_select %p44, %s45, %s46
    %p50 = pneg %p44
    %p51 = scmp.eq.s32.totalorder %s12, 7
    %p52 = por %p50, %p51
    %p53 = scmp.ne.s32.totalorder %s45, %s48
    %p54 = scmp.eq.s32.totalorder %s12, 0
    %p55 = por %p53, %p54
    %p56 = scmp.ne.s32.totalorder %s45, %s48
    %p57 = scmp.eq.s32.totalorder %s17, 7
    %p58 = por %p56, %p57
    %p59 = scmp.ne.s32.totalorder %s48, %s49
    %p60 = scmp.eq.s32.totalorder %s17, 0
    %p61 = por %p59, %p60
    %p62 = scmp.ne.s32.totalorder %s48, %s49
    %p63 = scmp.eq.s32.totalorder %s18, 7
    %p64 = por %p62, %p63
    %p66 = scmp.ne.s32.totalorder %s49, %s65
    %p67 = scmp.eq.s32.totalorder %s18, 0
    %p68 = por %p66, %p67
    %s69 = ssub.s32 %s21, %s30
    %p70 = scmp.eq.s32.totalorder %s69, 0
    %s72 = sadd.s32 %s71, 1
    %s73 = scalar_select %p70, %s71, %s72
    %p76 = pneg %p70
    %p77 = scmp.eq.s32.totalorder %s12, 7
    %p78 = por %p76, %p77
    %p79 = scmp.ne.s32.totalorder %s71, %s74
    %p80 = scmp.eq.s32.totalorder %s12, 0
    %p81 = por %p79, %p80
    %p82 = scmp.ne.s32.totalorder %s71, %s74
    %p83 = scmp.eq.s32.totalorder %s17, 7
    %p84 = por %p82, %p83
    %p85 = scmp.ne.s32.totalorder %s74, %s75
    %p86 = scmp.eq.s32.totalorder %s17, 0
    %p87 = por %p85, %p86
    %p88 = scmp.ne.s32.totalorder %s74, %s75
    %p89 = scmp.eq.s32.totalorder %s18, 7
    %p90 = por %p88, %p89
    %p92 = scmp.ne.s32.totalorder %s75, %s91
    %p93 = scmp.eq.s32.totalorder %s18, 0
    %p94 = por %p92, %p93
    %s96 = sadd.s32 %s95, 1
    %p99 = scmp.eq.s32.totalorder %s12, 7
    %p100 = scmp.ne.s32.totalorder %s95, %s97
    %p101 = scmp.eq.s32.totalorder %s12, 0
    %p102 = por %p100, %p101
    %p103 = scmp.ne.s32.totalorder %s95, %s97
    %p104 = scmp.eq.s32.totalorder %s17, 7
    %p105 = por %p103, %p104
    %p106 = scmp.ne.s32.totalorder %s97, %s98
    %p107 = scmp.eq.s32.totalorder %s17, 0
    %p108 = por %p106, %p107
    %p109 = scmp.ne.s32.totalorder %s97, %s98
    %p110 = scmp.eq.s32.totalorder %s18, 7
    %p111 = por %p109, %p110
    %p113 = scmp.ne.s32.totalorder %s98, %s112
    %p114 = scmp.eq.s32.totalorder %s18, 0
    %p115 = por %p113, %p114
    %s116 = ssub.s32 %s19, %s38
    %s117 = ssub.s32 %s20, %s34
    %s118 = sor.u32 %s116, %s117
    %p119 = scmp.eq.s32.totalorder %s118, 0
    %s121 = sadd.s32 %s120, 1
    %s122 = scalar_select %p119, %s120, %s121
    %p125 = pneg %p119
    %p126 = scmp.eq.s32.totalorder %s12, 7
    %p127 = por %p125, %p126
    %p128 = scmp.ne.s32.totalorder %s120, %s123
    %p129 = scmp.eq.s32.totalorder %s12, 0
    %p130 = por %p128, %p129
    %p131 = scmp.ne.s32.totalorder %s120, %s123
    %p132 = scmp.eq.s32.totalorder %s17, 7
    %p133 = por %p131, %p132
    %p134 = scmp.ne.s32.totalorder %s123, %s124
    %p135 = scmp.eq.s32.totalorder %s17, 0
    %p136 = por %p134, %p135
    %p137 = scmp.ne.s32.totalorder %s123, %s124
    %p138 = scmp.eq.s32.totalorder %s18, 7
    %p139 = por %p137, %p138
    %p141 = scmp.ne.s32.totalorder %s124, %s140
    %p142 = scmp.eq.s32.totalorder %s18, 0
    %p143 = por %p141, %p142
    %s145 = sadd.s32 %s144, 1
    %p148 = scmp.eq.s32.totalorder %s12, 7
    %p149 = scmp.ne.s32.totalorder %s144, %s146
    %p150 = scmp.eq.s32.totalorder %s12, 0
    %p151 = por %p149, %p150
    %p152 = scmp.ne.s32.totalorder %s144, %s146
    %p153 = scmp.eq.s32.totalorder %s17, 7
    %p154 = por %p152, %p153
    %p155 = scmp.ne.s32.totalorder %s146, %s147
    %p156 = scmp.eq.s32.totalorder %s17, 0
    %p157 = por %p155, %p156
    %p158 = scmp.ne.s32.totalorder %s146, %s147
    %p159 = scmp.eq.s32.totalorder %s18, 7
    %p160 = por %p158, %p159
    %p162 = scmp.ne.s32.totalorder %s147, %s161
    %p163 = scmp.eq.s32.totalorder %s18, 0
    %p164 = por %p162, %p163
    %s166 = sadd.s32 %s165, 1
    %p169 = scmp.eq.s32.totalorder %s12, 7
    %p170 = scmp.ne.s32.totalorder %s165, %s167
    %p171 = scmp.eq.s32.totalorder %s12, 0
    %p172 = por %p170, %p171
    %p173 = scmp.ne.s32.totalorder %s165, %s167
    %p174 = scmp.eq.s32.totalorder %s17, 7
    %p175 = por %p173, %p174
    %p176 = scmp.ne.s32.totalorder %s167, %s168
    %p177 = scmp.eq.s32.totalorder %s17, 0
    %p178 = por %p176, %p177
    %p179 = scmp.ne.s32.totalorder %s167, %s168
    %p180 = scmp.eq.s32.totalorder %s18, 7
    %p181 = por %p179, %p180
    %p183 = scmp.ne.s32.totalorder %s168, %s182
    %p184 = scmp.eq.s32.totalorder %s18, 0
    %p185 = por %p183, %p184
    %s186 = ssub.s32 %s19, %s38
    %s187 = ssub.s32 %s20, %s34
    %s188 = sor.u32 %s186, %s187
    %p189 = scmp.eq.s32.totalorder %s188, 0
    %s191 = sadd.s32 %s190, 1
    %s192 = scalar_select %p189, %s190, %s191
    %p195 = pneg %p189
    %p196 = scmp.eq.s32.totalorder %s12, 7
    %p197 = por %p195, %p196
    %p198 = scmp.ne.s32.totalorder %s190, %s193
    %p199 = scmp.eq.s32.totalorder %s12, 0
    %p200 = por %p198, %p199
    %p201 = scmp.ne.s32.totalorder %s190, %s193
    %p202 = scmp.eq.s32.totalorder %s17, 7
    %p203 = por %p201, %p202
    %p204 = scmp.ne.s32.totalorder %s193, %s194
    %p205 = scmp.eq.s32.totalorder %s17, 0
    %p206 = por %p204, %p205
    %p207 = scmp.ne.s32.totalorder %s193, %s194
    %p208 = scmp.eq.s32.totalorder %s18, 7
    %p209 = por %p207, %p208
    %p211 = scmp.ne.s32.totalorder %s194, %s210
    %p212 = scmp.eq.s32.totalorder %s18, 0
    %p213 = por %p211, %p212
    %p214 = scmp.le.s32.totalorder 1, %s12
    %p215 = scmp.lt.s32.totalorder %s12, 9
    %p216 = pnand %p214, %p215
    %p217 = pneg %p216
    // Predicated region
    $region9: #{transformer_forward.32} parent=5 // pred_check
      _
    $region10: #{transformer_forward.32} parent=5 // pred_check_branch
      %219 = sbr.rel (%p216) target = $region12
    $region11: #{transformer_forward.32} parent=5 // pred_region
      %s220 = ssub.s32 %s12, 1
      // Predicated region
      $region13: #{transformer_forward.32} parent=11 // pred_check
        %p221 = pneg %p108
      $region14: #{transformer_forward.32} parent=11 // pred_check_branch
        %223 = sbr.rel (%p221) target = $region16
      $region15: #{transformer_forward.32} parent=11 // pred_region
        _
      $region16: #{transformer_forward.32} parent=11 // pred_fallthru
        _
      // Predicated region
      $region17: #{transformer_forward.32} parent=11 // pred_check
        %p224 = pneg %p157
      $region18: #{transformer_forward.32} parent=11 // pred_check_branch
        %226 = sbr.rel (%p224) target = $region20
      $region19: #{transformer_forward.32} parent=11 // pred_region
        _
      $region20: #{transformer_forward.32} parent=11 // pred_fallthru
        _
      // Predicated region
      $region21: #{transformer_forward.32} parent=11 // pred_check
        %p227 = pneg %p178
      $region22: #{transformer_forward.32} parent=11 // pred_check_branch
        %229 = sbr.rel (%p227) target = $region24
      $region23: #{transformer_forward.32} parent=11 // pred_region
        _
      $region24: #{transformer_forward.32} parent=11 // pred_fallthru
        _
    $region12: #{transformer_forward.32} parent=5 // pred_fallthru
      _
    %p230 = scmp.lt.s32.totalorder %s12, 8
    // Predicated region
    $region25: #{transformer_forward.32} parent=5 // pred_check
      %p231 = pneg %p230
    $region26: #{transformer_forward.32} parent=5 // pred_check_branch
      %233 = sbr.rel (%p231) target = $region28
    $region27: #{transformer_forward.32} parent=5 // pred_region
      // Predicated region
      $region29: #{transformer_forward.32} parent=27 // pred_check
        %p234 = pneg %p55
      $region30: #{transformer_forward.32} parent=27 // pred_check_branch
        %236 = sbr.rel (%p234) target = $region32
      $region31: #{transformer_forward.32} parent=27 // pred_region
        %p237 = scmp.lt.s32.totalorder %s19, 1
        %s238 = scalar_select %p237, %s19, 1
        %p239 = scmp.lt.s32.totalorder %s21, 3
        %s240 = scalar_select %p239, %s21, 3
        %p241 = scmp.lt.s32.totalorder %s20, 0
        %s242 = scalar_select %p241, %s20, 0
        %s243 = sadd.s32 %s242, %s240
        %s244 = smul.addr %s238, 4
        %s245 = sadd.s32 %s243, %s244
        %s246 = smul.addr %s245, 4
        %s247 = scalar_lea.vmem %s0, %s246
      $region32: #{transformer_forward.32} parent=27 // pred_fallthru
        _
      // Predicated region
      $region33: #{transformer_forward.32} parent=27 // pred_check
        %p248 = pneg %p81
      $region34: #{transformer_forward.32} parent=27 // pred_check_branch
        %250 = sbr.rel (%p248) target = $region36
      $region35: #{transformer_forward.32} parent=27 // pred_region
        %p251 = scmp.lt.s32.totalorder %s21, 3
        %s252 = scalar_select %p251, %s21, 3
        %s253 = smul.addr %s252, 4
        %s254 = scalar_lea.vmem %s1, %s253
      $region36: #{transformer_forward.32} parent=27 // pred_fallthru
        _
      // Predicated region
      $region37: #{transformer_forward.32} parent=27 // pred_check
        %p255 = pneg %p130
      $region38: #{transformer_forward.32} parent=27 // pred_check_branch
        %257 = sbr.rel (%p255) target = $region40
      $region39: #{transformer_forward.32} parent=27 // pred_region
        %p258 = scmp.lt.s32.totalorder %s19, 1
        %s259 = scalar_select %p258, %s19, 1
        %p260 = scmp.lt.s32.totalorder %s20, 0
        %s261 = scalar_select %p260, %s20, 0
        %s262 = sadd.s32 %s261, %s259
        %s263 = smul.addr %s262, 4
        %s264 = scalar_lea.vmem %s3, %s263
      $region40: #{transformer_forward.32} parent=27 // pred_fallthru
        _
    $region28: #{transformer_forward.32} parent=5 // pred_fallthru
      _
    %p265 = scmp.le.s32.totalorder 1, %s12
    %p266 = scmp.lt.s32.totalorder %s12, 9
    %p267 = pnand %p265, %p266
    %p268 = pneg %p267
    // Predicated region
    $region41: #{transformer_forward.32} parent=5 // pred_check
      _
    $region42: #{transformer_forward.32} parent=5 // pred_check_branch
      %270 = sbr.rel (%p267) target = $region44
    $region43: #{transformer_forward.32} parent=5 // pred_region
      %s271 = ssub.s32 %s12, 1
      %p272 = scmp.lt.s32.totalorder %s22, 1
      %s273 = scalar_select %p272, %s22, 1
      %p274 = scmp.lt.s32.totalorder %s24, 3
      %s275 = scalar_select %p274, %s24, 3
      %p276 = scmp.lt.s32.totalorder %s23, 0
      %s277 = scalar_select %p276, %s23, 0
      %s278 = sadd.s32 %s277, %s275
      %s279 = smul.addr %s273, 4
      %s280 = sadd.s32 %s278, %s279
      %s281 = smul.addr %s280, 4
      %s282 = scalar_lea.vmem %s0, %s281
      %p283 = pneg %p61
      %p284 = pneg %p58
      %p285 = scmp.lt.s32.totalorder %s24, 3
      %s286 = scalar_select %p285, %s24, 3
      %s287 = smul.addr %s286, 4
      %s288 = scalar_lea.vmem %s1, %s287
      %p289 = pneg %p87
      %p290 = pneg %p84
      %p291 = pneg %p108
      %p292 = pneg %p105
      %p293 = scmp.lt.s32.totalorder %s22, 1
      %s294 = scalar_select %p293, %s22, 1
      %p295 = scmp.lt.s32.totalorder %s23, 0
      %s296 = scalar_select %p295, %s23, 0
      %s297 = sadd.s32 %s296, %s294
      %s298 = smul.addr %s297, 4
      %s299 = scalar_lea.vmem %s3, %s298
      %p300 = pneg %p136
      %p301 = pneg %p133
      %p302 = pneg %p157
      %p303 = pneg %p154
      %p304 = pneg %p178
      %p305 = pneg %p175
      %p306 = pneg %p206
      %p307 = pneg %p203
      %p308 = scmp.lt.s32.totalorder %s22, 1
      %s309 = scalar_select %p308, %s22, 1
      %p310 = scmp.lt.s32.totalorder %s23, 0
      %s311 = scalar_select %p310, %s23, 0
      %s312 = sadd.s32 %s311, %s309
      %s313 = smul.addr %s312, 4
      %s314 = scalar_lea.vmem %s6, %s313
      %p315 = scmp.lt.s32.totalorder %s22, 1
      %s316 = scalar_select %p315, %s22, 1
      %p317 = scmp.lt.s32.totalorder %s24, 3
      %s318 = scalar_select %p317, %s24, 3
      %p319 = scmp.lt.s32.totalorder %s23, 0
      %s320 = scalar_select %p319, %s23, 0
      %s321 = sadd.s32 %s320, %s318
      %s322 = smul.addr %s316, 4
      %s323 = sadd.s32 %s321, %s322
      %s324 = smul.addr %s323, 4
      %s325 = scalar_lea.vmem %s0, %s324
      %p326 = scmp.lt.s32.totalorder %s24, 3
      %s327 = scalar_select %p326, %s24, 3
      %s328 = smul.addr %s327, 4
      %s329 = scalar_lea.vmem %s1, %s328
      %p330 = scmp.lt.s32.totalorder %s22, 1
      %s331 = scalar_select %p330, %s22, 1
      %p332 = scmp.lt.s32.totalorder %s23, 0
      %s333 = scalar_select %p332, %s23, 0
      %s334 = sadd.s32 %s333, %s331
      %s335 = smul.addr %s334, 4
      %s336 = scalar_lea.vmem %s3, %s335
      %p337 = scmp.lt.s32.totalorder %s22, 1
      %s338 = scalar_select %p337, %s22, 1
      %p339 = scmp.lt.s32.totalorder %s23, 0
      %s340 = scalar_select %p339, %s23, 0
      %s341 = sadd.s32 %s340, %s338
      %s342 = smul.addr %s341, 4
      %s343 = scalar_lea.vmem %s6, %s342
      %p345 = scmp.eq.s32.totalorder %s24, 0
      // Predicated region
      $region45: #{transformer_forward.32} parent=43 // pred_check
        %p346 = pneg %p345
      $region46: #{transformer_forward.32} parent=43 // pred_check_branch
        %348 = sbr.rel (%p346) target = $region48
      $region47: #{transformer_forward.32} parent=43 // pred_region
        %vm349 = vcmask 261120
        %350 = vst.msk [vmem:[#allocation2] sm:$0xff] %vm349, 0.0
      $region48: #{transformer_forward.32} parent=43 // pred_fallthru
        _
      %v351 = vld [vmem:[#allocation2] sm:$0xff]
      %v352 = vld [vmem:[%s325] sm:$0xf]
      %v353 = vld [vmem:[%s329] sm:$0xf]
      %vm354 = vcmask 64512
      %v356 = vsel %vm354, %v352, 0
      %vm358 = vcmask 1043456
      %v360 = vsel %vm358, %v353, 0
      %362 = vmatprep.subr.bf16.mxu0 0
      %363 = vmatpush1.bf16.msra.mxu0 0
      %364 = vmatprep.subr.bf16.mxu0 0
      %365 = vmatpush1.bf16.msra.mxu0 0
      %366 = vmatprep.subr.bf16.mxu0 0
      %367 = vmatpush1.bf16.msra.mxu0 0
      %368 = vmatprep.subr.bf16.mxu0 0
      %369 = vmatpush1.bf16.msra.mxu0 0
      %370 = vmatprep.subr.bf16.mxu0 0
      %371 = vmatpush1.bf16.msra.mxu0 0
      %372 = vmatprep.subr.bf16.mxu0 0
      %373 = vmatpush1.bf16.msra.mxu0 0
      %374 = vmatprep.subr.bf16.mxu0 0
      %375 = vmatpush1.bf16.msra.mxu0 0
      %376 = vmatprep.subr.bf16.mxu0 0
      %377 = vmatpush1.bf16.msra.mxu0 %v360
      %378 = vmatprep.subr.bf16.mxu0 0
      %379 = vmatpush2.bf16.msra.mxu0 0
      %380 = vmatprep.subr.bf16.mxu0 0
      %381 = vmatpush2.bf16.msra.mxu0 0
      %382 = vmatprep.subr.bf16.mxu0 0
      %383 = vmatpush2.bf16.msra.mxu0 0
      %384 = vmatprep.subr.bf16.mxu0 0
      %385 = vmatpush2.bf16.msra.mxu0 0
      %386 = vmatprep.subr.bf16.mxu0 0
      %387 = vmatpush2.bf16.msra.mxu0 0
      %388 = vmatprep.subr.bf16.mxu0 0
      %389 = vmatpush2.bf16.msra.mxu0 0
      %390 = vmatprep.subr.bf16.mxu0 0
      %391 = vmatpush2.bf16.msra.mxu0 0
      %392 = vmatprep.subr.bf16.mxu0 0
      %393 = vmatpush2.bf16.msra.mxu0 0
      %394 = vmatprep.mubr.bf16.mxu0 0
      %395 = vmatmul.mubr.bf16.gmra.mxu0 %v356
      %v396 = vpop.f32.mrf.mxu0
      %v397 = vadd.f32 0.0, %v396
      %v398 = vpop.f32.mrf.mxu0
      %v399 = vpop.f32.mrf.mxu0
      %v400 = vpop.f32.mrf.mxu0
      %401 = vdwg.mxu0
      %v402 = vadd.f32 %v351, %v397
      %vm403 = vcmask 261120
      %404 = vst.msk [vmem:[#allocation2] sm:$0xff] %vm403, %v402
      %p405 = scmp.eq.s32.totalorder %s24, 3
      // Predicated region
      $region49: #{transformer_forward.32} parent=43 // pred_check
        %p406 = pneg %p405
      $region50: #{transformer_forward.32} parent=43 // pred_check_branch
        %408 = sbr.rel (%p406) target = $region52
      $region51: #{transformer_forward.32} parent=43 // pred_region
        %v409 = vld [vmem:[%s336] sm:$0xf]
        %v410 = vunpack.c.l.bf16 %v409
        %v411 = vld [vmem:[#allocation2] sm:$0xff]
        %v412 = vadd.f32 %v410, %v411
        %v413 = vld [vmem:[%s2] sm:$0x1]
        %v415 = vlaneseq
        %v416 = vshrl.u32 %v415, 7
        %v417 = vsub.s32 0, %v416
        %v418 = vrot.slane %v413, %v417
        %v420 = vadd.f32 %v412, %v418
        %v421 = vsel %vm403, %v420, 0.0
        %422 = vadd.xlane.f32.xlu0 %v421
        %v423 = vpop.xlane.xlu0 %422
        %v424 = vrcp.pop 32.0
        %v425 = vmul.f32 %v423, %v424
        %v426 = vsub.f32 %v420, %v425
        %v427 = vmul.f32 %v426, %v426
        %v428 = vsel %vm403, %v427, 0.0
        %429 = vadd.xlane.f32.xlu0 %v428
        %v430 = vpop.xlane.xlu0 %429
        %v431 = vmul.f32 %v430, %v424
        %v432 = vadd.f32 %v431, 1e-05
        %v433 = vrsqrt.pop %v432
        %v434 = vmul.f32 %v426, %v433
        %v435 = vld [vmem:[%s4] sm:$0x1]
        %v437 = vlaneseq
        %v438 = vshrl.u32 %v437, 7
        %v439 = vsub.s32 0, %v438
        %v440 = vrot.slane %v435, %v439
        %v442 = vmul.f32 %v434, %v440
        %v443 = vld [vmem:[%s5] sm:$0x1]
        %v445 = vlaneseq
        %v446 = vshrl.u32 %v445, 7
        %v447 = vsub.s32 0, %v446
        %v448 = vrot.slane %v443, %v447
        %v450 = vadd.f32 %v442, %v448
        %v451 = vpack.c.bf16 %v450, %v450
        %vm452 = vcmask 257024
        %453 = vst.msk [vmem:[%s343] sm:$0xf] %vm452, %v451
      $region52: #{transformer_forward.32} parent=43 // pred_fallthru
        _
      %p454 = scmp.lt.s32.totalorder %s22, 1
      %s455 = scalar_select %p454, %s22, 1
      %p456 = scmp.lt.s32.totalorder %s23, 0
      %s457 = scalar_select %p456, %s23, 0
      %s458 = sadd.s32 %s457, %s455
      %s459 = smul.addr %s458, 4
      %s460 = scalar_lea.vmem %s6, %s459
      // Predicated region
      $region53: #{transformer_forward.32} parent=43 // pred_check
        %p461 = pneg %p203
      $region54: #{transformer_forward.32} parent=43 // pred_check_branch
        %463 = sbr.rel (%p461) target = $region56
      $region55: #{transformer_forward.32} parent=43 // pred_region
        _
      $region56: #{transformer_forward.32} parent=43 // pred_fallthru
        _
    $region44: #{transformer_forward.32} parent=5 // pred_fallthru
      _
    %p464 = scmp.le.s32.totalorder 2, %s12
    // Predicated region
    $region57: #{transformer_forward.32} parent=5 // pred_check
      %p465 = pneg %p464
    $region58: #{transformer_forward.32} parent=5 // pred_check_branch
      %467 = sbr.rel (%p465) target = $region60
    $region59: #{transformer_forward.32} parent=5 // pred_region
      %s468 = ssub.s32 %s12, 2
      // Predicated region
      $region61: #{transformer_forward.32} parent=59 // pred_check
        %p469 = pneg %p209
      $region62: #{transformer_forward.32} parent=59 // pred_check_branch
        %471 = sbr.rel (%p469) target = $region64
      $region63: #{transformer_forward.32} parent=59 // pred_region
        %p472 = scmp.lt.s32.totalorder %s25, 1
        %s473 = scalar_select %p472, %s25, 1
        %p474 = scmp.lt.s32.totalorder %s26, 0
        %s475 = scalar_select %p474, %s26, 0
        %s476 = sadd.s32 %s475, %s473
        %s477 = smul.addr %s476, 4
        %s478 = scalar_lea.vmem %s6, %s477
      $region64: #{transformer_forward.32} parent=59 // pred_fallthru
        _
    $region60: #{transformer_forward.32} parent=5 // pred_fallthru
      _
  $region6: #{transformer_forward.32} parent=0 // loop_footer
    %s16 = sadd.s32 1, %s12
  $region7: #{transformer_forward.32} parent=0 // loop_footer_branch
    %11 = sbr.rel target = $region3
  $region8: #{transformer_forward.32} parent=0 // loop_exit
    _

// kernel: transformer_forward.30
$region0: #{transformer_forward.30}
  #allocation0 [shape = 'u32[]', space=smem, size = 0x4, offset = 0x4, fixed_abs, tag = 'smem constant byte address 0x4 - core index']
  #allocation1 [shape = 'u32[144,128]{1,0:T(1,128)}', space=vmem, size = 0x12000, scoped, tag = 'internal scratch']
  %s0 = inlined_call_operand.vmem [shape: bf16[2,8,32], index: 0, kind: input, shape index: {}]
  %s1 = inlined_call_operand.vmem [shape: bf16[4,32,8], index: 1, kind: input, shape index: {}]
  %s2 = inlined_call_operand.vmem [shape: f32[4,1,8], index: 2, kind: input, shape index: {}]
  %s3 = inlined_call_operand.vmem [shape: bf16[4,32,8], index: 3, kind: input, shape index: {}]
  %s4 = inlined_call_operand.vmem [shape: f32[4,1,8], index: 4, kind: input, shape index: {}]
  %s5 = inlined_call_operand.vmem [shape: bf16[2,4,8,8], index: 5, kind: output, shape index: {0}]
  %s6 = inlined_call_operand.vmem [shape: bf16[2,4,8,8], index: 6, kind: output, shape index: {1}]
  %7 = xla_tuple %s5, %s6
  %s8 = sld [smem:[#allocation0]]
  $region61: #{transformer_forward.30} parent=0
    _
  %s10 = ssub.s32 1, %s8
  %s11 = scalar_select 0, %s10, %s8
  loop: start=0, step=1, limit=10
  $region2: #{transformer_forward.30} parent=0 // loop_pre_header
    _
  $region3: #{transformer_forward.30} parent=0 // loop_header
    %s13 = sphi 0, %s17
    %p14 = scmp.ge.s32.totalorder %s13, 10
    %s20 = sphi 0, %s39
    %s21 = sphi 0, %s35
    %s22 = sphi 0, %s31
    %s23 = sphi 0, %s20
    %s24 = sphi 0, %s21
    %s25 = sphi 0, %s22
    %s26 = sphi 0, %s23
    %s27 = sphi 0, %s24
    %s28 = sphi 0, %s25
    %s44 = sphi 0, %s46
    %s47 = sphi 0, %s44
    %s48 = sphi 0, %s47
    %s64 = sphi 0, %s48
    %s70 = sphi 0, %s72
    %s73 = sphi 0, %s70
    %s74 = sphi 0, %s73
    %s90 = sphi 0, %s74
    %s96 = sphi 0, %s98
    %s99 = sphi 0, %s96
    %s100 = sphi 0, %s99
    %s116 = sphi 0, %s100
    %s122 = sphi 0, %s124
    %s125 = sphi 0, %s122
    %s126 = sphi 0, %s125
    %s142 = sphi 0, %s126
    %s148 = sphi 0, %s150
    %s151 = sphi 0, %s148
    %s152 = sphi 0, %s151
    %s168 = sphi 0, %s152
    %s178 = sphi 0, %s180
    %s181 = sphi 0, %s178
    %s182 = sphi 0, %s181
    %s198 = sphi 0, %s182
    %s208 = sphi 0, %s210
    %s211 = sphi 0, %s208
    %s212 = sphi 0, %s211
    %s228 = sphi 0, %s212
  $region4: #{transformer_forward.30} parent=0 // loop_header_branch
    %16 = sbr.rel (%p14) target = $region8
  $region5: #{transformer_forward.30} parent=0 // loop_body
    %s18 = ssub.s32 %s13, 1
    %s19 = ssub.s32 %s13, 2
    %s29 = sadd.s32 1, %s22
    %p30 = scmp.ge.s32.totalorder %s29, 4
    %s31 = scalar_select %p30, 0, %s29
    %s32 = sadd.s32 1, %s21
    %s33 = scalar_select %p30, %s32, %s21
    %p34 = scmp.ge.s32.totalorder %s33, 1
    %s35 = scalar_select %p34, 0, %s33
    %s36 = sadd.s32 1, %s20
    %s37 = scalar_select %p34, %s36, %s20
    %p38 = scmp.ge.s32.totalorder %s37, 2
    %s39 = scalar_select %p38, 0, %s37
    %s40 = ssub.s32 %s20, %s39
    %s41 = ssub.s32 %s21, %s35
    %s42 = sor.u32 %s40, %s41
    %p43 = scmp.eq.s32.totalorder %s42, 0
    %s45 = sadd.s32 %s44, 1
    %s46 = scalar_select %p43, %s44, %s45
    %p49 = pneg %p43
    %p50 = scmp.eq.s32.totalorder %s13, 7
    %p51 = por %p49, %p50
    %p52 = scmp.ne.s32.totalorder %s44, %s47
    %p53 = scmp.eq.s32.totalorder %s13, 0
    %p54 = por %p52, %p53
    %p55 = scmp.ne.s32.totalorder %s44, %s47
    %p56 = scmp.eq.s32.totalorder %s18, 7
    %p57 = por %p55, %p56
    %p58 = scmp.ne.s32.totalorder %s47, %s48
    %p59 = scmp.eq.s32.totalorder %s18, 0
    %p60 = por %p58, %p59
    %p61 = scmp.ne.s32.totalorder %s47, %s48
    %p62 = scmp.eq.s32.totalorder %s19, 7
    %p63 = por %p61, %p62
    %p65 = scmp.ne.s32.totalorder %s48, %s64
    %p66 = scmp.eq.s32.totalorder %s19, 0
    %p67 = por %p65, %p66
    %s68 = ssub.s32 %s22, %s31
    %p69 = scmp.eq.s32.totalorder %s68, 0
    %s71 = sadd.s32 %s70, 1
    %s72 = scalar_select %p69, %s70, %s71
    %p75 = pneg %p69
    %p76 = scmp.eq.s32.totalorder %s13, 7
    %p77 = por %p75, %p76
    %p78 = scmp.ne.s32.totalorder %s70, %s73
    %p79 = scmp.eq.s32.totalorder %s13, 0
    %p80 = por %p78, %p79
    %p81 = scmp.ne.s32.totalorder %s70, %s73
    %p82 = scmp.eq.s32.totalorder %s18, 7
    %p83 = por %p81, %p82
    %p84 = scmp.ne.s32.totalorder %s73, %s74
    %p85 = scmp.eq.s32.totalorder %s18, 0
    %p86 = por %p84, %p85
    %p87 = scmp.ne.s32.totalorder %s73, %s74
    %p88 = scmp.eq.s32.totalorder %s19, 7
    %p89 = por %p87, %p88
    %p91 = scmp.ne.s32.totalorder %s74, %s90
    %p92 = scmp.eq.s32.totalorder %s19, 0
    %p93 = por %p91, %p92
    %s94 = ssub.s32 %s22, %s31
    %p95 = scmp.eq.s32.totalorder %s94, 0
    %s97 = sadd.s32 %s96, 1
    %s98 = scalar_select %p95, %s96, %s97
    %p101 = pneg %p95
    %p102 = scmp.eq.s32.totalorder %s13, 7
    %p103 = por %p101, %p102
    %p104 = scmp.ne.s32.totalorder %s96, %s99
    %p105 = scmp.eq.s32.totalorder %s13, 0
    %p106 = por %p104, %p105
    %p107 = scmp.ne.s32.totalorder %s96, %s99
    %p108 = scmp.eq.s32.totalorder %s18, 7
    %p109 = por %p107, %p108
    %p110 = scmp.ne.s32.totalorder %s99, %s100
    %p111 = scmp.eq.s32.totalorder %s18, 0
    %p112 = por %p110, %p111
    %p113 = scmp.ne.s32.totalorder %s99, %s100
    %p114 = scmp.eq.s32.totalorder %s19, 7
    %p115 = por %p113, %p114
    %p117 = scmp.ne.s32.totalorder %s100, %s116
    %p118 = scmp.eq.s32.totalorder %s19, 0
    %p119 = por %p117, %p118
    %s120 = ssub.s32 %s22, %s31
    %p121 = scmp.eq.s32.totalorder %s120, 0
    %s123 = sadd.s32 %s122, 1
    %s124 = scalar_select %p121, %s122, %s123
    %p127 = pneg %p121
    %p128 = scmp.eq.s32.totalorder %s13, 7
    %p129 = por %p127, %p128
    %p130 = scmp.ne.s32.totalorder %s122, %s125
    %p131 = scmp.eq.s32.totalorder %s13, 0
    %p132 = por %p130, %p131
    %p133 = scmp.ne.s32.totalorder %s122, %s125
    %p134 = scmp.eq.s32.totalorder %s18, 7
    %p135 = por %p133, %p134
    %p136 = scmp.ne.s32.totalorder %s125, %s126
    %p137 = scmp.eq.s32.totalorder %s18, 0
    %p138 = por %p136, %p137
    %p139 = scmp.ne.s32.totalorder %s125, %s126
    %p140 = scmp.eq.s32.totalorder %s19, 7
    %p141 = por %p139, %p140
    %p143 = scmp.ne.s32.totalorder %s126, %s142
    %p144 = scmp.eq.s32.totalorder %s19, 0
    %p145 = por %p143, %p144
    %s146 = ssub.s32 %s22, %s31
    %p147 = scmp.eq.s32.totalorder %s146, 0
    %s149 = sadd.s32 %s148, 1
    %s150 = scalar_select %p147, %s148, %s149
    %p153 = pneg %p147
    %p154 = scmp.eq.s32.totalorder %s13, 7
    %p155 = por %p153, %p154
    %p156 = scmp.ne.s32.totalorder %s148, %s151
    %p157 = scmp.eq.s32.totalorder %s13, 0
    %p158 = por %p156, %p157
    %p159 = scmp.ne.s32.totalorder %s148, %s151
    %p160 = scmp.eq.s32.totalorder %s18, 7
    %p161 = por %p159, %p160
    %p162 = scmp.ne.s32.totalorder %s151, %s152
    %p163 = scmp.eq.s32.totalorder %s18, 0
    %p164 = por %p162, %p163
    %p165 = scmp.ne.s32.totalorder %s151, %s152
    %p166 = scmp.eq.s32.totalorder %s19, 7
    %p167 = por %p165, %p166
    %p169 = scmp.ne.s32.totalorder %s152, %s168
    %p170 = scmp.eq.s32.totalorder %s19, 0
    %p171 = por %p169, %p170
    %s172 = ssub.s32 %s20, %s39
    %s173 = ssub.s32 %s22, %s31
    %s174 = sor.u32 %s172, %s173
    %s175 = ssub.s32 %s21, %s35
    %s176 = sor.u32 %s174, %s175
    %p177 = scmp.eq.s32.totalorder %s176, 0
    %s179 = sadd.s32 %s178, 1
    %s180 = scalar_select %p177, %s178, %s179
    %p183 = pneg %p177
    %p184 = scmp.eq.s32.totalorder %s13, 7
    %p185 = por %p183, %p184
    %p186 = scmp.ne.s32.totalorder %s178, %s181
    %p187 = scmp.eq.s32.totalorder %s13, 0
    %p188 = por %p186, %p187
    %p189 = scmp.ne.s32.totalorder %s178, %s181
    %p190 = scmp.eq.s32.totalorder %s18, 7
    %p191 = por %p189, %p190
    %p192 = scmp.ne.s32.totalorder %s181, %s182
    %p193 = scmp.eq.s32.totalorder %s18, 0
    %p194 = por %p192, %p193
    %p195 = scmp.ne.s32.totalorder %s181, %s182
    %p196 = scmp.eq.s32.totalorder %s19, 7
    %p197 = por %p195, %p196
    %p199 = scmp.ne.s32.totalorder %s182, %s198
    %p200 = scmp.eq.s32.totalorder %s19, 0
    %p201 = por %p199, %p200
    %s202 = ssub.s32 %s20, %s39
    %s203 = ssub.s32 %s22, %s31
    %s204 = sor.u32 %s202, %s203
    %s205 = ssub.s32 %s21, %s35
    %s206 = sor.u32 %s204, %s205
    %p207 = scmp.eq.s32.totalorder %s206, 0
    %s209 = sadd.s32 %s208, 1
    %s210 = scalar_select %p207, %s208, %s209
    %p213 = pneg %p207
    %p214 = scmp.eq.s32.totalorder %s13, 7
    %p215 = por %p213, %p214
    %p216 = scmp.ne.s32.totalorder %s208, %s211
    %p217 = scmp.eq.s32.totalorder %s13, 0
    %p218 = por %p216, %p217
    %p219 = scmp.ne.s32.totalorder %s208, %s211
    %p220 = scmp.eq.s32.totalorder %s18, 7
    %p221 = por %p219, %p220
    %p222 = scmp.ne.s32.totalorder %s211, %s212
    %p223 = scmp.eq.s32.totalorder %s18, 0
    %p224 = por %p222, %p223
    %p225 = scmp.ne.s32.totalorder %s211, %s212
    %p226 = scmp.eq.s32.totalorder %s19, 7
    %p227 = por %p225, %p226
    %p229 = scmp.ne.s32.totalorder %s212, %s228
    %p230 = scmp.eq.s32.totalorder %s19, 0
    %p231 = por %p229, %p230
    %p232 = scmp.le.s32.totalorder 1, %s13
    %p233 = scmp.lt.s32.totalorder %s13, 9
    %p234 = pnand %p232, %p233
    %p235 = pneg %p234
    // Predicated region
    $region9: #{transformer_forward.30} parent=5 // pred_check
      _
    $region10: #{transformer_forward.30} parent=5 // pred_check_branch
      %237 = sbr.rel (%p234) target = $region12
    $region11: #{transformer_forward.30} parent=5 // pred_region
      %s238 = ssub.s32 %s13, 1
    $region12: #{transformer_forward.30} parent=5 // pred_fallthru
      _
    %p239 = scmp.lt.s32.totalorder %s13, 8
    // Predicated region
    $region13: #{transformer_forward.30} parent=5 // pred_check
      %p240 = pneg %p239
    $region14: #{transformer_forward.30} parent=5 // pred_check_branch
      %242 = sbr.rel (%p240) target = $region16
    $region15: #{transformer_forward.30} parent=5 // pred_region
      // Predicated region
      $region17: #{transformer_forward.30} parent=15 // pred_check
        %p243 = pneg %p54
      $region18: #{transformer_forward.30} parent=15 // pred_check_branch
        %245 = sbr.rel (%p243) target = $region20
      $region19: #{transformer_forward.30} parent=15 // pred_region
        %p246 = scmp.lt.s32.totalorder %s20, 1
        %s247 = scalar_select %p246, %s20, 1
        %p248 = scmp.lt.s32.totalorder %s21, 0
        %s249 = scalar_select %p248, %s21, 0
        %s250 = sadd.s32 %s249, %s247
        %s251 = smul.addr %s250, 4
        %s252 = scalar_lea.vmem %s0, %s251
      $region20: #{transformer_forward.30} parent=15 // pred_fallthru
        _
      // Predicated region
      $region21: #{transformer_forward.30} parent=15 // pred_check
        %p253 = pneg %p80
      $region22: #{transformer_forward.30} parent=15 // pred_check_branch
        %255 = sbr.rel (%p253) target = $region24
      $region23: #{transformer_forward.30} parent=15 // pred_region
        %p256 = scmp.lt.s32.totalorder %s22, 3
        %s257 = scalar_select %p256, %s22, 3
        %s258 = smul.addr %s257, 4
        %s259 = smul.addr %s258, 4
        %s260 = scalar_lea.vmem %s1, %s259
      $region24: #{transformer_forward.30} parent=15 // pred_fallthru
        _
      // Predicated region
      $region25: #{transformer_forward.30} parent=15 // pred_check
        %p261 = pneg %p106
      $region26: #{transformer_forward.30} parent=15 // pred_check_branch
        %263 = sbr.rel (%p261) target = $region28
      $region27: #{transformer_forward.30} parent=15 // pred_region
        %p264 = scmp.lt.s32.totalorder %s22, 3
        %s265 = scalar_select %p264, %s22, 3
        %s266 = scalar_lea.vmem %s2, %s265
      $region28: #{transformer_forward.30} parent=15 // pred_fallthru
        _
      // Predicated region
      $region29: #{transformer_forward.30} parent=15 // pred_check
        %p267 = pneg %p132
      $region30: #{transformer_forward.30} parent=15 // pred_check_branch
        %269 = sbr.rel (%p267) target = $region32
      $region31: #{transformer_forward.30} parent=15 // pred_region
        %p270 = scmp.lt.s32.totalorder %s22, 3
        %s271 = scalar_select %p270, %s22, 3
        %s272 = smul.addr %s271, 4
        %s273 = smul.addr %s272, 4
        %s274 = scalar_lea.vmem %s3, %s273
      $region32: #{transformer_forward.30} parent=15 // pred_fallthru
        _
      // Predicated region
      $region33: #{transformer_forward.30} parent=15 // pred_check
        %p275 = pneg %p158
      $region34: #{transformer_forward.30} parent=15 // pred_check_branch
        %277 = sbr.rel (%p275) target = $region36
      $region35: #{transformer_forward.30} parent=15 // pred_region
        %p278 = scmp.lt.s32.totalorder %s22, 3
        %s279 = scalar_select %p278, %s22, 3
        %s280 = scalar_lea.vmem %s4, %s279
      $region36: #{transformer_forward.30} parent=15 // pred_fallthru
        _
    $region16: #{transformer_forward.30} parent=5 // pred_fallthru
      _
    %p281 = scmp.le.s32.totalorder 1, %s13
    %p282 = scmp.lt.s32.totalorder %s13, 9
    %p283 = pnand %p281, %p282
    %p284 = pneg %p283
    // Predicated region
    $region37: #{transformer_forward.30} parent=5 // pred_check
      _
    $region38: #{transformer_forward.30} parent=5 // pred_check_branch
      %286 = sbr.rel (%p283) target = $region40
    $region39: #{transformer_forward.30} parent=5 // pred_region
      %s287 = ssub.s32 %s13, 1
      %p288 = scmp.lt.s32.totalorder %s23, 1
      %s289 = scalar_select %p288, %s23, 1
      %p290 = scmp.lt.s32.totalorder %s24, 0
      %s291 = scalar_select %p290, %s24, 0
      %s292 = sadd.s32 %s291, %s289
      %s293 = smul.addr %s292, 4
      %s294 = scalar_lea.vmem %s0, %s293
      %p295 = pneg %p60
      %p296 = pneg %p57
      %p297 = scmp.lt.s32.totalorder %s25, 3
      %s298 = scalar_select %p297, %s25, 3
      %s299 = smul.addr %s298, 4
      %s300 = smul.addr %s299, 4
      %s301 = scalar_lea.vmem %s1, %s300
      %p302 = pneg %p86
      %p303 = pneg %p83
      %p304 = scmp.lt.s32.totalorder %s25, 3
      %s305 = scalar_select %p304, %s25, 3
      %s306 = scalar_lea.vmem %s2, %s305
      %p307 = pneg %p112
      %p308 = pneg %p109
      %p309 = scmp.lt.s32.totalorder %s25, 3
      %s310 = scalar_select %p309, %s25, 3
      %s311 = smul.addr %s310, 4
      %s312 = smul.addr %s311, 4
      %s313 = scalar_lea.vmem %s3, %s312
      %p314 = pneg %p138
      %p315 = pneg %p135
      %p316 = scmp.lt.s32.totalorder %s25, 3
      %s317 = scalar_select %p316, %s25, 3
      %s318 = scalar_lea.vmem %s4, %s317
      %p319 = pneg %p164
      %p320 = pneg %p161
      %p321 = pneg %p194
      %p322 = pneg %p191
      %p323 = scmp.lt.s32.totalorder %s23, 1
      %s324 = scalar_select %p323, %s23, 1
      %p325 = scmp.lt.s32.totalorder %s25, 3
      %s326 = scalar_select %p325, %s25, 3
      %p327 = scmp.lt.s32.totalorder %s24, 0
      %s328 = scalar_select %p327, %s24, 0
      %s329 = sadd.s32 %s328, %s326
      %s330 = smul.addr %s324, 4
      %s331 = sadd.s32 %s329, %s330
      %s332 = smul.addr %s331, 4
      %s333 = scalar_lea.vmem %s5, %s332
      %p334 = pneg %p224
      %p335 = pneg %p221
      %p336 = scmp.lt.s32.totalorder %s23, 1
      %s337 = scalar_select %p336, %s23, 1
      %p338 = scmp.lt.s32.totalorder %s25, 3
      %s339 = scalar_select %p338, %s25, 3
      %p340 = scmp.lt.s32.totalorder %s24, 0
      %s341 = scalar_select %p340, %s24, 0
      %s342 = sadd.s32 %s341, %s339
      %s343 = smul.addr %s337, 4
      %s344 = sadd.s32 %s342, %s343
      %s345 = smul.addr %s344, 4
      %s346 = scalar_lea.vmem %s6, %s345
      %p347 = scmp.lt.s32.totalorder %s23, 1
      %s348 = scalar_select %p347, %s23, 1
      %p349 = scmp.lt.s32.totalorder %s24, 0
      %s350 = scalar_select %p349, %s24, 0
      %s351 = sadd.s32 %s350, %s348
      %s352 = smul.addr %s351, 4
      %s353 = scalar_lea.vmem %s0, %s352
      %p354 = scmp.lt.s32.totalorder %s25, 3
      %s355 = scalar_select %p354, %s25, 3
      %s356 = smul.addr %s355, 4
      %s357 = smul.addr %s356, 4
      %s358 = scalar_lea.vmem %s1, %s357
      %p359 = scmp.lt.s32.totalorder %s25, 3
      %s360 = scalar_select %p359, %s25, 3
      %s361 = scalar_lea.vmem %s2, %s360
      %p362 = scmp.lt.s32.totalorder %s25, 3
      %s363 = scalar_select %p362, %s25, 3
      %s364 = smul.addr %s363, 4
      %s365 = smul.addr %s364, 4
      %s366 = scalar_lea.vmem %s3, %s365
      %p367 = scmp.lt.s32.totalorder %s25, 3
      %s368 = scalar_select %p367, %s25, 3
      %s369 = scalar_lea.vmem %s4, %s368
      %p370 = scmp.lt.s32.totalorder %s23, 1
      %s371 = scalar_select %p370, %s23, 1
      %p372 = scmp.lt.s32.totalorder %s25, 3
      %s373 = scalar_select %p372, %s25, 3
      %p374 = scmp.lt.s32.totalorder %s24, 0
      %s375 = scalar_select %p374, %s24, 0
      %s376 = sadd.s32 %s375, %s373
      %s377 = smul.addr %s371, 4
      %s378 = sadd.s32 %s376, %s377
      %s379 = smul.addr %s378, 4
      %s380 = scalar_lea.vmem %s5, %s379
      %p381 = scmp.lt.s32.totalorder %s23, 1
      %s382 = scalar_select %p381, %s23, 1
      %p383 = scmp.lt.s32.totalorder %s25, 3
      %s384 = scalar_select %p383, %s25, 3
      %p385 = scmp.lt.s32.totalorder %s24, 0
      %s386 = scalar_select %p385, %s24, 0
      %s387 = sadd.s32 %s386, %s384
      %s388 = smul.addr %s382, 4
      %s389 = sadd.s32 %s387, %s388
      %s390 = smul.addr %s389, 4
      %s391 = scalar_lea.vmem %s6, %s390
      %v393 = vld [vmem:[%s353] sm:$0xf]
      %v394 = vld [vmem:[%s358] sm:$0xf]
      %v395 = vld [vmem:[%s358 + $0x4] sm:$0xf]
      %v396 = vld [vmem:[%s358 + $0x8] sm:$0xf]
      %v397 = vld [vmem:[%s358 + $0xc] sm:$0xf]
      %v398 = vld [vmem:[%s361] sm:$0x1]
      %v400 = vlaneseq
      %v401 = vshrl.u32 %v400, 7
      %v402 = vsub.s32 0, %v401
      %v403 = vrot.slane %v398, %v402
      %v409 = vunpack.c.l.b16 %v394
      %v410 = vunpack.c.l.b16 %v395
      %v411 = vunpack.c.l.b16 %v396
      %v412 = vunpack.c.l.b16 %v397
      %v413 = vpack.c.b16 %v410, %v409
      %v414 = vpack.c.b16 %v412, %v411
      %vm417 = vcmask 261120
      %v419 = vsel %vm417, %v393, 0
      %421 = vmatprep.subr.bf16.mxu0 0
      %422 = vmatpush1.bf16.msra.mxu0 0
      %423 = vmatprep.subr.bf16.mxu0 0
      %424 = vmatpush1.bf16.msra.mxu0 0
      %425 = vmatprep.subr.bf16.mxu0 0
      %426 = vmatpush1.bf16.msra.mxu0 0
      %427 = vmatprep.subr.bf16.mxu0 0
      %428 = vmatpush1.bf16.msra.mxu0 0
      %429 = vmatprep.subr.bf16.mxu0 0
      %430 = vmatpush1.bf16.msra.mxu0 0
      %431 = vmatprep.subr.bf16.mxu0 0
      %432 = vmatpush1.bf16.msra.mxu0 0
      %433 = vmatprep.subr.bf16.mxu0 0
      %434 = vmatpush1.bf16.msra.mxu0 %v414
      %435 = vmatprep.subr.bf16.mxu0 0
      %436 = vmatpush1.bf16.msra.mxu0 %v413
      %437 = vmatprep.subr.bf16.mxu0 0
      %438 = vmatpush2.bf16.msra.mxu0 0
      %439 = vmatprep.subr.bf16.mxu0 0
      %440 = vmatpush2.bf16.msra.mxu0 0
      %441 = vmatprep.subr.bf16.mxu0 0
      %442 = vmatpush2.bf16.msra.mxu0 0
      %443 = vmatprep.subr.bf16.mxu0 0
      %444 = vmatpush2.bf16.msra.mxu0 0
      %445 = vmatprep.subr.bf16.mxu0 0
      %446 = vmatpush2.bf16.msra.mxu0 0
      %447 = vmatprep.subr.bf16.mxu0 0
      %448 = vmatpush2.bf16.msra.mxu0 0
      %449 = vmatprep.subr.bf16.mxu0 0
      %450 = vmatpush2.bf16.msra.mxu0 0
      %451 = vmatprep.subr.bf16.mxu0 0
      %452 = vmatpush2.bf16.msra.mxu0 0
      %453 = vmatprep.mubr.bf16.mxu0 0
      %454 = vmatmul.mubr.bf16.gmra.mxu0 %v419
      %v455 = vpop.f32.mrf.mxu0
      %v456 = vadd.f32 %v403, %v455
      %v457 = vpop.f32.mrf.mxu0
      %v458 = vpop.f32.mrf.mxu0
      %v459 = vpop.f32.mrf.mxu0
      %460 = vdwg.mxu0
      %v461 = vpack.c.bf16 %v456, %v456
      %vm462 = vcmask 60416
      %463 = vst.msk [vmem:[%s380] sm:$0xf] %vm462, %v461
      %v464 = vld [vmem:[%s366] sm:$0xf]
      %v465 = vld [vmem:[%s366 + $0x4] sm:$0xf]
      %v466 = vld [vmem:[%s366 + $0x8] sm:$0xf]
      %v467 = vld [vmem:[%s366 + $0xc] sm:$0xf]
      %v468 = vld [vmem:[%s369] sm:$0x1]
      %v470 = vlaneseq
      %v471 = vshrl.u32 %v470, 7
      %v472 = vsub.s32 0, %v471
      %v473 = vrot.slane %v468, %v472
      %v479 = vunpack.c.l.b16 %v464
      %v480 = vunpack.c.l.b16 %v465
      %v481 = vunpack.c.l.b16 %v466
      %v482 = vunpack.c.l.b16 %v467
      %v483 = vpack.c.b16 %v480, %v479
      %v484 = vpack.c.b16 %v482, %v481
      %487 = vmatprep.subr.bf16.mxu0 0
      %488 = vmatpush1.bf16.msra.mxu0 0
      %489 = vmatprep.subr.bf16.mxu0 0
      %490 = vmatpush1.bf16.msra.mxu0 0
      %491 = vmatprep.subr.bf16.mxu0 0
      %492 = vmatpush1.bf16.msra.mxu0 0
      %493 = vmatprep.subr.bf16.mxu0 0
      %494 = vmatpush1.bf16.msra.mxu0 0
      %495 = vmatprep.subr.bf16.mxu0 0
      %496 = vmatpush1.bf16.msra.mxu0 0
      %497 = vmatprep.subr.bf16.mxu0 0
      %498 = vmatpush1.bf16.msra.mxu0 0
      %499 = vmatprep.subr.bf16.mxu0 0
      %500 = vmatpush1.bf16.msra.mxu0 %v484
      %501 = vmatprep.subr.bf16.mxu0 0
      %502 = vmatpush1.bf16.msra.mxu0 %v483
      %503 = vmatprep.subr.bf16.mxu0 0
      %504 = vmatpush2.bf16.msra.mxu0 0
      %505 = vmatprep.subr.bf16.mxu0 0
      %506 = vmatpush2.bf16.msra.mxu0 0
      %507 = vmatprep.subr.bf16.mxu0 0
      %508 = vmatpush2.bf16.msra.mxu0 0
      %509 = vmatprep.subr.bf16.mxu0 0
      %510 = vmatpush2.bf16.msra.mxu0 0
      %511 = vmatprep.subr.bf16.mxu0 0
      %512 = vmatpush2.bf16.msra.mxu0 0
      %513 = vmatprep.subr.bf16.mxu0 0
      %514 = vmatpush2.bf16.msra.mxu0 0
      %515 = vmatprep.subr.bf16.mxu0 0
      %516 = vmatpush2.bf16.msra.mxu0 0
      %517 = vmatprep.subr.bf16.mxu0 0
      %518 = vmatpush2.bf16.msra.mxu0 0
      %519 = vmatprep.mubr.bf16.mxu0 0
      %520 = vmatmul.mubr.bf16.gmra.mxu0 %v419
      %v521 = vpop.f32.mrf.mxu0
      %v522 = vadd.f32 %v473, %v521
      %v523 = vpop.f32.mrf.mxu0
      %v524 = vpop.f32.mrf.mxu0
      %v525 = vpop.f32.mrf.mxu0
      %526 = vdwg.mxu0
      %v527 = vpack.c.bf16 %v522, %v522
      %528 = vst.msk [vmem:[%s391] sm:$0xf] %vm462, %v527
      %p529 = scmp.lt.s32.totalorder %s23, 1
      %s530 = scalar_select %p529, %s23, 1
      %p531 = scmp.lt.s32.totalorder %s25, 3
      %s532 = scalar_select %p531, %s25, 3
      %p533 = scmp.lt.s32.totalorder %s24, 0
      %s534 = scalar_select %p533, %s24, 0
      %s535 = sadd.s32 %s534, %s532
      %s536 = smul.addr %s530, 4
      %s537 = sadd.s32 %s535, %s536
      %s538 = smul.addr %s537, 4
      %s539 = scalar_lea.vmem %s5, %s538
      %p540 = scmp.lt.s32.totalorder %s23, 1
      %s541 = scalar_select %p540, %s23, 1
      %p542 = scmp.lt.s32.totalorder %s25, 3
      %s543 = scalar_select %p542, %s25, 3
      %p544 = scmp.lt.s32.totalorder %s24, 0
      %s545 = scalar_select %p544, %s24, 0
      %s546 = sadd.s32 %s545, %s543
      %s547 = smul.addr %s541, 4
      %s548 = sadd.s32 %s546, %s547
      %s549 = smul.addr %s548, 4
      %s550 = scalar_lea.vmem %s6, %s549
      // Predicated region
      $region41: #{transformer_forward.30} parent=39 // pred_check
        %p551 = pneg %p191
      $region42: #{transformer_forward.30} parent=39 // pred_check_branch
        %553 = sbr.rel (%p551) target = $region44
      $region43: #{transformer_forward.30} parent=39 // pred_region
        _
      $region44: #{transformer_forward.30} parent=39 // pred_fallthru
        _
      // Predicated region
      $region45: #{transformer_forward.30} parent=39 // pred_check
        %p554 = pneg %p221
      $region46: #{transformer_forward.30} parent=39 // pred_check_branch
        %556 = sbr.rel (%p554) target = $region48
      $region47: #{transformer_forward.30} parent=39 // pred_region
        _
      $region48: #{transformer_forward.30} parent=39 // pred_fallthru
        _
    $region40: #{transformer_forward.30} parent=5 // pred_fallthru
      _
    %p557 = scmp.le.s32.totalorder 2, %s13
    // Predicated region
    $region49: #{transformer_forward.30} parent=5 // pred_check
      %p558 = pneg %p557
    $region50: #{transformer_forward.30} parent=5 // pred_check_branch
      %560 = sbr.rel (%p558) target = $region52
    $region51: #{transformer_forward.30} parent=5 // pred_region
      %s561 = ssub.s32 %s13, 2
      // Predicated region
      $region53: #{transformer_forward.30} parent=51 // pred_check
        %p562 = pneg %p197
      $region54: #{transformer_forward.30} parent=51 // pred_check_branch
        %564 = sbr.rel (%p562) target = $region56
      $region55: #{transformer_forward.30} parent=51 // pred_region
        %p565 = scmp.lt.s32.totalorder %s26, 1
        %s566 = scalar_select %p565, %s26, 1
        %p567 = scmp.lt.s32.totalorder %s28, 3
        %s568 = scalar_select %p567, %s28, 3
        %p569 = scmp.lt.s32.totalorder %s27, 0
        %s570 = scalar_select %p569, %s27, 0
        %s571 = sadd.s32 %s570, %s568
        %s572 = smul.addr %s566, 4
        %s573 = sadd.s32 %s571, %s572
        %s574 = smul.addr %s573, 4
        %s575 = scalar_lea.vmem %s5, %s574
      $region56: #{transformer_forward.30} parent=51 // pred_fallthru
        _
      // Predicated region
      $region57: #{transformer_forward.30} parent=51 // pred_check
        %p576 = pneg %p227
      $region58: #{transformer_forward.30} parent=51 // pred_check_branch
        %578 = sbr.rel (%p576) target = $region60
      $region59: #{transformer_forward.30} parent=51 // pred_region
        %p579 = scmp.lt.s32.totalorder %s26, 1
        %s580 = scalar_select %p579, %s26, 1
        %p581 = scmp.lt.s32.totalorder %s28, 3
        %s582 = scalar_select %p581, %s28, 3
        %p583 = scmp.lt.s32.totalorder %s27, 0
        %s584 = scalar_select %p583, %s27, 0
        %s585 = sadd.s32 %s584, %s582
        %s586 = smul.addr %s580, 4
        %s587 = sadd.s32 %s585, %s586
        %s588 = smul.addr %s587, 4
        %s589 = scalar_lea.vmem %s6, %s588
      $region60: #{transformer_forward.30} parent=51 // pred_fallthru
        _
    $region52: #{transformer_forward.30} parent=5 // pred_fallthru
      _
  $region6: #{transformer_forward.30} parent=0 // loop_footer
    %s17 = sadd.s32 1, %s13
  $region7: #{transformer_forward.30} parent=0 // loop_footer_branch
    %12 = sbr.rel target = $region3
  $region8: #{transformer_forward.30} parent=0 // loop_exit
    _

// kernel: transformer_forward.29
$region0: #{transformer_forward.29}
  #allocation0 [shape = 'u32[]', space=smem, size = 0x4, offset = 0x4, fixed_abs, tag = 'smem constant byte address 0x4 - core index']
  #allocation1 [shape = 'u32[144,128]{1,0:T(1,128)}', space=vmem, size = 0x12000, scoped, tag = 'internal scratch']
  %s0 = inlined_call_operand.vmem [shape: bf16[2,8,32], index: 0, kind: input, shape index: {}]
  %s1 = inlined_call_operand.vmem [shape: bf16[4,32,8], index: 1, kind: input, shape index: {}]
  %s2 = inlined_call_operand.vmem [shape: f32[4,1,8], index: 2, kind: input, shape index: {}]
  %s3 = inlined_call_operand.vmem [shape: bf16[2,4,8,8], index: 3, kind: output, shape index: {}]
  %s4 = sld [smem:[#allocation0]]
  $region45: #{transformer_forward.29} parent=0
    _
  %s6 = ssub.s32 1, %s4
  %s7 = scalar_select 0, %s6, %s4
  loop: start=0, step=1, limit=10
  $region2: #{transformer_forward.29} parent=0 // loop_pre_header
    _
  $region3: #{transformer_forward.29} parent=0 // loop_header
    %s9 = sphi 0, %s13
    %p10 = scmp.ge.s32.totalorder %s9, 10
    %s16 = sphi 0, %s35
    %s17 = sphi 0, %s31
    %s18 = sphi 0, %s27
    %s19 = sphi 0, %s16
    %s20 = sphi 0, %s17
    %s21 = sphi 0, %s18
    %s22 = sphi 0, %s19
    %s23 = sphi 0, %s20
    %s24 = sphi 0, %s21
    %s40 = sphi 0, %s42
    %s43 = sphi 0, %s40
    %s44 = sphi 0, %s43
    %s60 = sphi 0, %s44
    %s66 = sphi 0, %s68
    %s69 = sphi 0, %s66
    %s70 = sphi 0, %s69
    %s86 = sphi 0, %s70
    %s92 = sphi 0, %s94
    %s95 = sphi 0, %s92
    %s96 = sphi 0, %s95
    %s112 = sphi 0, %s96
    %s122 = sphi 0, %s124
    %s125 = sphi 0, %s122
    %s126 = sphi 0, %s125
    %s142 = sphi 0, %s126
  $region4: #{transformer_forward.29} parent=0 // loop_header_branch
    %12 = sbr.rel (%p10) target = $region8
  $region5: #{transformer_forward.29} parent=0 // loop_body
    %s14 = ssub.s32 %s9, 1
    %s15 = ssub.s32 %s9, 2
    %s25 = sadd.s32 1, %s18
    %p26 = scmp.ge.s32.totalorder %s25, 4
    %s27 = scalar_select %p26, 0, %s25
    %s28 = sadd.s32 1, %s17
    %s29 = scalar_select %p26, %s28, %s17
    %p30 = scmp.ge.s32.totalorder %s29, 1
    %s31 = scalar_select %p30, 0, %s29
    %s32 = sadd.s32 1, %s16
    %s33 = scalar_select %p30, %s32, %s16
    %p34 = scmp.ge.s32.totalorder %s33, 2
    %s35 = scalar_select %p34, 0, %s33
    %s36 = ssub.s32 %s16, %s35
    %s37 = ssub.s32 %s17, %s31
    %s38 = sor.u32 %s36, %s37
    %p39 = scmp.eq.s32.totalorder %s38, 0
    %s41 = sadd.s32 %s40, 1
    %s42 = scalar_select %p39, %s40, %s41
    %p45 = pneg %p39
    %p46 = scmp.eq.s32.totalorder %s9, 7
    %p47 = por %p45, %p46
    %p48 = scmp.ne.s32.totalorder %s40, %s43
    %p49 = scmp.eq.s32.totalorder %s9, 0
    %p50 = por %p48, %p49
    %p51 = scmp.ne.s32.totalorder %s40, %s43
    %p52 = scmp.eq.s32.totalorder %s14, 7
    %p53 = por %p51, %p52
    %p54 = scmp.ne.s32.totalorder %s43, %s44
    %p55 = scmp.eq.s32.totalorder %s14, 0
    %p56 = por %p54, %p55
    %p57 = scmp.ne.s32.totalorder %s43, %s44
    %p58 = scmp.eq.s32.totalorder %s15, 7
    %p59 = por %p57, %p58
    %p61 = scmp.ne.s32.totalorder %s44, %s60
    %p62 = scmp.eq.s32.totalorder %s15, 0
    %p63 = por %p61, %p62
    %s64 = ssub.s32 %s18, %s27
    %p65 = scmp.eq.s32.totalorder %s64, 0
    %s67 = sadd.s32 %s66, 1
    %s68 = scalar_select %p65, %s66, %s67
    %p71 = pneg %p65
    %p72 = scmp.eq.s32.totalorder %s9, 7
    %p73 = por %p71, %p72
    %p74 = scmp.ne.s32.totalorder %s66, %s69
    %p75 = scmp.eq.s32.totalorder %s9, 0
    %p76 = por %p74, %p75
    %p77 = scmp.ne.s32.totalorder %s66, %s69
    %p78 = scmp.eq.s32.totalorder %s14, 7
    %p79 = por %p77, %p78
    %p80 = scmp.ne.s32.totalorder %s69, %s70
    %p81 = scmp.eq.s32.totalorder %s14, 0
    %p82 = por %p80, %p81
    %p83 = scmp.ne.s32.totalorder %s69, %s70
    %p84 = scmp.eq.s32.totalorder %s15, 7
    %p85 = por %p83, %p84
    %p87 = scmp.ne.s32.totalorder %s70, %s86
    %p88 = scmp.eq.s32.totalorder %s15, 0
    %p89 = por %p87, %p88
    %s90 = ssub.s32 %s18, %s27
    %p91 = scmp.eq.s32.totalorder %s90, 0
    %s93 = sadd.s32 %s92, 1
    %s94 = scalar_select %p91, %s92, %s93
    %p97 = pneg %p91
    %p98 = scmp.eq.s32.totalorder %s9, 7
    %p99 = por %p97, %p98
    %p100 = scmp.ne.s32.totalorder %s92, %s95
    %p101 = scmp.eq.s32.totalorder %s9, 0
    %p102 = por %p100, %p101
    %p103 = scmp.ne.s32.totalorder %s92, %s95
    %p104 = scmp.eq.s32.totalorder %s14, 7
    %p105 = por %p103, %p104
    %p106 = scmp.ne.s32.totalorder %s95, %s96
    %p107 = scmp.eq.s32.totalorder %s14, 0
    %p108 = por %p106, %p107
    %p109 = scmp.ne.s32.totalorder %s95, %s96
    %p110 = scmp.eq.s32.totalorder %s15, 7
    %p111 = por %p109, %p110
    %p113 = scmp.ne.s32.totalorder %s96, %s112
    %p114 = scmp.eq.s32.totalorder %s15, 0
    %p115 = por %p113, %p114
    %s116 = ssub.s32 %s16, %s35
    %s117 = ssub.s32 %s18, %s27
    %s118 = sor.u32 %s116, %s117
    %s119 = ssub.s32 %s17, %s31
    %s120 = sor.u32 %s118, %s119
    %p121 = scmp.eq.s32.totalorder %s120, 0
    %s123 = sadd.s32 %s122, 1
    %s124 = scalar_select %p121, %s122, %s123
    %p127 = pneg %p121
    %p128 = scmp.eq.s32.totalorder %s9, 7
    %p129 = por %p127, %p128
    %p130 = scmp.ne.s32.totalorder %s122, %s125
    %p131 = scmp.eq.s32.totalorder %s9, 0
    %p132 = por %p130, %p131
    %p133 = scmp.ne.s32.totalorder %s122, %s125
    %p134 = scmp.eq.s32.totalorder %s14, 7
    %p135 = por %p133, %p134
    %p136 = scmp.ne.s32.totalorder %s125, %s126
    %p137 = scmp.eq.s32.totalorder %s14, 0
    %p138 = por %p136, %p137
    %p139 = scmp.ne.s32.totalorder %s125, %s126
    %p140 = scmp.eq.s32.totalorder %s15, 7
    %p141 = por %p139, %p140
    %p143 = scmp.ne.s32.totalorder %s126, %s142
    %p144 = scmp.eq.s32.totalorder %s15, 0
    %p145 = por %p143, %p144
    %p146 = scmp.le.s32.totalorder 1, %s9
    %p147 = scmp.lt.s32.totalorder %s9, 9
    %p148 = pnand %p146, %p147
    %p149 = pneg %p148
    // Predicated region
    $region9: #{transformer_forward.29} parent=5 // pred_check
      _
    $region10: #{transformer_forward.29} parent=5 // pred_check_branch
      %151 = sbr.rel (%p148) target = $region12
    $region11: #{transformer_forward.29} parent=5 // pred_region
      %s152 = ssub.s32 %s9, 1
    $region12: #{transformer_forward.29} parent=5 // pred_fallthru
      _
    %p153 = scmp.lt.s32.totalorder %s9, 8
    // Predicated region
    $region13: #{transformer_forward.29} parent=5 // pred_check
      %p154 = pneg %p153
    $region14: #{transformer_forward.29} parent=5 // pred_check_branch
      %156 = sbr.rel (%p154) target = $region16
    $region15: #{transformer_forward.29} parent=5 // pred_region
      // Predicated region
      $region17: #{transformer_forward.29} parent=15 // pred_check
        %p157 = pneg %p50
      $region18: #{transformer_forward.29} parent=15 // pred_check_branch
        %159 = sbr.rel (%p157) target = $region20
      $region19: #{transformer_forward.29} parent=15 // pred_region
        %p160 = scmp.lt.s32.totalorder %s16, 1
        %s161 = scalar_select %p160, %s16, 1
        %p162 = scmp.lt.s32.totalorder %s17, 0
        %s163 = scalar_select %p162, %s17, 0
        %s164 = sadd.s32 %s163, %s161
        %s165 = smul.addr %s164, 4
        %s166 = scalar_lea.vmem %s0, %s165
      $region20: #{transformer_forward.29} parent=15 // pred_fallthru
        _
      // Predicated region
      $region21: #{transformer_forward.29} parent=15 // pred_check
        %p167 = pneg %p76
      $region22: #{transformer_forward.29} parent=15 // pred_check_branch
        %169 = sbr.rel (%p167) target = $region24
      $region23: #{transformer_forward.29} parent=15 // pred_region
        %p170 = scmp.lt.s32.totalorder %s18, 3
        %s171 = scalar_select %p170, %s18, 3
        %s172 = smul.addr %s171, 4
        %s173 = smul.addr %s172, 4
        %s174 = scalar_lea.vmem %s1, %s173
      $region24: #{transformer_forward.29} parent=15 // pred_fallthru
        _
      // Predicated region
      $region25: #{transformer_forward.29} parent=15 // pred_check
        %p175 = pneg %p102
      $region26: #{transformer_forward.29} parent=15 // pred_check_branch
        %177 = sbr.rel (%p175) target = $region28
      $region27: #{transformer_forward.29} parent=15 // pred_region
        %p178 = scmp.lt.s32.totalorder %s18, 3
        %s179 = scalar_select %p178, %s18, 3
        %s180 = scalar_lea.vmem %s2, %s179
      $region28: #{transformer_forward.29} parent=15 // pred_fallthru
        _
    $region16: #{transformer_forward.29} parent=5 // pred_fallthru
      _
    %p181 = scmp.le.s32.totalorder 1, %s9
    %p182 = scmp.lt.s32.totalorder %s9, 9
    %p183 = pnand %p181, %p182
    %p184 = pneg %p183
    // Predicated region
    $region29: #{transformer_forward.29} parent=5 // pred_check
      _
    $region30: #{transformer_forward.29} parent=5 // pred_check_branch
      %186 = sbr.rel (%p183) target = $region32
    $region31: #{transformer_forward.29} parent=5 // pred_region
      %s187 = ssub.s32 %s9, 1
      %p188 = scmp.lt.s32.totalorder %s19, 1
      %s189 = scalar_select %p188, %s19, 1
      %p190 = scmp.lt.s32.totalorder %s20, 0
      %s191 = scalar_select %p190, %s20, 0
      %s192 = sadd.s32 %s191, %s189
      %s193 = smul.addr %s192, 4
      %s194 = scalar_lea.vmem %s0, %s193
      %p195 = pneg %p56
      %p196 = pneg %p53
      %p197 = scmp.lt.s32.totalorder %s21, 3
      %s198 = scalar_select %p197, %s21, 3
      %s199 = smul.addr %s198, 4
      %s200 = smul.addr %s199, 4
      %s201 = scalar_lea.vmem %s1, %s200
      %p202 = pneg %p82
      %p203 = pneg %p79
      %p204 = scmp.lt.s32.totalorder %s21, 3
      %s205 = scalar_select %p204, %s21, 3
      %s206 = scalar_lea.vmem %s2, %s205
      %p207 = pneg %p108
      %p208 = pneg %p105
      %p209 = pneg %p138
      %p210 = pneg %p135
      %p211 = scmp.lt.s32.totalorder %s19, 1
      %s212 = scalar_select %p211, %s19, 1
      %p213 = scmp.lt.s32.totalorder %s21, 3
      %s214 = scalar_select %p213, %s21, 3
      %p215 = scmp.lt.s32.totalorder %s20, 0
      %s216 = scalar_select %p215, %s20, 0
      %s217 = sadd.s32 %s216, %s214
      %s218 = smul.addr %s212, 4
      %s219 = sadd.s32 %s217, %s218
      %s220 = smul.addr %s219, 4
      %s221 = scalar_lea.vmem %s3, %s220
      %p222 = scmp.lt.s32.totalorder %s19, 1
      %s223 = scalar_select %p222, %s19, 1
      %p224 = scmp.lt.s32.totalorder %s20, 0
      %s225 = scalar_select %p224, %s20, 0
      %s226 = sadd.s32 %s225, %s223
      %s227 = smul.addr %s226, 4
      %s228 = scalar_lea.vmem %s0, %s227
      %p229 = scmp.lt.s32.totalorder %s21, 3
      %s230 = scalar_select %p229, %s21, 3
      %s231 = smul.addr %s230, 4
      %s232 = smul.addr %s231, 4
      %s233 = scalar_lea.vmem %s1, %s232
      %p234 = scmp.lt.s32.totalorder %s21, 3
      %s235 = scalar_select %p234, %s21, 3
      %s236 = scalar_lea.vmem %s2, %s235
      %p237 = scmp.lt.s32.totalorder %s19, 1
      %s238 = scalar_select %p237, %s19, 1
      %p239 = scmp.lt.s32.totalorder %s21, 3
      %s240 = scalar_select %p239, %s21, 3
      %p241 = scmp.lt.s32.totalorder %s20, 0
      %s242 = scalar_select %p241, %s20, 0
      %s243 = sadd.s32 %s242, %s240
      %s244 = smul.addr %s238, 4
      %s245 = sadd.s32 %s243, %s244
      %s246 = smul.addr %s245, 4
      %s247 = scalar_lea.vmem %s3, %s246
      %v249 = vld [vmem:[%s228] sm:$0xf]
      %v250 = vld [vmem:[%s233] sm:$0xf]
      %v251 = vld [vmem:[%s233 + $0x4] sm:$0xf]
      %v252 = vld [vmem:[%s233 + $0x8] sm:$0xf]
      %v253 = vld [vmem:[%s233 + $0xc] sm:$0xf]
      %v254 = vld [vmem:[%s236] sm:$0x1]
      %v256 = vlaneseq
      %v257 = vshrl.u32 %v256, 7
      %v258 = vsub.s32 0, %v257
      %v259 = vrot.slane %v254, %v258
      %v265 = vunpack.c.l.b16 %v250
      %v266 = vunpack.c.l.b16 %v251
      %v267 = vunpack.c.l.b16 %v252
      %v268 = vunpack.c.l.b16 %v253
      %v269 = vpack.c.b16 %v266, %v265
      %v270 = vpack.c.b16 %v268, %v267
      %vm273 = vcmask 261120
      %v275 = vsel %vm273, %v249, 0
      %277 = vmatprep.subr.bf16.mxu0 0
      %278 = vmatpush1.bf16.msra.mxu0 0
      %279 = vmatprep.subr.bf16.mxu0 0
      %280 = vmatpush1.bf16.msra.mxu0 0
      %281 = vmatprep.subr.bf16.mxu0 0
      %282 = vmatpush1.bf16.msra.mxu0 0
      %283 = vmatprep.subr.bf16.mxu0 0
      %284 = vmatpush1.bf16.msra.mxu0 0
      %285 = vmatprep.subr.bf16.mxu0 0
      %286 = vmatpush1.bf16.msra.mxu0 0
      %287 = vmatprep.subr.bf16.mxu0 0
      %288 = vmatpush1.bf16.msra.mxu0 0
      %289 = vmatprep.subr.bf16.mxu0 0
      %290 = vmatpush1.bf16.msra.mxu0 %v270
      %291 = vmatprep.subr.bf16.mxu0 0
      %292 = vmatpush1.bf16.msra.mxu0 %v269
      %293 = vmatprep.subr.bf16.mxu0 0
      %294 = vmatpush2.bf16.msra.mxu0 0
      %295 = vmatprep.subr.bf16.mxu0 0
      %296 = vmatpush2.bf16.msra.mxu0 0
      %297 = vmatprep.subr.bf16.mxu0 0
      %298 = vmatpush2.bf16.msra.mxu0 0
      %299 = vmatprep.subr.bf16.mxu0 0
      %300 = vmatpush2.bf16.msra.mxu0 0
      %301 = vmatprep.subr.bf16.mxu0 0
      %302 = vmatpush2.bf16.msra.mxu0 0
      %303 = vmatprep.subr.bf16.mxu0 0
      %304 = vmatpush2.bf16.msra.mxu0 0
      %305 = vmatprep.subr.bf16.mxu0 0
      %306 = vmatpush2.bf16.msra.mxu0 0
      %307 = vmatprep.subr.bf16.mxu0 0
      %308 = vmatpush2.bf16.msra.mxu0 0
      %309 = vmatprep.mubr.bf16.mxu0 0
      %310 = vmatmul.mubr.bf16.gmra.mxu0 %v275
      %v311 = vpop.f32.mrf.mxu0
      %v312 = vadd.f32 %v259, %v311
      %v313 = vpop.f32.mrf.mxu0
      %v314 = vpop.f32.mrf.mxu0
      %v315 = vpop.f32.mrf.mxu0
      %316 = vdwg.mxu0
      %v317 = vpack.c.bf16 %v312, %v312
      %vm318 = vcmask 60416
      %319 = vst.msk [vmem:[%s247] sm:$0xf] %vm318, %v317
      %p320 = scmp.lt.s32.totalorder %s19, 1
      %s321 = scalar_select %p320, %s19, 1
      %p322 = scmp.lt.s32.totalorder %s21, 3
      %s323 = scalar_select %p322, %s21, 3
      %p324 = scmp.lt.s32.totalorder %s20, 0
      %s325 = scalar_select %p324, %s20, 0
      %s326 = sadd.s32 %s325, %s323
      %s327 = smul.addr %s321, 4
      %s328 = sadd.s32 %s326, %s327
      %s329 = smul.addr %s328, 4
      %s330 = scalar_lea.vmem %s3, %s329
      // Predicated region
      $region33: #{transformer_forward.29} parent=31 // pred_check
        %p331 = pneg %p135
      $region34: #{transformer_forward.29} parent=31 // pred_check_branch
        %333 = sbr.rel (%p331) target = $region36
      $region35: #{transformer_forward.29} parent=31 // pred_region
        _
      $region36: #{transformer_forward.29} parent=31 // pred_fallthru
        _
    $region32: #{transformer_forward.29} parent=5 // pred_fallthru
      _
    %p334 = scmp.le.s32.totalorder 2, %s9
    // Predicated region
    $region37: #{transformer_forward.29} parent=5 // pred_check
      %p335 = pneg %p334
    $region38: #{transformer_forward.29} parent=5 // pred_check_branch
      %337 = sbr.rel (%p335) target = $region40
    $region39: #{transformer_forward.29} parent=5 // pred_region
      %s338 = ssub.s32 %s9, 2
      // Predicated region
      $region41: #{transformer_forward.29} parent=39 // pred_check
        %p339 = pneg %p141
      $region42: #{transformer_forward.29} parent=39 // pred_check_branch
        %341 = sbr.rel (%p339) target = $region44
      $region43: #{transformer_forward.29} parent=39 // pred_region
        %p342 = scmp.lt.s32.totalorder %s22, 1
        %s343 = scalar_select %p342, %s22, 1
        %p344 = scmp.lt.s32.totalorder %s24, 3
        %s345 = scalar_select %p344, %s24, 3
        %p346 = scmp.lt.s32.totalorder %s23, 0
        %s347 = scalar_select %p346, %s23, 0
        %s348 = sadd.s32 %s347, %s345
        %s349 = smul.addr %s343, 4
        %s350 = sadd.s32 %s348, %s349
        %s351 = smul.addr %s350, 4
        %s352 = scalar_lea.vmem %s3, %s351
      $region44: #{transformer_forward.29} parent=39 // pred_fallthru
        _
    $region40: #{transformer_forward.29} parent=5 // pred_fallthru
      _
  $region6: #{transformer_forward.29} parent=0 // loop_footer
    %s13 = sadd.s32 1, %s9
  $region7: #{transformer_forward.29} parent=0 // loop_footer_branch
    %8 = sbr.rel target = $region3
  $region8: #{transformer_forward.29} parent=0 // loop_exit
    _

// kernel: transformer_forward.31
$region0: #{transformer_forward.31}
  #allocation0 [shape = 'u32[]', space=smem, size = 0x4, offset = 0x4, fixed_abs, tag = 'smem constant byte address 0x4 - core index']
  #allocation1 [shape = 'u32[144,128]{1,0:T(1,128)}', space=vmem, size = 0x12000, scoped, tag = 'internal scratch']
  #allocation2 [shape = 'f32[8,1]{1,0:T(8,128)}', space=vmem, size = 0x1000, scoped, tag = 'scratch operand']
  #allocation3 [shape = 'f32[8,1]{1,0:T(8,128)}', space=vmem, size = 0x1000, scoped, tag = 'scratch operand']
  #allocation4 [shape = 'f32[8,8]{1,0:T(8,128)}', space=vmem, size = 0x1000, scoped, tag = 'scratch operand']
  %s0 = inlined_call_operand.vmem [shape: bf16[2,4,8,8], index: 0, kind: input, shape index: {}]
  %s1 = inlined_call_operand.vmem [shape: bf16[2,4,8,8], index: 1, kind: input, shape index: {}]
  %s2 = inlined_call_operand.vmem [shape: bf16[2,4,8,8], index: 2, kind: input, shape index: {}]
  %s3 = inlined_call_operand.vmem [shape: bf16[2,4,8,8], index: 3, kind: output, shape index: {}]
  %s4 = sld [smem:[#allocation0]]
  $region53: #{transformer_forward.31} parent=0
    _
  %s6 = ssub.s32 1, %s4
  %s7 = scalar_select 0, %s6, %s4
  loop: start=0, step=1, limit=10
  $region2: #{transformer_forward.31} parent=0 // loop_pre_header
    _
  $region3: #{transformer_forward.31} parent=0 // loop_header
    %s9 = sphi 0, %s13
    %p10 = scmp.ge.s32.totalorder %s9, 10
    %s16 = sphi 0, %s42
    %s17 = sphi 0, %s38
    %s18 = sphi 0, %s34
    %s19 = sphi 0, %s30
    %s20 = sphi 0, %s16
    %s21 = sphi 0, %s17
    %s22 = sphi 0, %s18
    %s23 = sphi 0, %s19
    %s24 = sphi 0, %s20
    %s25 = sphi 0, %s21
    %s26 = sphi 0, %s22
    %s27 = sphi 0, %s23
    %s49 = sphi 0, %s51
    %s52 = sphi 0, %s49
    %s53 = sphi 0, %s52
    %s69 = sphi 0, %s53
    %s79 = sphi 0, %s81
    %s82 = sphi 0, %s79
    %s83 = sphi 0, %s82
    %s99 = sphi 0, %s83
    %s109 = sphi 0, %s111
    %s112 = sphi 0, %s109
    %s113 = sphi 0, %s112
    %s129 = sphi 0, %s113
    %s139 = sphi 0, %s141
    %s142 = sphi 0, %s139
    %s143 = sphi 0, %s142
    %s159 = sphi 0, %s143
  $region4: #{transformer_forward.31} parent=0 // loop_header_branch
    %12 = sbr.rel (%p10) target = $region8
  $region5: #{transformer_forward.31} parent=0 // loop_body
    %s14 = ssub.s32 %s9, 1
    %s15 = ssub.s32 %s9, 2
    %s28 = sadd.s32 1, %s19
    %p29 = scmp.ge.s32.totalorder %s28, 1
    %s30 = scalar_select %p29, 0, %s28
    %s31 = sadd.s32 1, %s18
    %s32 = scalar_select %p29, %s31, %s18
    %p33 = scmp.ge.s32.totalorder %s32, 1
    %s34 = scalar_select %p33, 0, %s32
    %s35 = sadd.s32 1, %s17
    %s36 = scalar_select %p33, %s35, %s17
    %p37 = scmp.ge.s32.totalorder %s36, 4
    %s38 = scalar_select %p37, 0, %s36
    %s39 = sadd.s32 1, %s16
    %s40 = scalar_select %p37, %s39, %s16
    %p41 = scmp.ge.s32.totalorder %s40, 2
    %s42 = scalar_select %p41, 0, %s40
    %s43 = ssub.s32 %s16, %s42
    %s44 = ssub.s32 %s17, %s38
    %s45 = sor.u32 %s43, %s44
    %s46 = ssub.s32 %s18, %s34
    %s47 = sor.u32 %s45, %s46
    %p48 = scmp.eq.s32.totalorder %s47, 0
    %s50 = sadd.s32 %s49, 1
    %s51 = scalar_select %p48, %s49, %s50
    %p54 = pneg %p48
    %p55 = scmp.eq.s32.totalorder %s9, 7
    %p56 = por %p54, %p55
    %p57 = scmp.ne.s32.totalorder %s49, %s52
    %p58 = scmp.eq.s32.totalorder %s9, 0
    %p59 = por %p57, %p58
    %p60 = scmp.ne.s32.totalorder %s49, %s52
    %p61 = scmp.eq.s32.totalorder %s14, 7
    %p62 = por %p60, %p61
    %p63 = scmp.ne.s32.totalorder %s52, %s53
    %p64 = scmp.eq.s32.totalorder %s14, 0
    %p65 = por %p63, %p64
    %p66 = scmp.ne.s32.totalorder %s52, %s53
    %p67 = scmp.eq.s32.totalorder %s15, 7
    %p68 = por %p66, %p67
    %p70 = scmp.ne.s32.totalorder %s53, %s69
    %p71 = scmp.eq.s32.totalorder %s15, 0
    %p72 = por %p70, %p71
    %s73 = ssub.s32 %s16, %s42
    %s74 = ssub.s32 %s17, %s38
    %s75 = sor.u32 %s73, %s74
    %s76 = ssub.s32 %s19, %s30
    %s77 = sor.u32 %s75, %s76
    %p78 = scmp.eq.s32.totalorder %s77, 0
    %s80 = sadd.s32 %s79, 1
    %s81 = scalar_select %p78, %s79, %s80
    %p84 = pneg %p78
    %p85 = scmp.eq.s32.totalorder %s9, 7
    %p86 = por %p84, %p85
    %p87 = scmp.ne.s32.totalorder %s79, %s82
    %p88 = scmp.eq.s32.totalorder %s9, 0
    %p89 = por %p87, %p88
    %p90 = scmp.ne.s32.totalorder %s79, %s82
    %p91 = scmp.eq.s32.totalorder %s14, 7
    %p92 = por %p90, %p91
    %p93 = scmp.ne.s32.totalorder %s82, %s83
    %p94 = scmp.eq.s32.totalorder %s14, 0
    %p95 = por %p93, %p94
    %p96 = scmp.ne.s32.totalorder %s82, %s83
    %p97 = scmp.eq.s32.totalorder %s15, 7
    %p98 = por %p96, %p97
    %p100 = scmp.ne.s32.totalorder %s83, %s99
    %p101 = scmp.eq.s32.totalorder %s15, 0
    %p102 = por %p100, %p101
    %s103 = ssub.s32 %s16, %s42
    %s104 = ssub.s32 %s17, %s38
    %s105 = sor.u32 %s103, %s104
    %s106 = ssub.s32 %s19, %s30
    %s107 = sor.u32 %s105, %s106
    %p108 = scmp.eq.s32.totalorder %s107, 0
    %s110 = sadd.s32 %s109, 1
    %s111 = scalar_select %p108, %s109, %s110
    %p114 = pneg %p108
    %p115 = scmp.eq.s32.totalorder %s9, 7
    %p116 = por %p114, %p115
    %p117 = scmp.ne.s32.totalorder %s109, %s112
    %p118 = scmp.eq.s32.totalorder %s9, 0
    %p119 = por %p117, %p118
    %p120 = scmp.ne.s32.totalorder %s109, %s112
    %p121 = scmp.eq.s32.totalorder %s14, 7
    %p122 = por %p120, %p121
    %p123 = scmp.ne.s32.totalorder %s112, %s113
    %p124 = scmp.eq.s32.totalorder %s14, 0
    %p125 = por %p123, %p124
    %p126 = scmp.ne.s32.totalorder %s112, %s113
    %p127 = scmp.eq.s32.totalorder %s15, 7
    %p128 = por %p126, %p127
    %p130 = scmp.ne.s32.totalorder %s113, %s129
    %p131 = scmp.eq.s32.totalorder %s15, 0
    %p132 = por %p130, %p131
    %s133 = ssub.s32 %s16, %s42
    %s134 = ssub.s32 %s17, %s38
    %s135 = sor.u32 %s133, %s134
    %s136 = ssub.s32 %s18, %s34
    %s137 = sor.u32 %s135, %s136
    %p138 = scmp.eq.s32.totalorder %s137, 0
    %s140 = sadd.s32 %s139, 1
    %s141 = scalar_select %p138, %s139, %s140
    %p144 = pneg %p138
    %p145 = scmp.eq.s32.totalorder %s9, 7
    %p146 = por %p144, %p145
    %p147 = scmp.ne.s32.totalorder %s139, %s142
    %p148 = scmp.eq.s32.totalorder %s9, 0
    %p149 = por %p147, %p148
    %p150 = scmp.ne.s32.totalorder %s139, %s142
    %p151 = scmp.eq.s32.totalorder %s14, 7
    %p152 = por %p150, %p151
    %p153 = scmp.ne.s32.totalorder %s142, %s143
    %p154 = scmp.eq.s32.totalorder %s14, 0
    %p155 = por %p153, %p154
    %p156 = scmp.ne.s32.totalorder %s142, %s143
    %p157 = scmp.eq.s32.totalorder %s15, 7
    %p158 = por %p156, %p157
    %p160 = scmp.ne.s32.totalorder %s143, %s159
    %p161 = scmp.eq.s32.totalorder %s15, 0
    %p162 = por %p160, %p161
    %p163 = scmp.le.s32.totalorder 1, %s9
    %p164 = scmp.lt.s32.totalorder %s9, 9
    %p165 = pnand %p163, %p164
    %p166 = pneg %p165
    // Predicated region
    $region9: #{transformer_forward.31} parent=5 // pred_check
      _
    $region10: #{transformer_forward.31} parent=5 // pred_check_branch
      %168 = sbr.rel (%p165) target = $region12
    $region11: #{transformer_forward.31} parent=5 // pred_region
      %s169 = ssub.s32 %s9, 1
    $region12: #{transformer_forward.31} parent=5 // pred_fallthru
      _
    %p170 = scmp.lt.s32.totalorder %s9, 8
    // Predicated region
    $region13: #{transformer_forward.31} parent=5 // pred_check
      %p171 = pneg %p170
    $region14: #{transformer_forward.31} parent=5 // pred_check_branch
      %173 = sbr.rel (%p171) target = $region16
    $region15: #{transformer_forward.31} parent=5 // pred_region
      // Predicated region
      $region17: #{transformer_forward.31} parent=15 // pred_check
        %p174 = pneg %p59
      $region18: #{transformer_forward.31} parent=15 // pred_check_branch
        %176 = sbr.rel (%p174) target = $region20
      $region19: #{transformer_forward.31} parent=15 // pred_region
        %p177 = scmp.lt.s32.totalorder %s16, 1
        %s178 = scalar_select %p177, %s16, 1
        %p179 = scmp.lt.s32.totalorder %s17, 3
        %s180 = scalar_select %p179, %s17, 3
        %p181 = scmp.lt.s32.totalorder %s18, 0
        %s182 = scalar_select %p181, %s18, 0
        %s183 = sadd.s32 %s182, %s180
        %s184 = smul.addr %s178, 4
        %s185 = sadd.s32 %s183, %s184
        %s186 = smul.addr %s185, 4
        %s187 = scalar_lea.vmem %s0, %s186
      $region20: #{transformer_forward.31} parent=15 // pred_fallthru
        _
      // Predicated region
      $region21: #{transformer_forward.31} parent=15 // pred_check
        %p188 = pneg %p89
      $region22: #{transformer_forward.31} parent=15 // pred_check_branch
        %190 = sbr.rel (%p188) target = $region24
      $region23: #{transformer_forward.31} parent=15 // pred_region
        %p191 = scmp.lt.s32.totalorder %s16, 1
        %s192 = scalar_select %p191, %s16, 1
        %p193 = scmp.lt.s32.totalorder %s17, 3
        %s194 = scalar_select %p193, %s17, 3
        %p195 = scmp.lt.s32.totalorder %s19, 0
        %s196 = scalar_select %p195, %s19, 0
        %s197 = sadd.s32 %s196, %s194
        %s198 = smul.addr %s192, 4
        %s199 = sadd.s32 %s197, %s198
        %s200 = smul.addr %s199, 4
        %s201 = scalar_lea.vmem %s1, %s200
      $region24: #{transformer_forward.31} parent=15 // pred_fallthru
        _
      // Predicated region
      $region25: #{transformer_forward.31} parent=15 // pred_check
        %p202 = pneg %p119
      $region26: #{transformer_forward.31} parent=15 // pred_check_branch
        %204 = sbr.rel (%p202) target = $region28
      $region27: #{transformer_forward.31} parent=15 // pred_region
        %p205 = scmp.lt.s32.totalorder %s16, 1
        %s206 = scalar_select %p205, %s16, 1
        %p207 = scmp.lt.s32.totalorder %s17, 3
        %s208 = scalar_select %p207, %s17, 3
        %p209 = scmp.lt.s32.totalorder %s19, 0
        %s210 = scalar_select %p209, %s19, 0
        %s211 = sadd.s32 %s210, %s208
        %s212 = smul.addr %s206, 4
        %s213 = sadd.s32 %s211, %s212
        %s214 = smul.addr %s213, 4
        %s215 = scalar_lea.vmem %s2, %s214
      $region28: #{transformer_forward.31} parent=15 // pred_fallthru
        _
    $region16: #{transformer_forward.31} parent=5 // pred_fallthru
      _
    %p216 = scmp.le.s32.totalorder 1, %s9
    %p217 = scmp.lt.s32.totalorder %s9, 9
    %p218 = pnand %p216, %p217
    %p219 = pneg %p218
    // Predicated region
    $region29: #{transformer_forward.31} parent=5 // pred_check
      _
    $region30: #{transformer_forward.31} parent=5 // pred_check_branch
      %221 = sbr.rel (%p218) target = $region32
    $region31: #{transformer_forward.31} parent=5 // pred_region
      %s222 = ssub.s32 %s9, 1
      %p223 = scmp.lt.s32.totalorder %s20, 1
      %s224 = scalar_select %p223, %s20, 1
      %p225 = scmp.lt.s32.totalorder %s21, 3
      %s226 = scalar_select %p225, %s21, 3
      %p227 = scmp.lt.s32.totalorder %s22, 0
      %s228 = scalar_select %p227, %s22, 0
      %s229 = sadd.s32 %s228, %s226
      %s230 = smul.addr %s224, 4
      %s231 = sadd.s32 %s229, %s230
      %s232 = smul.addr %s231, 4
      %s233 = scalar_lea.vmem %s0, %s232
      %p234 = pneg %p65
      %p235 = pneg %p62
      %p236 = scmp.lt.s32.totalorder %s20, 1
      %s237 = scalar_select %p236, %s20, 1
      %p238 = scmp.lt.s32.totalorder %s21, 3
      %s239 = scalar_select %p238, %s21, 3
      %p240 = scmp.lt.s32.totalorder %s23, 0
      %s241 = scalar_select %p240, %s23, 0
      %s242 = sadd.s32 %s241, %s239
      %s243 = smul.addr %s237, 4
      %s244 = sadd.s32 %s242, %s243
      %s245 = smul.addr %s244, 4
      %s246 = scalar_lea.vmem %s1, %s245
      %p247 = pneg %p95
      %p248 = pneg %p92
      %p249 = scmp.lt.s32.totalorder %s20, 1
      %s250 = scalar_select %p249, %s20, 1
      %p251 = scmp.lt.s32.totalorder %s21, 3
      %s252 = scalar_select %p251, %s21, 3
      %p253 = scmp.lt.s32.totalorder %s23, 0
      %s254 = scalar_select %p253, %s23, 0
      %s255 = sadd.s32 %s254, %s252
      %s256 = smul.addr %s250, 4
      %s257 = sadd.s32 %s255, %s256
      %s258 = smul.addr %s257, 4
      %s259 = scalar_lea.vmem %s2, %s258
      %p260 = pneg %p125
      %p261 = pneg %p122
      %p262 = pneg %p155
      %p263 = pneg %p152
      %p264 = scmp.lt.s32.totalorder %s20, 1
      %s265 = scalar_select %p264, %s20, 1
      %p266 = scmp.lt.s32.totalorder %s21, 3
      %s267 = scalar_select %p266, %s21, 3
      %p268 = scmp.lt.s32.totalorder %s22, 0
      %s269 = scalar_select %p268, %s22, 0
      %s270 = sadd.s32 %s269, %s267
      %s271 = smul.addr %s265, 4
      %s272 = sadd.s32 %s270, %s271
      %s273 = smul.addr %s272, 4
      %s274 = scalar_lea.vmem %s3, %s273
      %p275 = scmp.lt.s32.totalorder %s20, 1
      %s276 = scalar_select %p275, %s20, 1
      %p277 = scmp.lt.s32.totalorder %s21, 3
      %s278 = scalar_select %p277, %s21, 3
      %p279 = scmp.lt.s32.totalorder %s22, 0
      %s280 = scalar_select %p279, %s22, 0
      %s281 = sadd.s32 %s280, %s278
      %s282 = smul.addr %s276, 4
      %s283 = sadd.s32 %s281, %s282
      %s284 = smul.addr %s283, 4
      %s285 = scalar_lea.vmem %s0, %s284
      %p286 = scmp.lt.s32.totalorder %s20, 1
      %s287 = scalar_select %p286, %s20, 1
      %p288 = scmp.lt.s32.totalorder %s21, 3
      %s289 = scalar_select %p288, %s21, 3
      %p290 = scmp.lt.s32.totalorder %s23, 0
      %s291 = scalar_select %p290, %s23, 0
      %s292 = sadd.s32 %s291, %s289
      %s293 = smul.addr %s287, 4
      %s294 = sadd.s32 %s292, %s293
      %s295 = smul.addr %s294, 4
      %s296 = scalar_lea.vmem %s1, %s295
      %p297 = scmp.lt.s32.totalorder %s20, 1
      %s298 = scalar_select %p297, %s20, 1
      %p299 = scmp.lt.s32.totalorder %s21, 3
      %s300 = scalar_select %p299, %s21, 3
      %p301 = scmp.lt.s32.totalorder %s23, 0
      %s302 = scalar_select %p301, %s23, 0
      %s303 = sadd.s32 %s302, %s300
      %s304 = smul.addr %s298, 4
      %s305 = sadd.s32 %s303, %s304
      %s306 = smul.addr %s305, 4
      %s307 = scalar_lea.vmem %s2, %s306
      %p308 = scmp.lt.s32.totalorder %s20, 1
      %s309 = scalar_select %p308, %s20, 1
      %p310 = scmp.lt.s32.totalorder %s21, 3
      %s311 = scalar_select %p310, %s21, 3
      %p312 = scmp.lt.s32.totalorder %s22, 0
      %s313 = scalar_select %p312, %s22, 0
      %s314 = sadd.s32 %s313, %s311
      %s315 = smul.addr %s309, 4
      %s316 = sadd.s32 %s314, %s315
      %s317 = smul.addr %s316, 4
      %s318 = scalar_lea.vmem %s3, %s317
      %p320 = scmp.eq.s32.totalorder %s23, 0
      // Predicated region
      $region33: #{transformer_forward.31} parent=31 // pred_check
        %p321 = pneg %p320
      $region34: #{transformer_forward.31} parent=31 // pred_check_branch
        %323 = sbr.rel (%p321) target = $region36
      $region35: #{transformer_forward.31} parent=31 // pred_region
        %vm324 = vcmask 7168
        %325 = vst.msk [vmem:[#allocation2] sm:$0xff] %vm324, -1e+30
        %326 = vst.msk [vmem:[#allocation3] sm:$0xff] %vm324, 0.0
        %vm327 = vcmask 64512
        %328 = vst.msk [vmem:[#allocation4] sm:$0xff] %vm327, 0.0
      $region36: #{transformer_forward.31} parent=31 // pred_fallthru
        _
      %v329 = vld [vmem:[%s285] sm:$0xf]
      %v330 = vld [vmem:[%s296] sm:$0xf]
      %vm331 = vcmask 64512
      %v333 = vsel %vm331, %v329, 0
      %v336 = vsel %vm331, %v330, 0
      %338 = vmatprep.subr.bf16.mxu0 0
      %339 = vmatpush1.bf16.xpose.msra.mxu0 0
      %340 = vmatprep.subr.bf16.mxu0 0
      %341 = vmatpush1.bf16.xpose.msra.mxu0 0
      %342 = vmatprep.subr.bf16.mxu0 0
      %343 = vmatpush1.bf16.xpose.msra.mxu0 0
      %344 = vmatprep.subr.bf16.mxu0 0
      %345 = vmatpush1.bf16.xpose.msra.mxu0 0
      %346 = vmatprep.subr.bf16.mxu0 0
      %347 = vmatpush1.bf16.xpose.msra.mxu0 0
      %348 = vmatprep.subr.bf16.mxu0 0
      %349 = vmatpush1.bf16.xpose.msra.mxu0 0
      %350 = vmatprep.subr.bf16.mxu0 0
      %351 = vmatpush1.bf16.xpose.msra.mxu0 0
      %352 = vmatprep.subr.bf16.mxu0 0
      %353 = vmatpush1.bf16.xpose.msra.mxu0 %v336
      %354 = vmatprep.subr.bf16.mxu0 0
      %355 = vmatpush2.bf16.xpose.msra.mxu0 0
      %356 = vmatprep.subr.bf16.mxu0 0
      %357 = vmatpush2.bf16.xpose.msra.mxu0 0
      %358 = vmatprep.subr.bf16.mxu0 0
      %359 = vmatpush2.bf16.xpose.msra.mxu0 0
      %360 = vmatprep.subr.bf16.mxu0 0
      %361 = vmatpush2.bf16.xpose.msra.mxu0 0
      %362 = vmatprep.subr.bf16.mxu0 0
      %363 = vmatpush2.bf16.xpose.msra.mxu0 0
      %364 = vmatprep.subr.bf16.mxu0 0
      %365 = vmatpush2.bf16.xpose.msra.mxu0 0
      %366 = vmatprep.subr.bf16.mxu0 0
      %367 = vmatpush2.bf16.xpose.msra.mxu0 0
      %368 = vmatprep.subr.bf16.mxu0 0
      %369 = vmatpush2.bf16.xpose.msra.mxu0 0
      %370 = vmatprep.mubr.bf16.mxu0 0
      %371 = vmatmul.mubr.bf16.gmra.mxu0 %v333
      %v372 = vpop.f32.mrf.mxu0
      %v373 = vadd.f32 0.0, %v372
      %v374 = vpop.f32.mrf.mxu0
      %v375 = vpop.f32.mrf.mxu0
      %v376 = vpop.f32.mrf.mxu0
      %377 = vdwg.mxu0
      %v378 = vld [vmem:[#allocation2] sm:$0xff]
      %v379 = vsel %vm331, %v373, -inf
      %380 = vmax.xlane.f32.xlu0 %v379
      %v381 = vpop.xlane.xlu0 %380
      %v382 = vmax.f32 %v378, %v381
      %v383 = vsub.f32 %v378, %v382
      %v384 = vmul.f32 %v383, 1.442695
      %v385 = vpow.pop %v384
      %387 = vset.pattern.permute.xlu0 0
      %388 = vperm.xlu0 %387, %v382
      %v389 = vpop.permute.xlu0 %388
      %v391 = vsub.f32 %v373, %v389
      %v392 = vmul.f32 %v391, 1.442695
      %v393 = vpow.pop %v392
      %v394 = vld [vmem:[#allocation3] sm:$0xff]
      %v395 = vmul.f32 %v385, %v394
      %v396 = vsel %vm331, %v393, 0.0
      %397 = vadd.xlane.f32.xlu0 %v396
      %v398 = vpop.xlane.xlu0 %397
      %v399 = vadd.f32 %v395, %v398
      %vm400 = vcmask 7168
      %401 = vst.msk [vmem:[#allocation3] sm:$0xff] %vm400, %v399
      %v402 = vld [vmem:[#allocation4] sm:$0xff]
      %404 = vset.pattern.permute.xlu0 0
      %405 = vperm.xlu0 %404, %v385
      %v406 = vpop.permute.xlu0 %405
      %v408 = vmul.f32 %v406, %v402
      %v409 = vpack.c.bf16 %v393, %v393
      %v410 = vld [vmem:[%s307] sm:$0xf]
      %v412 = vsel %vm331, %v409, 0
      %vm414 = vcmask 1043456
      %v416 = vsel %vm414, %v410, 0
      %418 = vmatprep.subr.bf16.mxu0 0
      %419 = vmatpush1.bf16.msra.mxu0 0
      %420 = vmatprep.subr.bf16.mxu0 0
      %421 = vmatpush1.bf16.msra.mxu0 0
      %422 = vmatprep.subr.bf16.mxu0 0
      %423 = vmatpush1.bf16.msra.mxu0 0
      %424 = vmatprep.subr.bf16.mxu0 0
      %425 = vmatpush1.bf16.msra.mxu0 0
      %426 = vmatprep.subr.bf16.mxu0 0
      %427 = vmatpush1.bf16.msra.mxu0 0
      %428 = vmatprep.subr.bf16.mxu0 0
      %429 = vmatpush1.bf16.msra.mxu0 0
      %430 = vmatprep.subr.bf16.mxu0 0
      %431 = vmatpush1.bf16.msra.mxu0 0
      %432 = vmatprep.subr.bf16.mxu0 0
      %433 = vmatpush1.bf16.msra.mxu0 %v416
      %434 = vmatprep.subr.bf16.mxu0 0
      %435 = vmatpush2.bf16.msra.mxu0 0
      %436 = vmatprep.subr.bf16.mxu0 0
      %437 = vmatpush2.bf16.msra.mxu0 0
      %438 = vmatprep.subr.bf16.mxu0 0
      %439 = vmatpush2.bf16.msra.mxu0 0
      %440 = vmatprep.subr.bf16.mxu0 0
      %441 = vmatpush2.bf16.msra.mxu0 0
      %442 = vmatprep.subr.bf16.mxu0 0
      %443 = vmatpush2.bf16.msra.mxu0 0
      %444 = vmatprep.subr.bf16.mxu0 0
      %445 = vmatpush2.bf16.msra.mxu0 0
      %446 = vmatprep.subr.bf16.mxu0 0
      %447 = vmatpush2.bf16.msra.mxu0 0
      %448 = vmatprep.subr.bf16.mxu0 0
      %449 = vmatpush2.bf16.msra.mxu0 0
      %450 = vmatprep.mubr.bf16.mxu0 0
      %451 = vmatmul.mubr.bf16.gmra.mxu0 %v412
      %v452 = vpop.f32.mrf.mxu0
      %v453 = vadd.f32 0.0, %v452
      %v454 = vpop.f32.mrf.mxu0
      %v455 = vpop.f32.mrf.mxu0
      %v456 = vpop.f32.mrf.mxu0
      %457 = vdwg.mxu0
      %v458 = vadd.f32 %v408, %v453
      %459 = vst.msk [vmem:[#allocation4] sm:$0xff] %vm331, %v458
      %460 = vst.msk [vmem:[#allocation2] sm:$0xff] %vm400, %v382
      // Predicated region
      $region37: #{transformer_forward.31} parent=31 // pred_check
        %p461 = pneg %p320
      $region38: #{transformer_forward.31} parent=31 // pred_check_branch
        %463 = sbr.rel (%p461) target = $region40
      $region39: #{transformer_forward.31} parent=31 // pred_region
        %v464 = vld [vmem:[#allocation3] sm:$0xff]
        %v465 = vmax.f32 %v464, 1e-20
        %v466 = vld [vmem:[#allocation4] sm:$0xff]
        %v467 = vrcp.pop %v465
        %469 = vset.pattern.permute.xlu0 0
        %470 = vperm.xlu0 %469, %v467
        %v471 = vpop.permute.xlu0 %470
        %v473 = vmul.f32 %v466, %v471
        %v474 = vpack.c.bf16 %v473, %v473
        %vm475 = vcmask 60416
        %476 = vst.msk [vmem:[%s318] sm:$0xf] %vm475, %v474
      $region40: #{transformer_forward.31} parent=31 // pred_fallthru
        _
      %p477 = scmp.lt.s32.totalorder %s20, 1
      %s478 = scalar_select %p477, %s20, 1
      %p479 = scmp.lt.s32.totalorder %s21, 3
      %s480 = scalar_select %p479, %s21, 3
      %p481 = scmp.lt.s32.totalorder %s22, 0
      %s482 = scalar_select %p481, %s22, 0
      %s483 = sadd.s32 %s482, %s480
      %s484 = smul.addr %s478, 4
      %s485 = sadd.s32 %s483, %s484
      %s486 = smul.addr %s485, 4
      %s487 = scalar_lea.vmem %s3, %s486
      // Predicated region
      $region41: #{transformer_forward.31} parent=31 // pred_check
        %p488 = pneg %p152
      $region42: #{transformer_forward.31} parent=31 // pred_check_branch
        %490 = sbr.rel (%p488) target = $region44
      $region43: #{transformer_forward.31} parent=31 // pred_region
        _
      $region44: #{transformer_forward.31} parent=31 // pred_fallthru
        _
    $region32: #{transformer_forward.31} parent=5 // pred_fallthru
      _
    %p491 = scmp.le.s32.totalorder 2, %s9
    // Predicated region
    $region45: #{transformer_forward.31} parent=5 // pred_check
      %p492 = pneg %p491
    $region46: #{transformer_forward.31} parent=5 // pred_check_branch
      %494 = sbr.rel (%p492) target = $region48
    $region47: #{transformer_forward.31} parent=5 // pred_region
      %s495 = ssub.s32 %s9, 2
      // Predicated region
      $region49: #{transformer_forward.31} parent=47 // pred_check
        %p496 = pneg %p158
      $region50: #{transformer_forward.31} parent=47 // pred_check_branch
        %498 = sbr.rel (%p496) target = $region52
      $region51: #{transformer_forward.31} parent=47 // pred_region
        %p499 = scmp.lt.s32.totalorder %s24, 1
        %s500 = scalar_select %p499, %s24, 1
        %p501 = scmp.lt.s32.totalorder %s25, 3
        %s502 = scalar_select %p501, %s25, 3
        %p503 = scmp.lt.s32.totalorder %s26, 0
        %s504 = scalar_select %p503, %s26, 0
        %s505 = sadd.s32 %s504, %s502
        %s506 = smul.addr %s500, 4
        %s507 = sadd.s32 %s505, %s506
        %s508 = smul.addr %s507, 4
        %s509 = scalar_lea.vmem %s3, %s508
      $region52: #{transformer_forward.31} parent=47 // pred_fallthru
        _
    $region48: #{transformer_forward.31} parent=5 // pred_fallthru
      _
  $region6: #{transformer_forward.31} parent=0 // loop_footer
    %s13 = sadd.s32 1, %s9
  $region7: #{transformer_forward.31} parent=0 // loop_footer_branch
    %8 = sbr.rel target = $region3
  $region8: #{transformer_forward.31} parent=0 // loop_exit
    _

// kernel: transformer_forward.57
$region0: #{transformer_forward.57}
  #allocation0 [shape = 'u32[]', space=smem, size = 0x4, offset = 0x4, fixed_abs, tag = 'smem constant byte address 0x4 - core index']
  #allocation1 [shape = 'u32[144,128]{1,0:T(1,128)}', space=vmem, size = 0x12000, scoped, tag = 'internal scratch']
  %s0 = inlined_call_operand.vmem [shape: bf16[16,32], index: 0, kind: input, shape index: {}]
  %s1 = inlined_call_operand.vmem [shape: bf16[128,32], index: 1, kind: input, shape index: {}]
  %s2 = inlined_call_operand.vmem [shape: f32[1,128], index: 2, kind: input, shape index: {}]
  %s3 = inlined_call_operand.vmem [shape: f32[16,128], index: 3, kind: output, shape index: {}]
  %s4 = sld [smem:[#allocation0]]
  $region22: #{transformer_forward.57} parent=0
    _
  %s6 = ssub.s32 1, %s4
  %s7 = scalar_select 0, %s6, %s4
  // Predicated region
  $region2: #{transformer_forward.57} parent=0 // pred_check
    _
  $region3: #{transformer_forward.57} parent=0 // pred_check_branch
    %9 = sbr.rel (0) target = $region5
  $region4: #{transformer_forward.57} parent=0 // pred_region
    _
  $region5: #{transformer_forward.57} parent=0 // pred_fallthru
    _
  // Predicated region
  $region6: #{transformer_forward.57} parent=0 // pred_check
    _
  $region7: #{transformer_forward.57} parent=0 // pred_check_branch
    %11 = sbr.rel (0) target = $region9
  $region8: #{transformer_forward.57} parent=0 // pred_region
    _
  $region9: #{transformer_forward.57} parent=0 // pred_fallthru
    _
  // Predicated region
  $region10: #{transformer_forward.57} parent=0 // pred_check
    _
  $region11: #{transformer_forward.57} parent=0 // pred_check_branch
    %13 = sbr.rel (0) target = $region13
  $region12: #{transformer_forward.57} parent=0 // pred_region
    _
  $region13: #{transformer_forward.57} parent=0 // pred_fallthru
    _
  %v15 = vld [vmem:[%s0] sm:$0xf]
  %v16 = vld [vmem:[%s0 + $0x4] sm:$0xf]
  %v17 = vld [vmem:[%s1] sm:$0xf]
  %v18 = vld [vmem:[%s1 + $0x4] sm:$0xf]
  %v19 = vld [vmem:[%s1 + $0x8] sm:$0xf]
  %v20 = vld [vmem:[%s1 + $0xc] sm:$0xf]
  %v21 = vld [vmem:[%s1 + $0x10] sm:$0xf]
  %v22 = vld [vmem:[%s1 + $0x14] sm:$0xf]
  %v23 = vld [vmem:[%s1 + $0x18] sm:$0xf]
  %v24 = vld [vmem:[%s1 + $0x1c] sm:$0xf]
  %v25 = vld [vmem:[%s1 + $0x20] sm:$0xf]
  %v26 = vld [vmem:[%s1 + $0x24] sm:$0xf]
  %v27 = vld [vmem:[%s1 + $0x28] sm:$0xf]
  %v28 = vld [vmem:[%s1 + $0x2c] sm:$0xf]
  %v29 = vld [vmem:[%s1 + $0x30] sm:$0xf]
  %v30 = vld [vmem:[%s1 + $0x34] sm:$0xf]
  %v31 = vld [vmem:[%s1 + $0x38] sm:$0xf]
  %v32 = vld [vmem:[%s1 + $0x3c] sm:$0xf]
  %v33 = vld [vmem:[%s2] sm:$0x1]
  %v35 = vlaneseq
  %v36 = vshrl.u32 %v35, 7
  %v37 = vsub.s32 0, %v36
  %v38 = vrot.slane %v33, %v37
  %v42 = vunpack.c.l.b16 %v15
  %v43 = vunpack.c.l.b16 %v16
  %v44 = vpack.c.b16 %v43, %v42
  %v61 = vunpack.c.l.b16 %v17
  %v62 = vunpack.c.l.b16 %v18
  %v63 = vunpack.c.l.b16 %v19
  %v64 = vunpack.c.l.b16 %v20
  %v65 = vunpack.c.l.b16 %v21
  %v66 = vunpack.c.l.b16 %v22
  %v67 = vunpack.c.l.b16 %v23
  %v68 = vunpack.c.l.b16 %v24
  %v69 = vunpack.c.l.b16 %v25
  %v70 = vunpack.c.l.b16 %v26
  %v71 = vunpack.c.l.b16 %v27
  %v72 = vunpack.c.l.b16 %v28
  %v73 = vunpack.c.l.b16 %v29
  %v74 = vunpack.c.l.b16 %v30
  %v75 = vunpack.c.l.b16 %v31
  %v76 = vunpack.c.l.b16 %v32
  %v77 = vpack.c.b16 %v62, %v61
  %v78 = vpack.c.b16 %v64, %v63
  %v79 = vpack.c.b16 %v66, %v65
  %v80 = vpack.c.b16 %v68, %v67
  %v81 = vpack.c.b16 %v70, %v69
  %v82 = vpack.c.b16 %v72, %v71
  %v83 = vpack.c.b16 %v74, %v73
  %v84 = vpack.c.b16 %v76, %v75
  %vm85 = vcmask 261120
  %v87 = vsel %vm85, %v44, 0
  %v90 = vsel %vm85, %v77, 0
  %v93 = vsel %vm85, %v78, 0
  %v96 = vsel %vm85, %v79, 0
  %v99 = vsel %vm85, %v80, 0
  %v102 = vsel %vm85, %v81, 0
  %v105 = vsel %vm85, %v82, 0
  %v108 = vsel %vm85, %v83, 0
  %v111 = vsel %vm85, %v84, 0
  %113 = vmatprep.subr.bf16.mxu0 0
  %114 = vmatpush1.bf16.xpose.msra.mxu0 %v111
  %115 = vmatprep.subr.bf16.mxu0 0
  %116 = vmatpush1.bf16.xpose.msra.mxu0 %v108
  %117 = vmatprep.subr.bf16.mxu0 0
  %118 = vmatpush1.bf16.xpose.msra.mxu0 %v105
  %119 = vmatprep.subr.bf16.mxu0 0
  %120 = vmatpush1.bf16.xpose.msra.mxu0 %v102
  %121 = vmatprep.subr.bf16.mxu0 0
  %122 = vmatpush1.bf16.xpose.msra.mxu0 %v99
  %123 = vmatprep.subr.bf16.mxu0 0
  %124 = vmatpush1.bf16.xpose.msra.mxu0 %v96
  %125 = vmatprep.subr.bf16.mxu0 0
  %126 = vmatpush1.bf16.xpose.msra.mxu0 %v93
  %127 = vmatprep.subr.bf16.mxu0 0
  %128 = vmatpush1.bf16.xpose.msra.mxu0 %v90
  %129 = vmatprep.subr.bf16.mxu0 0
  %130 = vmatpush2.bf16.xpose.msra.mxu0 0
  %131 = vmatprep.subr.bf16.mxu0 0
  %132 = vmatpush2.bf16.xpose.msra.mxu0 0
  %133 = vmatprep.subr.bf16.mxu0 0
  %134 = vmatpush2.bf16.xpose.msra.mxu0 0
  %135 = vmatprep.subr.bf16.mxu0 0
  %136 = vmatpush2.bf16.xpose.msra.mxu0 0
  %137 = vmatprep.subr.bf16.mxu0 0
  %138 = vmatpush2.bf16.xpose.msra.mxu0 0
  %139 = vmatprep.subr.bf16.mxu0 0
  %140 = vmatpush2.bf16.xpose.msra.mxu0 0
  %141 = vmatprep.subr.bf16.mxu0 0
  %142 = vmatpush2.bf16.xpose.msra.mxu0 0
  %143 = vmatprep.subr.bf16.mxu0 0
  %144 = vmatpush2.bf16.xpose.msra.mxu0 0
  %145 = vmatprep.mubr.bf16.mxu0 0
  %146 = vmatmul.mubr.bf16.gmra.mxu0 %v87
  %v147 = vpop.f32.mrf.mxu0
  %v148 = vadd.f32 %v38, %v147
  %v149 = vpop.f32.mrf.mxu0
  %v150 = vpop.f32.mrf.mxu0
  %v151 = vadd.f32 %v38, %v150
  %v152 = vpop.f32.mrf.mxu0
  %153 = vdwg.mxu0
  %154 = vst [vmem:[%s3] sm:$0xff] %v148
  %155 = vst [vmem:[%s3 + $0x8] sm:$0xff] %v151
  // Predicated region
  $region14: #{transformer_forward.57} parent=0 // pred_check
    _
  $region15: #{transformer_forward.57} parent=0 // pred_check_branch
    %157 = sbr.rel (0) target = $region17
  $region16: #{transformer_forward.57} parent=0 // pred_region
    _
  $region17: #{transformer_forward.57} parent=0 // pred_fallthru
    _
  // Predicated region
  $region18: #{transformer_forward.57} parent=0 // pred_check
    _
  $region19: #{transformer_forward.57} parent=0 // pred_check_branch
    %159 = sbr.rel (0) target = $region21
  $region20: #{transformer_forward.57} parent=0 // pred_region
    _
  $region21: #{transformer_forward.57} parent=0 // pred_fallthru
    _

// kernel: transformer_forward.33
$region0: #{transformer_forward.33}
  #allocation0 [shape = 'u32[]', space=smem, size = 0x4, offset = 0x4, fixed_abs, tag = 'smem constant byte address 0x4 - core index']
  #allocation1 [shape = 'u32[144,128]{1,0:T(1,128)}', space=vmem, size = 0x12000, scoped, tag = 'internal scratch']
  #allocation2 [shape = 'f32[16,32]{1,0:T(8,128)}', space=vmem, size = 0x2000, scoped, tag = 'scratch operand']
  %s0 = inlined_call_operand.vmem [shape: bf16[16,32], index: 0, kind: input, shape index: {}]
  %s1 = inlined_call_operand.vmem [shape: bf16[32,64], index: 1, kind: input, shape index: {}]
  %s2 = inlined_call_operand.vmem [shape: f32[1,64], index: 2, kind: input, shape index: {}]
  %s3 = inlined_call_operand.vmem [shape: bf16[64,32], index: 3, kind: input, shape index: {}]
  %s4 = inlined_call_operand.vmem [shape: f32[1,32], index: 4, kind: input, shape index: {}]
  %s5 = inlined_call_operand.vmem [shape: f32[1,32], index: 5, kind: input, shape index: {}]
  %s6 = inlined_call_operand.vmem [shape: f32[1,32], index: 6, kind: input, shape index: {}]
  %s7 = inlined_call_operand.vmem [shape: bf16[16,32], index: 7, kind: output, shape index: {}]
  %s8 = sld [smem:[#allocation0]]
  $region46: #{transformer_forward.33} parent=0
    _
  %s10 = ssub.s32 1, %s8
  %s11 = scalar_select 0, %s10, %s8
  // Predicated region
  $region2: #{transformer_forward.33} parent=0 // pred_check
    _
  $region3: #{transformer_forward.33} parent=0 // pred_check_branch
    %13 = sbr.rel (0) target = $region5
  $region4: #{transformer_forward.33} parent=0 // pred_region
    _
  $region5: #{transformer_forward.33} parent=0 // pred_fallthru
    _
  // Predicated region
  $region6: #{transformer_forward.33} parent=0 // pred_check
    _
  $region7: #{transformer_forward.33} parent=0 // pred_check_branch
    %15 = sbr.rel (0) target = $region9
  $region8: #{transformer_forward.33} parent=0 // pred_region
    _
  $region9: #{transformer_forward.33} parent=0 // pred_fallthru
    _
  // Predicated region
  $region10: #{transformer_forward.33} parent=0 // pred_check
    _
  $region11: #{transformer_forward.33} parent=0 // pred_check_branch
    %17 = sbr.rel (0) target = $region13
  $region12: #{transformer_forward.33} parent=0 // pred_region
    _
  $region13: #{transformer_forward.33} parent=0 // pred_fallthru
    _
  // Predicated region
  $region14: #{transformer_forward.33} parent=0 // pred_check
    _
  $region15: #{transformer_forward.33} parent=0 // pred_check_branch
    %19 = sbr.rel (0) target = $region17
  $region16: #{transformer_forward.33} parent=0 // pred_region
    _
  $region17: #{transformer_forward.33} parent=0 // pred_fallthru
    _
  // Predicated region
  $region18: #{transformer_forward.33} parent=0 // pred_check
    _
  $region19: #{transformer_forward.33} parent=0 // pred_check_branch
    %21 = sbr.rel (0) target = $region21
  $region20: #{transformer_forward.33} parent=0 // pred_region
    _
  $region21: #{transformer_forward.33} parent=0 // pred_fallthru
    _
  // Predicated region
  $region22: #{transformer_forward.33} parent=0 // pred_check
    _
  $region23: #{transformer_forward.33} parent=0 // pred_check_branch
    %23 = sbr.rel (0) target = $region25
  $region24: #{transformer_forward.33} parent=0 // pred_region
    _
  $region25: #{transformer_forward.33} parent=0 // pred_fallthru
    _
  // Predicated region
  $region26: #{transformer_forward.33} parent=0 // pred_check
    _
  $region27: #{transformer_forward.33} parent=0 // pred_check_branch
    %25 = sbr.rel (0) target = $region29
  $region28: #{transformer_forward.33} parent=0 // pred_region
    _
  $region29: #{transformer_forward.33} parent=0 // pred_fallthru
    _
  %p27 = scmp.eq.s32.totalorder 0, 0
  // Predicated region
  $region30: #{transformer_forward.33} parent=0 // pred_check
    %p28 = pneg %p27
  $region31: #{transformer_forward.33} parent=0 // pred_check_branch
    %30 = sbr.rel (%p28) target = $region33
  $region32: #{transformer_forward.33} parent=0 // pred_region
    %vm31 = vcmask 261120
    %32 = vst.msk [vmem:[#allocation2] sm:$0xff] %vm31, 0.0
    %33 = vst.msk [vmem:[#allocation2 + $0x8] sm:$0xff] %vm31, 0.0
  $region33: #{transformer_forward.33} parent=0 // pred_fallthru
    _
  %v34 = vld [vmem:[%s0] sm:$0xf]
  %v35 = vld [vmem:[%s0 + $0x4] sm:$0xf]
  %v36 = vld [vmem:[%s1] sm:$0xf]
  %v37 = vld [vmem:[%s1 + $0x4] sm:$0xf]
  %v38 = vld [vmem:[%s1 + $0x8] sm:$0xf]
  %v39 = vld [vmem:[%s1 + $0xc] sm:$0xf]
  %v40 = vld [vmem:[%s2] sm:$0x1]
  %v42 = vlaneseq
  %v43 = vshrl.u32 %v42, 7
  %v44 = vsub.s32 0, %v43
  %v45 = vrot.slane %v40, %v44
  %v49 = vunpack.c.l.b16 %v34
  %v50 = vunpack.c.l.b16 %v35
  %v51 = vpack.c.b16 %v50, %v49
  %v56 = vunpack.c.l.b16 %v36
  %v57 = vunpack.c.l.b16 %v37
  %v58 = vunpack.c.l.b16 %v38
  %v59 = vunpack.c.l.b16 %v39
  %v60 = vpack.c.b16 %v57, %v56
  %v61 = vpack.c.b16 %v59, %v58
  %vm64 = vcmask 261120
  %v66 = vsel %vm64, %v51, 0
  %68 = vmatprep.subr.bf16.mxu0 0
  %69 = vmatpush1.bf16.msra.mxu0 0
  %70 = vmatprep.subr.bf16.mxu0 0
  %71 = vmatpush1.bf16.msra.mxu0 0
  %72 = vmatprep.subr.bf16.mxu0 0
  %73 = vmatpush1.bf16.msra.mxu0 0
  %74 = vmatprep.subr.bf16.mxu0 0
  %75 = vmatpush1.bf16.msra.mxu0 0
  %76 = vmatprep.subr.bf16.mxu0 0
  %77 = vmatpush1.bf16.msra.mxu0 0
  %78 = vmatprep.subr.bf16.mxu0 0
  %79 = vmatpush1.bf16.msra.mxu0 0
  %80 = vmatprep.subr.bf16.mxu0 0
  %81 = vmatpush1.bf16.msra.mxu0 %v61
  %82 = vmatprep.subr.bf16.mxu0 0
  %83 = vmatpush1.bf16.msra.mxu0 %v60
  %84 = vmatprep.subr.bf16.mxu0 0
  %85 = vmatpush2.bf16.msra.mxu0 0
  %86 = vmatprep.subr.bf16.mxu0 0
  %87 = vmatpush2.bf16.msra.mxu0 0
  %88 = vmatprep.subr.bf16.mxu0 0
  %89 = vmatpush2.bf16.msra.mxu0 0
  %90 = vmatprep.subr.bf16.mxu0 0
  %91 = vmatpush2.bf16.msra.mxu0 0
  %92 = vmatprep.subr.bf16.mxu0 0
  %93 = vmatpush2.bf16.msra.mxu0 0
  %94 = vmatprep.subr.bf16.mxu0 0
  %95 = vmatpush2.bf16.msra.mxu0 0
  %96 = vmatprep.subr.bf16.mxu0 0
  %97 = vmatpush2.bf16.msra.mxu0 0
  %98 = vmatprep.subr.bf16.mxu0 0
  %99 = vmatpush2.bf16.msra.mxu0 0
  %100 = vmatprep.mubr.bf16.mxu0 0
  %101 = vmatmul.mubr.bf16.gmra.mxu0 %v66
  %v102 = vpop.f32.mrf.mxu0
  %v103 = vadd.f32 %v45, %v102
  %v104 = vpop.f32.mrf.mxu0
  %v105 = vpop.f32.mrf.mxu0
  %v106 = vadd.f32 %v45, %v105
  %v107 = vpop.f32.mrf.mxu0
  %108 = vdwg.mxu0
  %v109 = vmax.f32 %v103, 0.0
  %v110 = vmax.f32 %v106, 0.0
  %v111 = vld [vmem:[#allocation2] sm:$0xff]
  %v112 = vld [vmem:[#allocation2 + $0x8] sm:$0xff]
  %v113 = vpack.c.bf16 %v110, %v109
  %v114 = vld [vmem:[%s3] sm:$0xf]
  %v115 = vld [vmem:[%s3 + $0x4] sm:$0xf]
  %v116 = vld [vmem:[%s3 + $0x8] sm:$0xf]
  %v117 = vld [vmem:[%s3 + $0xc] sm:$0xf]
  %v118 = vld [vmem:[%s3 + $0x10] sm:$0xf]
  %v119 = vld [vmem:[%s3 + $0x14] sm:$0xf]
  %v120 = vld [vmem:[%s3 + $0x18] sm:$0xf]
  %v121 = vld [vmem:[%s3 + $0x1c] sm:$0xf]
  %v130 = vunpack.c.l.b16 %v114
  %v131 = vunpack.c.l.b16 %v115
  %v132 = vunpack.c.l.b16 %v116
  %v133 = vunpack.c.l.b16 %v117
  %v134 = vunpack.c.l.b16 %v118
  %v135 = vunpack.c.l.b16 %v119
  %v136 = vunpack.c.l.b16 %v120
  %v137 = vunpack.c.l.b16 %v121
  %v138 = vpack.c.b16 %v131, %v130
  %v139 = vpack.c.b16 %v133, %v132
  %v140 = vpack.c.b16 %v135, %v134
  %v141 = vpack.c.b16 %v137, %v136
  %vm146 = vcmask 523264
  %v148 = vsel %vm146, %v113, 0
  %150 = vmatprep.subr.bf16.mxu0 0
  %151 = vmatpush1.bf16.msra.mxu0 0
  %152 = vmatprep.subr.bf16.mxu0 0
  %153 = vmatpush1.bf16.msra.mxu0 0
  %154 = vmatprep.subr.bf16.mxu0 0
  %155 = vmatpush1.bf16.msra.mxu0 0
  %156 = vmatprep.subr.bf16.mxu0 0
  %157 = vmatpush1.bf16.msra.mxu0 0
  %158 = vmatprep.subr.bf16.mxu0 0
  %159 = vmatpush1.bf16.msra.mxu0 %v141
  %160 = vmatprep.subr.bf16.mxu0 0
  %161 = vmatpush1.bf16.msra.mxu0 %v140
  %162 = vmatprep.subr.bf16.mxu0 0
  %163 = vmatpush1.bf16.msra.mxu0 %v139
  %164 = vmatprep.subr.bf16.mxu0 0
  %165 = vmatpush1.bf16.msra.mxu0 %v138
  %166 = vmatprep.subr.bf16.mxu0 0
  %167 = vmatpush2.bf16.msra.mxu0 0
  %168 = vmatprep.subr.bf16.mxu0 0
  %169 = vmatpush2.bf16.msra.mxu0 0
  %170 = vmatprep.subr.bf16.mxu0 0
  %171 = vmatpush2.bf16.msra.mxu0 0
  %172 = vmatprep.subr.bf16.mxu0 0
  %173 = vmatpush2.bf16.msra.mxu0 0
  %174 = vmatprep.subr.bf16.mxu0 0
  %175 = vmatpush2.bf16.msra.mxu0 0
  %176 = vmatprep.subr.bf16.mxu0 0
  %177 = vmatpush2.bf16.msra.mxu0 0
  %178 = vmatprep.subr.bf16.mxu0 0
  %179 = vmatpush2.bf16.msra.mxu0 0
  %180 = vmatprep.subr.bf16.mxu0 0
  %181 = vmatpush2.bf16.msra.mxu0 0
  %182 = vmatprep.mubr.bf16.mxu0 0
  %183 = vmatmul.mubr.bf16.gmra.mxu0 %v148
  %v184 = vpop.f32.mrf.mxu0
  %v185 = vadd.f32 0.0, %v184
  %v186 = vpop.f32.mrf.mxu0
  %v187 = vpop.f32.mrf.mxu0
  %v188 = vadd.f32 0.0, %v187
  %v189 = vpop.f32.mrf.mxu0
  %190 = vdwg.mxu0
  %v191 = vadd.f32 %v111, %v185
  %v192 = vadd.f32 %v112, %v188
  %193 = vst.msk [vmem:[#allocation2] sm:$0xff] %vm64, %v191
  %194 = vst.msk [vmem:[#allocation2 + $0x8] sm:$0xff] %vm64, %v192
  // Predicated region
  $region34: #{transformer_forward.33} parent=0 // pred_check
    %p195 = pneg %p27
  $region35: #{transformer_forward.33} parent=0 // pred_check_branch
    %197 = sbr.rel (%p195) target = $region37
  $region36: #{transformer_forward.33} parent=0 // pred_region
    %v198 = vld [vmem:[%s0] sm:$0xf]
    %v199 = vld [vmem:[%s0 + $0x4] sm:$0xf]
    %v200 = vunpack.c.l.bf16 %v198
    %v201 = vunpack.c.l.bf16 %v199
    %v202 = vld [vmem:[#allocation2] sm:$0xff]
    %v203 = vld [vmem:[#allocation2 + $0x8] sm:$0xff]
    %v204 = vadd.f32 %v200, %v202
    %v205 = vadd.f32 %v201, %v203
    %v206 = vld [vmem:[%s4] sm:$0x1]
    %v208 = vlaneseq
    %v209 = vshrl.u32 %v208, 7
    %v210 = vsub.s32 0, %v209
    %v211 = vrot.slane %v206, %v210
    %v213 = vadd.f32 %v204, %v211
    %v214 = vadd.f32 %v205, %v211
    %v215 = vsel %vm64, %v213, 0.0
    %216 = vadd.xlane.f32.xlu0 %v215
    %v217 = vpop.xlane.xlu0 %216
    %v218 = vsel %vm64, %v214, 0.0
    %219 = vadd.xlane.f32.xlu0 %v218
    %v220 = vpop.xlane.xlu0 %219
    %v221 = vrcp.pop 32.0
    %v222 = vmul.f32 %v217, %v221
    %v223 = vmul.f32 %v220, %v221
    %v224 = vsub.f32 %v213, %v222
    %v225 = vsub.f32 %v214, %v223
    %v226 = vmul.f32 %v224, %v224
    %v227 = vmul.f32 %v225, %v225
    %v228 = vsel %vm64, %v226, 0.0
    %229 = vadd.xlane.f32.xlu0 %v228
    %v230 = vpop.xlane.xlu0 %229
    %v231 = vsel %vm64, %v227, 0.0
    %232 = vadd.xlane.f32.xlu0 %v231
    %v233 = vpop.xlane.xlu0 %232
    %v234 = vmul.f32 %v230, %v221
    %v235 = vmul.f32 %v233, %v221
    %v236 = vadd.f32 %v234, 1e-05
    %v237 = vadd.f32 %v235, 1e-05
    %v238 = vrsqrt.pop %v236
    %v239 = vrsqrt.pop %v237
    %v240 = vmul.f32 %v224, %v238
    %v241 = vmul.f32 %v225, %v239
    %v242 = vld [vmem:[%s5] sm:$0x1]
    %v244 = vlaneseq
    %v245 = vshrl.u32 %v244, 7
    %v246 = vsub.s32 0, %v245
    %v247 = vrot.slane %v242, %v246
    %v249 = vmul.f32 %v240, %v247
    %v250 = vmul.f32 %v241, %v247
    %v251 = vld [vmem:[%s6] sm:$0x1]
    %v253 = vlaneseq
    %v254 = vshrl.u32 %v253, 7
    %v255 = vsub.s32 0, %v254
    %v256 = vrot.slane %v251, %v255
    %v258 = vadd.f32 %v249, %v256
    %v259 = vadd.f32 %v250, %v256
    %v260 = vpack.c.bf16 %v259, %v258
    %v262 = vunpack.c.l.b16 %v260
    %v263 = vunpack.c.h.b16 %v260
    %v264 = vpack.c.b16 %v262, %v262
    %v265 = vpack.c.b16 %v263, %v263
    %vm268 = vcmask 257024
    %269 = vst.msk [vmem:[%s7] sm:$0xf] %vm268, %v264
    %270 = vst.msk [vmem:[%s7 + $0x4] sm:$0xf] %vm268, %v265
  $region37: #{transformer_forward.33} parent=0 // pred_fallthru
    _
  // Predicated region
  $region38: #{transformer_forward.33} parent=0 // pred_check
    _
  $region39: #{transformer_forward.33} parent=0 // pred_check_branch
    %272 = sbr.rel (0) target = $region41
  $region40: #{transformer_forward.33} parent=0 // pred_region
    _
  $region41: #{transformer_forward.33} parent=0 // pred_fallthru
    _
  // Predicated region
  $region42: #{transformer_forward.33} parent=0 // pred_check
    _
  $region43: #{transformer_forward.33} parent=0 // pred_check_branch
    %274 = sbr.rel (0) target = $region45
  $region44: #{transformer_forward.33} parent=0 // pred_region
    _
  $region45: #{transformer_forward.33} parent=0 // pred_fallthru
    _

// kernel: transformer_forward.41
$region0: #{transformer_forward.41}
  #allocation0 [shape = 'u32[]', space=smem, size = 0x4, offset = 0x4, fixed_abs, tag = 'smem constant byte address 0x4 - core index']
  #allocation1 [shape = 'u32[144,128]{1,0:T(1,128)}', space=vmem, size = 0x12000, scoped, tag = 'internal scratch']
  #allocation2 [shape = 'f32[8,1]{1,0:T(8,128)}', space=vmem, size = 0x1000, scoped, tag = 'scratch operand']
  #allocation3 [shape = 'f32[8,1]{1,0:T(8,128)}', space=vmem, size = 0x1000, scoped, tag = 'scratch operand']
  #allocation4 [shape = 'f32[8,8]{1,0:T(8,128)}', space=vmem, size = 0x1000, scoped, tag = 'scratch operand']
  %s0 = inlined_call_operand.vmem [shape: bf16[2,4,8,8], index: 0, kind: input, shape index: {}]
  %s1 = inlined_call_operand.vmem [shape: bf16[2,4,8,8], index: 1, kind: input, shape index: {}]
  %s2 = inlined_call_operand.vmem [shape: bf16[2,4,8,8], index: 2, kind: input, shape index: {}]
  %s3 = inlined_call_operand.vmem [shape: bf16[8,8], index: 3, kind: input, shape index: {}]
  %s4 = inlined_call_operand.vmem [shape: bf16[2,4,8,8], index: 4, kind: output, shape index: {}]
  %s5 = sld [smem:[#allocation0]]
  $region57: #{transformer_forward.41} parent=0
    _
  %s7 = ssub.s32 1, %s5
  %s8 = scalar_select 0, %s7, %s5
  loop: start=0, step=1, limit=10
  $region2: #{transformer_forward.41} parent=0 // loop_pre_header
    _
  $region3: #{transformer_forward.41} parent=0 // loop_header
    %s10 = sphi 0, %s14
    %p11 = scmp.ge.s32.totalorder %s10, 10
    %s17 = sphi 0, %s43
    %s18 = sphi 0, %s39
    %s19 = sphi 0, %s35
    %s20 = sphi 0, %s31
    %s21 = sphi 0, %s17
    %s22 = sphi 0, %s18
    %s23 = sphi 0, %s19
    %s24 = sphi 0, %s20
    %s25 = sphi 0, %s21
    %s26 = sphi 0, %s22
    %s27 = sphi 0, %s23
    %s28 = sphi 0, %s24
    %s50 = sphi 0, %s52
    %s53 = sphi 0, %s50
    %s54 = sphi 0, %s53
    %s70 = sphi 0, %s54
    %s80 = sphi 0, %s82
    %s83 = sphi 0, %s80
    %s84 = sphi 0, %s83
    %s100 = sphi 0, %s84
    %s110 = sphi 0, %s112
    %s113 = sphi 0, %s110
    %s114 = sphi 0, %s113
    %s130 = sphi 0, %s114
    %s138 = sphi 0, %s140
    %s141 = sphi 0, %s138
    %s142 = sphi 0, %s141
    %s158 = sphi 0, %s142
    %s168 = sphi 0, %s170
    %s171 = sphi 0, %s168
    %s172 = sphi 0, %s171
    %s188 = sphi 0, %s172
  $region4: #{transformer_forward.41} parent=0 // loop_header_branch
    %13 = sbr.rel (%p11) target = $region8
  $region5: #{transformer_forward.41} parent=0 // loop_body
    %s15 = ssub.s32 %s10, 1
    %s16 = ssub.s32 %s10, 2
    %s29 = sadd.s32 1, %s20
    %p30 = scmp.ge.s32.totalorder %s29, 1
    %s31 = scalar_select %p30, 0, %s29
    %s32 = sadd.s32 1, %s19
    %s33 = scalar_select %p30, %s32, %s19
    %p34 = scmp.ge.s32.totalorder %s33, 1
    %s35 = scalar_select %p34, 0, %s33
    %s36 = sadd.s32 1, %s18
    %s37 = scalar_select %p34, %s36, %s18
    %p38 = scmp.ge.s32.totalorder %s37, 4
    %s39 = scalar_select %p38, 0, %s37
    %s40 = sadd.s32 1, %s17
    %s41 = scalar_select %p38, %s40, %s17
    %p42 = scmp.ge.s32.totalorder %s41, 2
    %s43 = scalar_select %p42, 0, %s41
    %s44 = ssub.s32 %s17, %s43
    %s45 = ssub.s32 %s18, %s39
    %s46 = sor.u32 %s44, %s45
    %s47 = ssub.s32 %s19, %s35
    %s48 = sor.u32 %s46, %s47
    %p49 = scmp.eq.s32.totalorder %s48, 0
    %s51 = sadd.s32 %s50, 1
    %s52 = scalar_select %p49, %s50, %s51
    %p55 = pneg %p49
    %p56 = scmp.eq.s32.totalorder %s10, 7
    %p57 = por %p55, %p56
    %p58 = scmp.ne.s32.totalorder %s50, %s53
    %p59 = scmp.eq.s32.totalorder %s10, 0
    %p60 = por %p58, %p59
    %p61 = scmp.ne.s32.totalorder %s50, %s53
    %p62 = scmp.eq.s32.totalorder %s15, 7
    %p63 = por %p61, %p62
    %p64 = scmp.ne.s32.totalorder %s53, %s54
    %p65 = scmp.eq.s32.totalorder %s15, 0
    %p66 = por %p64, %p65
    %p67 = scmp.ne.s32.totalorder %s53, %s54
    %p68 = scmp.eq.s32.totalorder %s16, 7
    %p69 = por %p67, %p68
    %p71 = scmp.ne.s32.totalorder %s54, %s70
    %p72 = scmp.eq.s32.totalorder %s16, 0
    %p73 = por %p71, %p72
    %s74 = ssub.s32 %s17, %s43
    %s75 = ssub.s32 %s18, %s39
    %s76 = sor.u32 %s74, %s75
    %s77 = ssub.s32 %s20, %s31
    %s78 = sor.u32 %s76, %s77
    %p79 = scmp.eq.s32.totalorder %s78, 0
    %s81 = sadd.s32 %s80, 1
    %s82 = scalar_select %p79, %s80, %s81
    %p85 = pneg %p79
    %p86 = scmp.eq.s32.totalorder %s10, 7
    %p87 = por %p85, %p86
    %p88 = scmp.ne.s32.totalorder %s80, %s83
    %p89 = scmp.eq.s32.totalorder %s10, 0
    %p90 = por %p88, %p89
    %p91 = scmp.ne.s32.totalorder %s80, %s83
    %p92 = scmp.eq.s32.totalorder %s15, 7
    %p93 = por %p91, %p92
    %p94 = scmp.ne.s32.totalorder %s83, %s84
    %p95 = scmp.eq.s32.totalorder %s15, 0
    %p96 = por %p94, %p95
    %p97 = scmp.ne.s32.totalorder %s83, %s84
    %p98 = scmp.eq.s32.totalorder %s16, 7
    %p99 = por %p97, %p98
    %p101 = scmp.ne.s32.totalorder %s84, %s100
    %p102 = scmp.eq.s32.totalorder %s16, 0
    %p103 = por %p101, %p102
    %s104 = ssub.s32 %s17, %s43
    %s105 = ssub.s32 %s18, %s39
    %s106 = sor.u32 %s104, %s105
    %s107 = ssub.s32 %s20, %s31
    %s108 = sor.u32 %s106, %s107
    %p109 = scmp.eq.s32.totalorder %s108, 0
    %s111 = sadd.s32 %s110, 1
    %s112 = scalar_select %p109, %s110, %s111
    %p115 = pneg %p109
    %p116 = scmp.eq.s32.totalorder %s10, 7
    %p117 = por %p115, %p116
    %p118 = scmp.ne.s32.totalorder %s110, %s113
    %p119 = scmp.eq.s32.totalorder %s10, 0
    %p120 = por %p118, %p119
    %p121 = scmp.ne.s32.totalorder %s110, %s113
    %p122 = scmp.eq.s32.totalorder %s15, 7
    %p123 = por %p121, %p122
    %p124 = scmp.ne.s32.totalorder %s113, %s114
    %p125 = scmp.eq.s32.totalorder %s15, 0
    %p126 = por %p124, %p125
    %p127 = scmp.ne.s32.totalorder %s113, %s114
    %p128 = scmp.eq.s32.totalorder %s16, 7
    %p129 = por %p127, %p128
    %p131 = scmp.ne.s32.totalorder %s114, %s130
    %p132 = scmp.eq.s32.totalorder %s16, 0
    %p133 = por %p131, %p132
    %s134 = ssub.s32 %s19, %s35
    %s135 = ssub.s32 %s20, %s31
    %s136 = sor.u32 %s134, %s135
    %p137 = scmp.eq.s32.totalorder %s136, 0
    %s139 = sadd.s32 %s138, 1
    %s140 = scalar_select %p137, %s138, %s139
    %p143 = pneg %p137
    %p144 = scmp.eq.s32.totalorder %s10, 7
    %p145 = por %p143, %p144
    %p146 = scmp.ne.s32.totalorder %s138, %s141
    %p147 = scmp.eq.s32.totalorder %s10, 0
    %p148 = por %p146, %p147
    %p149 = scmp.ne.s32.totalorder %s138, %s141
    %p150 = scmp.eq.s32.totalorder %s15, 7
    %p151 = por %p149, %p150
    %p152 = scmp.ne.s32.totalorder %s141, %s142
    %p153 = scmp.eq.s32.totalorder %s15, 0
    %p154 = por %p152, %p153
    %p155 = scmp.ne.s32.totalorder %s141, %s142
    %p156 = scmp.eq.s32.totalorder %s16, 7
    %p157 = por %p155, %p156
    %p159 = scmp.ne.s32.totalorder %s142, %s158
    %p160 = scmp.eq.s32.totalorder %s16, 0
    %p161 = por %p159, %p160
    %s162 = ssub.s32 %s17, %s43
    %s163 = ssub.s32 %s18, %s39
    %s164 = sor.u32 %s162, %s163
    %s165 = ssub.s32 %s19, %s35
    %s166 = sor.u32 %s164, %s165
    %p167 = scmp.eq.s32.totalorder %s166, 0
    %s169 = sadd.s32 %s168, 1
    %s170 = scalar_select %p167, %s168, %s169
    %p173 = pneg %p167
    %p174 = scmp.eq.s32.totalorder %s10, 7
    %p175 = por %p173, %p174
    %p176 = scmp.ne.s32.totalorder %s168, %s171
    %p177 = scmp.eq.s32.totalorder %s10, 0
    %p178 = por %p176, %p177
    %p179 = scmp.ne.s32.totalorder %s168, %s171
    %p180 = scmp.eq.s32.totalorder %s15, 7
    %p181 = por %p179, %p180
    %p182 = scmp.ne.s32.totalorder %s171, %s172
    %p183 = scmp.eq.s32.totalorder %s15, 0
    %p184 = por %p182, %p183
    %p185 = scmp.ne.s32.totalorder %s171, %s172
    %p186 = scmp.eq.s32.totalorder %s16, 7
    %p187 = por %p185, %p186
    %p189 = scmp.ne.s32.totalorder %s172, %s188
    %p190 = scmp.eq.s32.totalorder %s16, 0
    %p191 = por %p189, %p190
    %p192 = scmp.le.s32.totalorder 1, %s10
    %p193 = scmp.lt.s32.totalorder %s10, 9
    %p194 = pnand %p192, %p193
    %p195 = pneg %p194
    // Predicated region
    $region9: #{transformer_forward.41} parent=5 // pred_check
      _
    $region10: #{transformer_forward.41} parent=5 // pred_check_branch
      %197 = sbr.rel (%p194) target = $region12
    $region11: #{transformer_forward.41} parent=5 // pred_region
      %s198 = ssub.s32 %s10, 1
      // Predicated region
      $region13: #{transformer_forward.41} parent=11 // pred_check
        %p199 = pneg %p154
      $region14: #{transformer_forward.41} parent=11 // pred_check_branch
        %201 = sbr.rel (%p199) target = $region16
      $region15: #{transformer_forward.41} parent=11 // pred_region
        %p202 = scmp.lt.s32.totalorder %s23, 0
        %s203 = scalar_select %p202, %s23, 0
        %p204 = scmp.lt.s32.totalorder %s24, 0
        %s205 = scalar_select %p204, %s24, 0
        %s206 = sadd.s32 %s205, %s203
        %s207 = smul.addr %s206, 4
        %s208 = scalar_lea.vmem %s3, %s207
      $region16: #{transformer_forward.41} parent=11 // pred_fallthru
        _
    $region12: #{transformer_forward.41} parent=5 // pred_fallthru
      _
    %p209 = scmp.lt.s32.totalorder %s10, 8
    // Predicated region
    $region17: #{transformer_forward.41} parent=5 // pred_check
      %p210 = pneg %p209
    $region18: #{transformer_forward.41} parent=5 // pred_check_branch
      %212 = sbr.rel (%p210) target = $region20
    $region19: #{transformer_forward.41} parent=5 // pred_region
      // Predicated region
      $region21: #{transformer_forward.41} parent=19 // pred_check
        %p213 = pneg %p60
      $region22: #{transformer_forward.41} parent=19 // pred_check_branch
        %215 = sbr.rel (%p213) target = $region24
      $region23: #{transformer_forward.41} parent=19 // pred_region
        %p216 = scmp.lt.s32.totalorder %s17, 1
        %s217 = scalar_select %p216, %s17, 1
        %p218 = scmp.lt.s32.totalorder %s18, 3
        %s219 = scalar_select %p218, %s18, 3
        %p220 = scmp.lt.s32.totalorder %s19, 0
        %s221 = scalar_select %p220, %s19, 0
        %s222 = sadd.s32 %s221, %s219
        %s223 = smul.addr %s217, 4
        %s224 = sadd.s32 %s222, %s223
        %s225 = smul.addr %s224, 4
        %s226 = scalar_lea.vmem %s0, %s225
      $region24: #{transformer_forward.41} parent=19 // pred_fallthru
        _
      // Predicated region
      $region25: #{transformer_forward.41} parent=19 // pred_check
        %p227 = pneg %p90
      $region26: #{transformer_forward.41} parent=19 // pred_check_branch
        %229 = sbr.rel (%p227) target = $region28
      $region27: #{transformer_forward.41} parent=19 // pred_region
        %p230 = scmp.lt.s32.totalorder %s17, 1
        %s231 = scalar_select %p230, %s17, 1
        %p232 = scmp.lt.s32.totalorder %s18, 3
        %s233 = scalar_select %p232, %s18, 3
        %p234 = scmp.lt.s32.totalorder %s20, 0
        %s235 = scalar_select %p234, %s20, 0
        %s236 = sadd.s32 %s235, %s233
        %s237 = smul.addr %s231, 4
        %s238 = sadd.s32 %s236, %s237
        %s239 = smul.addr %s238, 4
        %s240 = scalar_lea.vmem %s1, %s239
      $region28: #{transformer_forward.41} parent=19 // pred_fallthru
        _
      // Predicated region
      $region29: #{transformer_forward.41} parent=19 // pred_check
        %p241 = pneg %p120
      $region30: #{transformer_forward.41} parent=19 // pred_check_branch
        %243 = sbr.rel (%p241) target = $region32
      $region31: #{transformer_forward.41} parent=19 // pred_region
        %p244 = scmp.lt.s32.totalorder %s17, 1
        %s245 = scalar_select %p244, %s17, 1
        %p246 = scmp.lt.s32.totalorder %s18, 3
        %s247 = scalar_select %p246, %s18, 3
        %p248 = scmp.lt.s32.totalorder %s20, 0
        %s249 = scalar_select %p248, %s20, 0
        %s250 = sadd.s32 %s249, %s247
        %s251 = smul.addr %s245, 4
        %s252 = sadd.s32 %s250, %s251
        %s253 = smul.addr %s252, 4
        %s254 = scalar_lea.vmem %s2, %s253
      $region32: #{transformer_forward.41} parent=19 // pred_fallthru
        _
    $region20: #{transformer_forward.41} parent=5 // pred_fallthru
      _
    %p255 = scmp.le.s32.totalorder 1, %s10
    %p256 = scmp.lt.s32.totalorder %s10, 9
    %p257 = pnand %p255, %p256
    %p258 = pneg %p257
    // Predicated region
    $region33: #{transformer_forward.41} parent=5 // pred_check
      _
    $region34: #{transformer_forward.41} parent=5 // pred_check_branch
      %260 = sbr.rel (%p257) target = $region36
    $region35: #{transformer_forward.41} parent=5 // pred_region
      %s261 = ssub.s32 %s10, 1
      %p262 = scmp.lt.s32.totalorder %s21, 1
      %s263 = scalar_select %p262, %s21, 1
      %p264 = scmp.lt.s32.totalorder %s22, 3
      %s265 = scalar_select %p264, %s22, 3
      %p266 = scmp.lt.s32.totalorder %s23, 0
      %s267 = scalar_select %p266, %s23, 0
      %s268 = sadd.s32 %s267, %s265
      %s269 = smul.addr %s263, 4
      %s270 = sadd.s32 %s268, %s269
      %s271 = smul.addr %s270, 4
      %s272 = scalar_lea.vmem %s0, %s271
      %p273 = pneg %p66
      %p274 = pneg %p63
      %p275 = scmp.lt.s32.totalorder %s21, 1
      %s276 = scalar_select %p275, %s21, 1
      %p277 = scmp.lt.s32.totalorder %s22, 3
      %s278 = scalar_select %p277, %s22, 3
      %p279 = scmp.lt.s32.totalorder %s24, 0
      %s280 = scalar_select %p279, %s24, 0
      %s281 = sadd.s32 %s280, %s278
      %s282 = smul.addr %s276, 4
      %s283 = sadd.s32 %s281, %s282
      %s284 = smul.addr %s283, 4
      %s285 = scalar_lea.vmem %s1, %s284
      %p286 = pneg %p96
      %p287 = pneg %p93
      %p288 = scmp.lt.s32.totalorder %s21, 1
      %s289 = scalar_select %p288, %s21, 1
      %p290 = scmp.lt.s32.totalorder %s22, 3
      %s291 = scalar_select %p290, %s22, 3
      %p292 = scmp.lt.s32.totalorder %s24, 0
      %s293 = scalar_select %p292, %s24, 0
      %s294 = sadd.s32 %s293, %s291
      %s295 = smul.addr %s289, 4
      %s296 = sadd.s32 %s294, %s295
      %s297 = smul.addr %s296, 4
      %s298 = scalar_lea.vmem %s2, %s297
      %p299 = pneg %p126
      %p300 = pneg %p123
      %p301 = scmp.lt.s32.totalorder %s23, 0
      %s302 = scalar_select %p301, %s23, 0
      %p303 = scmp.lt.s32.totalorder %s24, 0
      %s304 = scalar_select %p303, %s24, 0
      %s305 = sadd.s32 %s304, %s302
      %s306 = smul.addr %s305, 4
      %s307 = scalar_lea.vmem %s3, %s306
      %p308 = pneg %p154
      %p309 = pneg %p151
      %p310 = pneg %p184
      %p311 = pneg %p181
      %p312 = scmp.lt.s32.totalorder %s21, 1
      %s313 = scalar_select %p312, %s21, 1
      %p314 = scmp.lt.s32.totalorder %s22, 3
      %s315 = scalar_select %p314, %s22, 3
      %p316 = scmp.lt.s32.totalorder %s23, 0
      %s317 = scalar_select %p316, %s23, 0
      %s318 = sadd.s32 %s317, %s315
      %s319 = smul.addr %s313, 4
      %s320 = sadd.s32 %s318, %s319
      %s321 = smul.addr %s320, 4
      %s322 = scalar_lea.vmem %s4, %s321
      %p323 = scmp.lt.s32.totalorder %s21, 1
      %s324 = scalar_select %p323, %s21, 1
      %p325 = scmp.lt.s32.totalorder %s22, 3
      %s326 = scalar_select %p325, %s22, 3
      %p327 = scmp.lt.s32.totalorder %s23, 0
      %s328 = scalar_select %p327, %s23, 0
      %s329 = sadd.s32 %s328, %s326
      %s330 = smul.addr %s324, 4
      %s331 = sadd.s32 %s329, %s330
      %s332 = smul.addr %s331, 4
      %s333 = scalar_lea.vmem %s0, %s332
      %p334 = scmp.lt.s32.totalorder %s21, 1
      %s335 = scalar_select %p334, %s21, 1
      %p336 = scmp.lt.s32.totalorder %s22, 3
      %s337 = scalar_select %p336, %s22, 3
      %p338 = scmp.lt.s32.totalorder %s24, 0
      %s339 = scalar_select %p338, %s24, 0
      %s340 = sadd.s32 %s339, %s337
      %s341 = smul.addr %s335, 4
      %s342 = sadd.s32 %s340, %s341
      %s343 = smul.addr %s342, 4
      %s344 = scalar_lea.vmem %s1, %s343
      %p345 = scmp.lt.s32.totalorder %s21, 1
      %s346 = scalar_select %p345, %s21, 1
      %p347 = scmp.lt.s32.totalorder %s22, 3
      %s348 = scalar_select %p347, %s22, 3
      %p349 = scmp.lt.s32.totalorder %s24, 0
      %s350 = scalar_select %p349, %s24, 0
      %s351 = sadd.s32 %s350, %s348
      %s352 = smul.addr %s346, 4
      %s353 = sadd.s32 %s351, %s352
      %s354 = smul.addr %s353, 4
      %s355 = scalar_lea.vmem %s2, %s354
      %p356 = scmp.lt.s32.totalorder %s23, 0
      %s357 = scalar_select %p356, %s23, 0
      %p358 = scmp.lt.s32.totalorder %s24, 0
      %s359 = scalar_select %p358, %s24, 0
      %s360 = sadd.s32 %s359, %s357
      %s361 = smul.addr %s360, 4
      %s362 = scalar_lea.vmem %s3, %s361
      %p363 = scmp.lt.s32.totalorder %s21, 1
      %s364 = scalar_select %p363, %s21, 1
      %p365 = scmp.lt.s32.totalorder %s22, 3
      %s366 = scalar_select %p365, %s22, 3
      %p367 = scmp.lt.s32.totalorder %s23, 0
      %s368 = scalar_select %p367, %s23, 0
      %s369 = sadd.s32 %s368, %s366
      %s370 = smul.addr %s364, 4
      %s371 = sadd.s32 %s369, %s370
      %s372 = smul.addr %s371, 4
      %s373 = scalar_lea.vmem %s4, %s372
      %p375 = scmp.eq.s32.totalorder %s24, 0
      // Predicated region
      $region37: #{transformer_forward.41} parent=35 // pred_check
        %p376 = pneg %p375
      $region38: #{transformer_forward.41} parent=35 // pred_check_branch
        %378 = sbr.rel (%p376) target = $region40
      $region39: #{transformer_forward.41} parent=35 // pred_region
        %vm379 = vcmask 7168
        %380 = vst.msk [vmem:[#allocation2] sm:$0xff] %vm379, -1e+30
        %381 = vst.msk [vmem:[#allocation3] sm:$0xff] %vm379, 0.0
        %vm382 = vcmask 64512
        %383 = vst.msk [vmem:[#allocation4] sm:$0xff] %vm382, 0.0
      $region40: #{transformer_forward.41} parent=35 // pred_fallthru
        _
      %v384 = vld [vmem:[%s333] sm:$0xf]
      %v385 = vld [vmem:[%s344] sm:$0xf]
      %v386 = vld [vmem:[%s362] sm:$0xf]
      %v387 = vunpack.c.l.bf16 %v386
      %vm388 = vcmask 64512
      %v390 = vsel %vm388, %v384, 0
      %v393 = vsel %vm388, %v385, 0
      %395 = vmatprep.subr.bf16.mxu0 0
      %396 = vmatpush1.bf16.xpose.msra.mxu0 0
      %397 = vmatprep.subr.bf16.mxu0 0
      %398 = vmatpush1.bf16.xpose.msra.mxu0 0
      %399 = vmatprep.subr.bf16.mxu0 0
      %400 = vmatpush1.bf16.xpose.msra.mxu0 0
      %401 = vmatprep.subr.bf16.mxu0 0
      %402 = vmatpush1.bf16.xpose.msra.mxu0 0
      %403 = vmatprep.subr.bf16.mxu0 0
      %404 = vmatpush1.bf16.xpose.msra.mxu0 0
      %405 = vmatprep.subr.bf16.mxu0 0
      %406 = vmatpush1.bf16.xpose.msra.mxu0 0
      %407 = vmatprep.subr.bf16.mxu0 0
      %408 = vmatpush1.bf16.xpose.msra.mxu0 0
      %409 = vmatprep.subr.bf16.mxu0 0
      %410 = vmatpush1.bf16.xpose.msra.mxu0 %v393
      %411 = vmatprep.subr.bf16.mxu0 0
      %412 = vmatpush2.bf16.xpose.msra.mxu0 0
      %413 = vmatprep.subr.bf16.mxu0 0
      %414 = vmatpush2.bf16.xpose.msra.mxu0 0
      %415 = vmatprep.subr.bf16.mxu0 0
      %416 = vmatpush2.bf16.xpose.msra.mxu0 0
      %417 = vmatprep.subr.bf16.mxu0 0
      %418 = vmatpush2.bf16.xpose.msra.mxu0 0
      %419 = vmatprep.subr.bf16.mxu0 0
      %420 = vmatpush2.bf16.xpose.msra.mxu0 0
      %421 = vmatprep.subr.bf16.mxu0 0
      %422 = vmatpush2.bf16.xpose.msra.mxu0 0
      %423 = vmatprep.subr.bf16.mxu0 0
      %424 = vmatpush2.bf16.xpose.msra.mxu0 0
      %425 = vmatprep.subr.bf16.mxu0 0
      %426 = vmatpush2.bf16.xpose.msra.mxu0 0
      %427 = vmatprep.mubr.bf16.mxu0 0
      %428 = vmatmul.mubr.bf16.gmra.mxu0 %v390
      %v429 = vpop.f32.mrf.mxu0
      %v430 = vadd.f32 %v387, %v429
      %v431 = vpop.f32.mrf.mxu0
      %v432 = vpop.f32.mrf.mxu0
      %v433 = vpop.f32.mrf.mxu0
      %434 = vdwg.mxu0
      %v435 = vld [vmem:[#allocation2] sm:$0xff]
      %v436 = vsel %vm388, %v430, -inf
      %437 = vmax.xlane.f32.xlu0 %v436
      %v438 = vpop.xlane.xlu0 %437
      %v439 = vmax.f32 %v435, %v438
      %v440 = vsub.f32 %v435, %v439
      %v441 = vmul.f32 %v440, 1.442695
      %v442 = vpow.pop %v441
      %444 = vset.pattern.permute.xlu0 0
      %445 = vperm.xlu0 %444, %v439
      %v446 = vpop.permute.xlu0 %445
      %v448 = vsub.f32 %v430, %v446
      %v449 = vmul.f32 %v448, 1.442695
      %v450 = vpow.pop %v449
      %v451 = vld [vmem:[#allocation3] sm:$0xff]
      %v452 = vmul.f32 %v442, %v451
      %v453 = vsel %vm388, %v450, 0.0
      %454 = vadd.xlane.f32.xlu0 %v453
      %v455 = vpop.xlane.xlu0 %454
      %v456 = vadd.f32 %v452, %v455
      %vm457 = vcmask 7168
      %458 = vst.msk [vmem:[#allocation3] sm:$0xff] %vm457, %v456
      %v459 = vld [vmem:[#allocation4] sm:$0xff]
      %461 = vset.pattern.permute.xlu0 0
      %462 = vperm.xlu0 %461, %v442
      %v463 = vpop.permute.xlu0 %462
      %v465 = vmul.f32 %v463, %v459
      %v466 = vpack.c.bf16 %v450, %v450
      %v467 = vld [vmem:[%s355] sm:$0xf]
      %v469 = vsel %vm388, %v466, 0
      %vm471 = vcmask 1043456
      %v473 = vsel %vm471, %v467, 0
      %475 = vmatprep.subr.bf16.mxu0 0
      %476 = vmatpush1.bf16.msra.mxu0 0
      %477 = vmatprep.subr.bf16.mxu0 0
      %478 = vmatpush1.bf16.msra.mxu0 0
      %479 = vmatprep.subr.bf16.mxu0 0
      %480 = vmatpush1.bf16.msra.mxu0 0
      %481 = vmatprep.subr.bf16.mxu0 0
      %482 = vmatpush1.bf16.msra.mxu0 0
      %483 = vmatprep.subr.bf16.mxu0 0
      %484 = vmatpush1.bf16.msra.mxu0 0
      %485 = vmatprep.subr.bf16.mxu0 0
      %486 = vmatpush1.bf16.msra.mxu0 0
      %487 = vmatprep.subr.bf16.mxu0 0
      %488 = vmatpush1.bf16.msra.mxu0 0
      %489 = vmatprep.subr.bf16.mxu0 0
      %490 = vmatpush1.bf16.msra.mxu0 %v473
      %491 = vmatprep.subr.bf16.mxu0 0
      %492 = vmatpush2.bf16.msra.mxu0 0
      %493 = vmatprep.subr.bf16.mxu0 0
      %494 = vmatpush2.bf16.msra.mxu0 0
      %495 = vmatprep.subr.bf16.mxu0 0
      %496 = vmatpush2.bf16.msra.mxu0 0
      %497 = vmatprep.subr.bf16.mxu0 0
      %498 = vmatpush2.bf16.msra.mxu0 0
      %499 = vmatprep.subr.bf16.mxu0 0
      %500 = vmatpush2.bf16.msra.mxu0 0
      %501 = vmatprep.subr.bf16.mxu0 0
      %502 = vmatpush2.bf16.msra.mxu0 0
      %503 = vmatprep.subr.bf16.mxu0 0
      %504 = vmatpush2.bf16.msra.mxu0 0
      %505 = vmatprep.subr.bf16.mxu0 0
      %506 = vmatpush2.bf16.msra.mxu0 0
      %507 = vmatprep.mubr.bf16.mxu0 0
      %508 = vmatmul.mubr.bf16.gmra.mxu0 %v469
      %v509 = vpop.f32.mrf.mxu0
      %v510 = vadd.f32 0.0, %v509
      %v511 = vpop.f32.mrf.mxu0
      %v512 = vpop.f32.mrf.mxu0
      %v513 = vpop.f32.mrf.mxu0
      %514 = vdwg.mxu0
      %v515 = vadd.f32 %v465, %v510
      %516 = vst.msk [vmem:[#allocation4] sm:$0xff] %vm388, %v515
      %517 = vst.msk [vmem:[#allocation2] sm:$0xff] %vm457, %v439
      // Predicated region
      $region41: #{transformer_forward.41} parent=35 // pred_check
        %p518 = pneg %p375
      $region42: #{transformer_forward.41} parent=35 // pred_check_branch
        %520 = sbr.rel (%p518) target = $region44
      $region43: #{transformer_forward.41} parent=35 // pred_region
        %v521 = vld [vmem:[#allocation3] sm:$0xff]
        %v522 = vmax.f32 %v521, 1e-20
        %v523 = vld [vmem:[#allocation4] sm:$0xff]
        %v524 = vrcp.pop %v522
        %526 = vset.pattern.permute.xlu0 0
        %527 = vperm.xlu0 %526, %v524
        %v528 = vpop.permute.xlu0 %527
        %v530 = vmul.f32 %v523, %v528
        %v531 = vpack.c.bf16 %v530, %v530
        %vm532 = vcmask 60416
        %533 = vst.msk [vmem:[%s373] sm:$0xf] %vm532, %v531
      $region44: #{transformer_forward.41} parent=35 // pred_fallthru
        _
      %p534 = scmp.lt.s32.totalorder %s21, 1
      %s535 = scalar_select %p534, %s21, 1
      %p536 = scmp.lt.s32.totalorder %s22, 3
      %s537 = scalar_select %p536, %s22, 3
      %p538 = scmp.lt.s32.totalorder %s23, 0
      %s539 = scalar_select %p538, %s23, 0
      %s540 = sadd.s32 %s539, %s537
      %s541 = smul.addr %s535, 4
      %s542 = sadd.s32 %s540, %s541
      %s543 = smul.addr %s542, 4
      %s544 = scalar_lea.vmem %s4, %s543
      // Predicated region
      $region45: #{transformer_forward.41} parent=35 // pred_check
        %p545 = pneg %p181
      $region46: #{transformer_forward.41} parent=35 // pred_check_branch
        %547 = sbr.rel (%p545) target = $region48
      $region47: #{transformer_forward.41} parent=35 // pred_region
        _
      $region48: #{transformer_forward.41} parent=35 // pred_fallthru
        _
    $region36: #{transformer_forward.41} parent=5 // pred_fallthru
      _
    %p548 = scmp.le.s32.totalorder 2, %s10
    // Predicated region
    $region49: #{transformer_forward.41} parent=5 // pred_check
      %p549 = pneg %p548
    $region50: #{transformer_forward.41} parent=5 // pred_check_branch
      %551 = sbr.rel (%p549) target = $region52
    $region51: #{transformer_forward.41} parent=5 // pred_region
      %s552 = ssub.s32 %s10, 2
      // Predicated region
      $region53: #{transformer_forward.41} parent=51 // pred_check
        %p553 = pneg %p187
      $region54: #{transformer_forward.41} parent=51 // pred_check_branch
        %555 = sbr.rel (%p553) target = $region56
      $region55: #{transformer_forward.41} parent=51 // pred_region
        %p556 = scmp.lt.s32.totalorder %s25, 1
        %s557 = scalar_select %p556, %s25, 1
        %p558 = scmp.lt.s32.totalorder %s26, 3
        %s559 = scalar_select %p558, %s26, 3
        %p560 = scmp.lt.s32.totalorder %s27, 0
        %s561 = scalar_select %p560, %s27, 0
        %s562 = sadd.s32 %s561, %s559
        %s563 = smul.addr %s557, 4
        %s564 = sadd.s32 %s562, %s563
        %s565 = smul.addr %s564, 4
        %s566 = scalar_lea.vmem %s4, %s565
      $region56: #{transformer_forward.41} parent=51 // pred_fallthru
        _
    $region52: #{transformer_forward.41} parent=5 // pred_fallthru
      _
  $region6: #{transformer_forward.41} parent=0 // loop_footer
    %s14 = sadd.s32 1, %s10
  $region7: #{transformer_forward.41} parent=0 // loop_footer_branch
    %9 = sbr.rel target = $region3
  $region8: #{transformer_forward.41} parent=0 // loop_exit
    _

</llo_original>
